<compile_context>
chip_gen: v5e
topology: v5e:2x2
jax: 0.10.0
libtpu: 0.0.40
codegen_flags: <defaults>
</compile_context>

<pallas_src>
import functools

import jax
import jax.numpy as jnp
from jax.experimental import pallas as pl
from jax.experimental.pallas import tpu as pltpu


def _building_block_kernel(x_ref, w3_ref, b3_ref, w1_ref, b1_ref, out_ref, *,
                           H, W, c_in):
    # x_ref  : (H+2, (W+2)*c_in)          bf16  reflect-padded, lane-folded input
    # w3_ref : (3, (W+2)*c_in, W*c_mid)   bf16  banded grouped-3x3 weight (one slab per kh)
    # b3_ref : (1, W*c_mid)               f32   3x3 bias, tiled along W
    # w1_ref : (W*c_mid, W*c_out)         bf16  W-block-diagonal 1x1 weight
    # b1_ref : (1, W*c_out)               f32   1x1 bias, tiled along W
    # out_ref: (H, W*c_out)               f32   lane-dense output
    del c_in  # layout is already encoded in the banded weight
    xp = x_ref[...]                                   # one vld pass, bf16

    # Grouped 3x3 conv: three bf16 MXU matmuls (one per kh row offset).  The kw
    # offsets and the group block-diagonal structure live inside the banded
    # weight, so no per-tap gathers / patch writes are needed and the result is
    # produced directly in the lane-dense (H, W*c_mid) layout.
    acc = jnp.dot(xp[0:H, :], w3_ref[0], preferred_element_type=jnp.float32)
    acc += jnp.dot(xp[1:H + 1, :], w3_ref[1], preferred_element_type=jnp.float32)
    acc += jnp.dot(xp[2:H + 2, :], w3_ref[2], preferred_element_type=jnp.float32)
    acc = jnp.maximum(acc + b3_ref[...], 0.0)          # bias + ReLU in f32 (VPU)

    # 1x1 conv: one more bf16 MXU matmul against the W-block-diagonal weight.
    y = jnp.dot(acc.astype(w1_ref.dtype), w1_ref[...],
                preferred_element_type=jnp.float32) + b1_ref[...]

    # (H, W*c_out) with W*c_out a multiple of 128 at the test size -> unmasked,
    # lane-dense stores (review #5).
    out_ref[...] = y.astype(out_ref.dtype)


def building_block(x_nchw, wg, bg, w1_t, b1):
    """Forward pass matching the PyTorch BuildingBlock.

    x_nchw : (N, in_ch, H, W) float32
    wg     : (groups, cout_g, cin_g, 3, 3)  grouped 3x3 conv weight (PyTorch layout split by group)
    bg     : (c_mid,)                       3x3 conv bias
    w1_t   : (c_out, c_mid, 1, 1)           1x1 conv weight (PyTorch layout)
    b1     : (c_out,)                       1x1 conv bias
    """
    N, c_in, H, W = x_nchw.shape
    groups, cout_g, cin_g, kh_, kw_ = wg.shape
    c_mid = groups * cout_g
    c_out = w1_t.shape[0]
    assert kh_ == 3 and kw_ == 3
    assert groups * cin_g == c_in and w1_t.shape[1] == c_mid
    assert H >= 2 and W >= 2      # reflect pad of 1 needs at least 2 rows/cols

    # ---- wrapper layout plumbing (bf16 as early as possible, review #2) -----
    x_nhwc = jnp.transpose(x_nchw, (0, 2, 3, 1)).astype(jnp.bfloat16)
    xpad = jnp.pad(x_nhwc, ((0, 0), (1, 1), (1, 1), (0, 0)), mode="reflect")
    xpad = xpad.reshape(N, H + 2, (W + 2) * c_in)        # fold W into lanes (free reshape)

    # ---- densify the grouped weight to (3, 3, c_in, c_mid) ------------------
    w3d = jnp.zeros((3, 3, c_in, c_mid), jnp.float32)
    for g in range(groups):
        blk = jnp.transpose(wg[g], (2, 3, 1, 0))          # (3, 3, cin_g, cout_g)
        w3d = w3d.at[:, :, g * cin_g:(g + 1) * cin_g,
                        g * cout_g:(g + 1) * cout_g].set(blk)

    # ---- banded (block-Toeplitz) 3x3 weight, one slab per kh ----------------
    # w3band[kh, wp*c_in + ci, w*c_mid + co] = w3d[kh, wp - w, ci, co]
    # for wp - w in {0, 1, 2}, where wp indexes the reflect-padded columns.
    # Mostly structural zeros -- the right trade while W*c is small (review #9).
    kw_i = jnp.arange(3)[:, None, None]
    wp_i = jnp.arange(W + 2)[None, :, None]
    w_i = jnp.arange(W)[None, None, :]
    band = (wp_i == w_i + kw_i).astype(jnp.float32)       # (3, W+2, W)
    w3band = jnp.einsum("hkio,kpw->hpiwo", w3d, band)      # (3, W+2, c_in, W, c_mid)
    w3band = w3band.reshape(3, (W + 2) * c_in, W * c_mid).astype(jnp.bfloat16)

    # ---- W-block-diagonal 1x1 weight ----------------------------------------
    w1m = jnp.transpose(w1_t[:, :, 0, 0], (1, 0))         # (c_mid, c_out) = (cin, cout)
    w1blk = jnp.einsum("io,wv->wivo", w1m, jnp.eye(W, dtype=jnp.float32))
    w1blk = w1blk.reshape(W * c_mid, W * c_out).astype(jnp.bfloat16)

    # Biases tiled along W to match the lane-folded (w*c + c) layout.
    b3_row = jnp.tile(bg.astype(jnp.float32), W).reshape(1, W * c_mid)
    b1_row = jnp.tile(b1.astype(jnp.float32), W).reshape(1, W * c_out)

    kernel = functools.partial(_building_block_kernel, H=H, W=W, c_in=c_in)

    out = pl.pallas_call(
        kernel,
        out_shape=jax.ShapeDtypeStruct((N, H, W * c_out), jnp.float32),
        grid_spec=pltpu.PrefetchScalarGridSpec(
            num_scalar_prefetch=0,
            # One batch element per step: bounds VMEM by H*W*C per step and
            # keeps both v7x TensorCores busy for N >= 2 (review #6).
            grid=(N,),
            in_specs=[
                pl.BlockSpec((None, H + 2, (W + 2) * c_in), lambda n: (n, 0, 0)),
                pl.BlockSpec((3, (W + 2) * c_in, W * c_mid), lambda n: (0, 0, 0)),
                pl.BlockSpec((1, W * c_mid), lambda n: (0, 0)),
                pl.BlockSpec((W * c_mid, W * c_out), lambda n: (0, 0)),
                pl.BlockSpec((1, W * c_out), lambda n: (0, 0)),
            ],
            out_specs=pl.BlockSpec((None, H, W * c_out), lambda n: (n, 0, 0)),
        ),
        compiler_params=pltpu.CompilerParams(
            dimension_semantics=("parallel",),
            vmem_limit_bytes=32 * 1024 * 1024,
        ),
    )(xpad, w3band, b3_row, w1blk, b1_row)

    out = out.reshape(N, H, W, c_out)                      # free reshape
    return jnp.transpose(out, (0, 3, 1, 2))                # back to NCHW


def reference(x_nchw, wg, bg, w1_t, b1):
    """Pure-JAX f32 reference matching the PyTorch module (for validation)."""
    N, c_in, H, W = x_nchw.shape
    groups, cout_g, cin_g, _, _ = wg.shape
    c_mid = groups * cout_g
    x = jnp.transpose(x_nchw, (0, 2, 3, 1))
    xpad = jnp.pad(x, ((0, 0), (1, 1), (1, 1), (0, 0)), mode="reflect")
    acc = jnp.zeros((N, H, W, c_mid), jnp.float32)
    for g in range(groups):
        xin = xpad[..., g * cin_g:(g + 1) * cin_g]
        part = jnp.zeros((N, H, W, cout_g), jnp.float32)
        for kh in range(3):
            for kw in range(3):
                part += jnp.einsum("nhwc,oc->nhwo",
                                   xin[:, kh:kh + H, kw:kw + W, :],
                                   wg[g, :, :, kh, kw])
        acc = acc.at[..., g * cout_g:(g + 1) * cout_g].set(part)
    acc = jnp.maximum(acc + bg, 0.0)
    y = jnp.einsum("nhwc,oc->nhwo", acc, w1_t[:, :, 0, 0]) + b1
    return jnp.transpose(y, (0, 3, 1, 2))


if __name__ == "__main__":
    in_ch = out_ch = 32
    groups = 4
    N, H, W = 2, 16, 16
    cin_g, cout_g = in_ch // groups, out_ch // groups

    key = jax.random.PRNGKey(0)
    k_x, k_w3, k_b3, k_w1, k_b1 = jax.random.split(key, 5)

    x = jax.random.normal(k_x, (N, in_ch, H, W), jnp.float32)
    wg = jax.random.normal(k_w3, (groups, cout_g, cin_g, 3, 3), jnp.float32) * 0.1
    bg = jax.random.normal(k_b3, (out_ch,), jnp.float32) * 0.1
    w1_t = jax.random.normal(k_w1, (out_ch, out_ch, 1, 1), jnp.float32) * 0.1
    b1 = jax.random.normal(k_b1, (out_ch,), jnp.float32) * 0.1

    building_block_jit = jax.jit(building_block)
    y = building_block_jit(x, wg, bg, w1_t, b1)
    jax.block_until_ready(y)

    y_ref = reference(x, wg, bg, w1_t, b1)
    assert y.shape == (N, out_ch, H, W)
    # Tolerance covers bf16 MXU inputs with f32 accumulation through two matmuls.
    assert jnp.allclose(y, y_ref, atol=5e-2, rtol=5e-2), "mismatch vs reference"

    print("KERNEL_OK")
</pallas_src>

<mosaic_0001>
module attributes {stable_mosaic.version = 11 : i64} {
  func.func @_building_block_kernel(%arg0: i32, %arg1: memref<1x18x576xbf16, #tpu.memory_space<vmem>>, %arg2: memref<3x576x512xbf16, #tpu.memory_space<vmem>>, %arg3: memref<1x512xf32, #tpu.memory_space<vmem>>, %arg4: memref<512x512xbf16, #tpu.memory_space<vmem>>, %arg5: memref<1x512xf32, #tpu.memory_space<vmem>>, %arg6: memref<1x16x512xf32, #tpu.memory_space<vmem>>) attributes {dimension_semantics = [#tpu.dimension_semantics<parallel>], iteration_bounds = array<i64: 2>, scalar_prefetch = 0 : i64, scratch_operands = 0 : i64, tpu.core_type = #tpu.core_type<tc>, window_params = [{transform_indices = @transform_0, window_bounds = array<i64: 1, 18, 576>}, {pipeline_mode = #tpu.pipeline_mode<synchronous>, transform_indices = @transform_1, window_bounds = array<i64: 3, 576, 512>}, {pipeline_mode = #tpu.pipeline_mode<synchronous>, transform_indices = @transform_2, window_bounds = array<i64: 1, 512>}, {pipeline_mode = #tpu.pipeline_mode<synchronous>, transform_indices = @transform_3, window_bounds = array<i64: 512, 512>}, {pipeline_mode = #tpu.pipeline_mode<synchronous>, transform_indices = @transform_4, window_bounds = array<i64: 1, 512>}, {transform_indices = @transform_5, window_bounds = array<i64: 1, 16, 512>}]} {
    %c0 = arith.constant 0 : index
    %c0_0 = arith.constant 0 : index
    %c0_1 = arith.constant 0 : index
    %0 = vector.load %arg1[%c0, %c0_0, %c0_1] : memref<1x18x576xbf16, #tpu.memory_space<vmem>>, vector<1x18x576xbf16>
    %1 = vector.shape_cast %0 : vector<1x18x576xbf16> to vector<18x576xbf16>
    %2 = vector.extract_strided_slice %1 {offsets = [0, 0], sizes = [16, 576], strides = [1, 1]} : vector<18x576xbf16> to vector<16x576xbf16>
    %c0_2 = arith.constant 0 : index
    %c0_3 = arith.constant 0 : index
    %c0_4 = arith.constant 0 : index
    %3 = vector.load %arg2[%c0_2, %c0_3, %c0_4] : memref<3x576x512xbf16, #tpu.memory_space<vmem>>, vector<1x576x512xbf16>
    %4 = vector.shape_cast %3 : vector<1x576x512xbf16> to vector<576x512xbf16>
    %cst = arith.constant dense<0.000000e+00> : vector<16x512xf32>
    %5 = tpu.matmul %2, %4, %cst {dimension_numbers = #tpu.dot_dimension_numbers<[1], [0], [0], [1], [0, 0, 1, 1], [], []>} : vector<16x576xbf16>, vector<576x512xbf16>, vector<16x512xf32> -> vector<16x512xf32>
    %6 = vector.extract_strided_slice %1 {offsets = [1, 0], sizes = [16, 576], strides = [1, 1]} : vector<18x576xbf16> to vector<16x576xbf16>
    %c1 = arith.constant 1 : index
    %c0_5 = arith.constant 0 : index
    %c0_6 = arith.constant 0 : index
    %7 = vector.load %arg2[%c1, %c0_5, %c0_6] : memref<3x576x512xbf16, #tpu.memory_space<vmem>>, vector<1x576x512xbf16>
    %8 = vector.shape_cast %7 : vector<1x576x512xbf16> to vector<576x512xbf16>
    %cst_7 = arith.constant dense<0.000000e+00> : vector<16x512xf32>
    %9 = tpu.matmul %6, %8, %cst_7 {dimension_numbers = #tpu.dot_dimension_numbers<[1], [0], [0], [1], [0, 0, 1, 1], [], []>} : vector<16x576xbf16>, vector<576x512xbf16>, vector<16x512xf32> -> vector<16x512xf32>
    %10 = arith.addf %5, %9 : vector<16x512xf32>
    %11 = vector.extract_strided_slice %1 {offsets = [2, 0], sizes = [16, 576], strides = [1, 1]} : vector<18x576xbf16> to vector<16x576xbf16>
    %c2 = arith.constant 2 : index
    %c0_8 = arith.constant 0 : index
    %c0_9 = arith.constant 0 : index
    %12 = vector.load %arg2[%c2, %c0_8, %c0_9] : memref<3x576x512xbf16, #tpu.memory_space<vmem>>, vector<1x576x512xbf16>
    %13 = vector.shape_cast %12 : vector<1x576x512xbf16> to vector<576x512xbf16>
    %cst_10 = arith.constant dense<0.000000e+00> : vector<16x512xf32>
    %14 = tpu.matmul %11, %13, %cst_10 {dimension_numbers = #tpu.dot_dimension_numbers<[1], [0], [0], [1], [0, 0, 1, 1], [], []>} : vector<16x576xbf16>, vector<576x512xbf16>, vector<16x512xf32> -> vector<16x512xf32>
    %15 = arith.addf %10, %14 : vector<16x512xf32>
    %c0_11 = arith.constant 0 : index
    %c0_12 = arith.constant 0 : index
    %16 = vector.load %arg3[%c0_11, %c0_12] : memref<1x512xf32, #tpu.memory_space<vmem>>, vector<1x512xf32>
    %17 = vector.broadcast %16 : vector<1x512xf32> to vector<16x512xf32>
    %18 = arith.addf %15, %17 : vector<16x512xf32>
    %cst_13 = arith.constant 0.000000e+00 : f32
    %19 = vector.broadcast %cst_13 : f32 to vector<16x512xf32>
    %20 = arith.maximumf %18, %19 : vector<16x512xf32>
    %21 = arith.truncf %20 : vector<16x512xf32> to vector<16x512xbf16>
    %c0_14 = arith.constant 0 : index
    %c0_15 = arith.constant 0 : index
    %22 = vector.load %arg4[%c0_14, %c0_15] : memref<512x512xbf16, #tpu.memory_space<vmem>>, vector<512x512xbf16>
    %cst_16 = arith.constant dense<0.000000e+00> : vector<16x512xf32>
    %23 = tpu.matmul %21, %22, %cst_16 {dimension_numbers = #tpu.dot_dimension_numbers<[1], [0], [0], [1], [0, 0, 1, 1], [], []>} : vector<16x512xbf16>, vector<512x512xbf16>, vector<16x512xf32> -> vector<16x512xf32>
    %c0_17 = arith.constant 0 : index
    %c0_18 = arith.constant 0 : index
    %24 = vector.load %arg5[%c0_17, %c0_18] : memref<1x512xf32, #tpu.memory_space<vmem>>, vector<1x512xf32>
    %25 = vector.broadcast %24 : vector<1x512xf32> to vector<16x512xf32>
    %26 = arith.addf %23, %25 : vector<16x512xf32>
    %c0_19 = arith.constant 0 : index
    %c0_20 = arith.constant 0 : index
    %c0_21 = arith.constant 0 : index
    %27 = vector.load %arg6[%c0_19, %c0_20, %c0_21] : memref<1x16x512xf32, #tpu.memory_space<vmem>>, vector<1x16x512xf32>
    %28 = vector.shape_cast %27 : vector<1x16x512xf32> to vector<16x512xf32>
    %29 = vector.shape_cast %26 : vector<16x512xf32> to vector<1x16x512xf32>
    tpu.vector_store %arg6[%c0_19, %c0_20, %c0_21], %29 {strides = array<i32>} : memref<1x16x512xf32, #tpu.memory_space<vmem>>, vector<1x16x512xf32>,
    return
  }
  func.func @transform_0(%arg0: i32) -> (i32, i32, i32) {
    %c0_i32 = arith.constant 0 : i32
    %c0_i32_0 = arith.constant 0 : i32
    %c0_i32_1 = arith.constant 0 : i32
    return %arg0, %c0_i32, %c0_i32_0 : i32, i32, i32
  }
  func.func @transform_1(%arg0: i32) -> (i32, i32, i32) {
    %c0_i32 = arith.constant 0 : i32
    %c0_i32_0 = arith.constant 0 : i32
    %c0_i32_1 = arith.constant 0 : i32
    %c0_i32_2 = arith.constant 0 : i32
    return %c0_i32, %c0_i32_0, %c0_i32_1 : i32, i32, i32
  }
  func.func @transform_2(%arg0: i32) -> (i32, i32) {
    %c0_i32 = arith.constant 0 : i32
    %c0_i32_0 = arith.constant 0 : i32
    %c0_i32_1 = arith.constant 0 : i32
    return %c0_i32, %c0_i32_0 : i32, i32
  }
  func.func @transform_3(%arg0: i32) -> (i32, i32) {
    %c0_i32 = arith.constant 0 : i32
    %c0_i32_0 = arith.constant 0 : i32
    %c0_i32_1 = arith.constant 0 : i32
    return %c0_i32, %c0_i32_0 : i32, i32
  }
  func.func @transform_4(%arg0: i32) -> (i32, i32) {
    %c0_i32 = arith.constant 0 : i32
    %c0_i32_0 = arith.constant 0 : i32
    %c0_i32_1 = arith.constant 0 : i32
    return %c0_i32, %c0_i32_0 : i32, i32
  }
  func.func @transform_5(%arg0: i32) -> (i32, i32, i32) {
    %c0_i32 = arith.constant 0 : i32
    %c0_i32_0 = arith.constant 0 : i32
    %c0_i32_1 = arith.constant 0 : i32
    return %arg0, %c0_i32, %c0_i32_0 : i32, i32, i32
  }
}

</mosaic_0001>

<llo_original>
// kernel: tile.13
$region0: #{tile.13}
  #allocation0 [shape = 's32[1]{0}', space=sflag, size = 0x4, scoped, tag = 'scoped memory for tile.13']
  %s0 = inlined_call_operand.vmem [shape: f32[32], index: 0, kind: input, shape index: {}]
  %s1 = inlined_call_operand.vmem [shape: f32[16,32], index: 1, kind: output, shape index: {}]
  // Predicated region
  $region2: #{tile.13} parent=0 // pred_check
    _
  $region3: #{tile.13} parent=0 // pred_check_branch
    %3 = sbr.rel (0) target = $region5
  $region4: #{tile.13} parent=0 // pred_region
    _
  $region5: #{tile.13} parent=0 // pred_fallthru
    _
  %v4 = vld [vmem:[%s0] ss:$0 sm:$0xff]
  %5 = vst [vmem:[%s1] sm:$0xff] %v4
  %s6 = scalar_lea.vmem %s1, 8
  %7 = vst [vmem:[%s6] sm:$0xff] %v4

// kernel: tile.14
$region0: #{tile.14}
  %s0 = inlined_call_operand.vmem [shape: f32[16,32], index: 0, kind: input, shape index: {}]
  %s1 = inlined_call_operand.vmem [shape: f32[1,512], index: 1, kind: output, shape index: {}]
  $region1: #{tile.14} parent=0
    #allocation0 [shape = 'u8[16384]{0}', space=vmem, size = 0x4000, scoped, tag = 'scoped mem for output reshape']
    %v2 = vld [vmem:[%s0] ss:$4 sm:$0xf]
    %vm3 = vcmask 261120
    %4 = vst.msk [vmem:[#allocation0] ss:$8 sm:$0xf] %vm3, %v2
    %s5 = scalar_lea.vmem %s0, 3
    %v6 = vld [vmem:[%s5] ss:$4 sm:$0xf]
    %7 = vrot.lane.b32.xlu0 %v6, 96
    %v8 = vpop.permute.xlu0 %7
    %vm9 = vcmask 1048320
    %10 = vst.msk [vmem:[#allocation0] ss:$8 sm:$0xf] %vm9, %v8
    %s11 = scalar_lea.vmem %s0, 2
    %v12 = vld [vmem:[%s11] ss:$4 sm:$0xf]
    %13 = vrot.lane.b32.xlu0 %v12, 64
    %v14 = vpop.permute.xlu0 %13
    %vm15 = vcmask 785920
    %16 = vst.msk [vmem:[#allocation0] ss:$8 sm:$0xf] %vm15, %v14
    %s17 = scalar_lea.vmem %s0, 1
    %v18 = vld [vmem:[%s17] ss:$4 sm:$0xf]
    %19 = vrot.lane.b32.xlu0 %v18, 32
    %v20 = vpop.permute.xlu0 %19
    %vm21 = vcmask 523520
    %22 = vst.msk [vmem:[#allocation0] ss:$8 sm:$0xf] %vm21, %v20
    %s24 = ssub.s32 2, 1
    %v25 = vld [vmem:[#allocation0] sm:%s24]
    %s27 = ssub.s32 2, 1
    %28 = vst [vmem:[%s1] sm:%s27] %v25
    %s29 = scalar_lea.vmem [#allocation0], 8
    %v30 = vld [vmem:[%s29] sm:%s24]
    %s32 = ssub.s32 2, 1
    %s33 = scalar_lea.vmem %s1, 1
    %34 = vst [vmem:[%s33] sm:%s32] %v30
    %s35 = scalar_lea.vmem [#allocation0], 16
    %v36 = vld [vmem:[%s35] sm:%s24]
    %s38 = ssub.s32 2, 1
    %s39 = scalar_lea.vmem %s1, 2
    %40 = vst [vmem:[%s39] sm:%s38] %v36
    %s41 = scalar_lea.vmem [#allocation0], 24
    %v42 = vld [vmem:[%s41] sm:%s24]
    %s44 = ssub.s32 2, 1
    %s45 = scalar_lea.vmem %s1, 3
    %46 = vst [vmem:[%s45] sm:%s44] %v42

// kernel: building_block.1
$region0: #{building_block.1}
  #allocation0 [shape = 'u32[]', space=smem, size = 0x4, offset = 0x4, fixed_abs, tag = 'smem constant byte address 0x4 - core index']
  #allocation1 [shape = 'u32[72,128]{1,0:T(1,128)}', space=vmem, size = 0x9000, scoped, tag = 'internal scratch']
  %s0 = inlined_call_operand.vmem [shape: bf16[2,18,576], index: 0, kind: input, shape index: {}]
  %s1 = inlined_call_operand.vmem [shape: bf16[3,576,512], index: 1, kind: input, shape index: {}]
  %s2 = inlined_call_operand.vmem [shape: f32[1,512], index: 2, kind: input, shape index: {}]
  %s3 = inlined_call_operand.vmem [shape: bf16[512,512], index: 3, kind: input, shape index: {}]
  %s4 = inlined_call_operand.vmem [shape: f32[1,512], index: 4, kind: input, shape index: {}]
  %s5 = inlined_call_operand.vmem [shape: f32[2,16,512], index: 5, kind: output, shape index: {}]
  %s6 = sld [smem:[#allocation0]]
  $region53: #{building_block.1} parent=0
    _
  %s8 = ssub.s32 1, %s6
  %s9 = scalar_select 0, %s8, %s6
  loop: start=0, step=1, limit=4
  $region2: #{building_block.1} parent=0 // loop_pre_header
    _
  $region3: #{building_block.1} parent=0 // loop_header
    %s11 = sphi 0, %s15
    %p12 = scmp.ge.s32.totalorder %s11, 4
    %s21 = sphi 0, %s23
    %s24 = sphi 0, %s21
    %s25 = sphi 0, %s24
    %s41 = sphi 0, %s25
    %s45 = sphi 0, %s45
    %s47 = sphi 0, %s45
    %s48 = sphi 0, %s47
    %s62 = sphi 0, %s48
    %s66 = sphi 0, %s66
    %s68 = sphi 0, %s66
    %s69 = sphi 0, %s68
    %s83 = sphi 0, %s69
    %s87 = sphi 0, %s87
    %s89 = sphi 0, %s87
    %s90 = sphi 0, %s89
    %s104 = sphi 0, %s90
    %s108 = sphi 0, %s108
    %s110 = sphi 0, %s108
    %s111 = sphi 0, %s110
    %s125 = sphi 0, %s111
    %s131 = sphi 0, %s133
    %s134 = sphi 0, %s131
    %s135 = sphi 0, %s134
    %s151 = sphi 0, %s135
  $region4: #{building_block.1} parent=0 // loop_header_branch
    %14 = sbr.rel (%p12) target = $region8
  $region5: #{building_block.1} parent=0 // loop_body
    %s16 = ssub.s32 %s11, 1
    %s17 = ssub.s32 %s11, 2
    %s18 = sadd.s32 %s11, 1
    %s19 = ssub.s32 %s11, %s18
    %p20 = scmp.eq.s32.totalorder %s19, 0
    %s22 = sadd.s32 %s21, 1
    %s23 = scalar_select %p20, %s21, %s22
    %p26 = pneg %p20
    %p27 = scmp.eq.s32.totalorder %s11, 1
    %p28 = por %p26, %p27
    %p29 = scmp.ne.s32.totalorder %s21, %s24
    %p30 = scmp.eq.s32.totalorder %s11, 0
    %p31 = por %p29, %p30
    %p32 = scmp.ne.s32.totalorder %s21, %s24
    %p33 = scmp.eq.s32.totalorder %s16, 1
    %p34 = por %p32, %p33
    %p35 = scmp.ne.s32.totalorder %s24, %s25
    %p36 = scmp.eq.s32.totalorder %s16, 0
    %p37 = por %p35, %p36
    %p38 = scmp.ne.s32.totalorder %s24, %s25
    %p39 = scmp.eq.s32.totalorder %s17, 1
    %p40 = por %p38, %p39
    %p42 = scmp.ne.s32.totalorder %s25, %s41
    %p43 = scmp.eq.s32.totalorder %s17, 0
    %p44 = por %p42, %p43
    %s46 = sadd.s32 %s45, 1
    %p49 = scmp.eq.s32.totalorder %s11, 1
    %p50 = scmp.ne.s32.totalorder %s45, %s47
    %p51 = scmp.eq.s32.totalorder %s11, 0
    %p52 = por %p50, %p51
    %p53 = scmp.ne.s32.totalorder %s45, %s47
    %p54 = scmp.eq.s32.totalorder %s16, 1
    %p55 = por %p53, %p54
    %p56 = scmp.ne.s32.totalorder %s47, %s48
    %p57 = scmp.eq.s32.totalorder %s16, 0
    %p58 = por %p56, %p57
    %p59 = scmp.ne.s32.totalorder %s47, %s48
    %p60 = scmp.eq.s32.totalorder %s17, 1
    %p61 = por %p59, %p60
    %p63 = scmp.ne.s32.totalorder %s48, %s62
    %p64 = scmp.eq.s32.totalorder %s17, 0
    %p65 = por %p63, %p64
    %s67 = sadd.s32 %s66, 1
    %p70 = scmp.eq.s32.totalorder %s11, 1
    %p71 = scmp.ne.s32.totalorder %s66, %s68
    %p72 = scmp.eq.s32.totalorder %s11, 0
    %p73 = por %p71, %p72
    %p74 = scmp.ne.s32.totalorder %s66, %s68
    %p75 = scmp.eq.s32.totalorder %s16, 1
    %p76 = por %p74, %p75
    %p77 = scmp.ne.s32.totalorder %s68, %s69
    %p78 = scmp.eq.s32.totalorder %s16, 0
    %p79 = por %p77, %p78
    %p80 = scmp.ne.s32.totalorder %s68, %s69
    %p81 = scmp.eq.s32.totalorder %s17, 1
    %p82 = por %p80, %p81
    %p84 = scmp.ne.s32.totalorder %s69, %s83
    %p85 = scmp.eq.s32.totalorder %s17, 0
    %p86 = por %p84, %p85
    %s88 = sadd.s32 %s87, 1
    %p91 = scmp.eq.s32.totalorder %s11, 1
    %p92 = scmp.ne.s32.totalorder %s87, %s89
    %p93 = scmp.eq.s32.totalorder %s11, 0
    %p94 = por %p92, %p93
    %p95 = scmp.ne.s32.totalorder %s87, %s89
    %p96 = scmp.eq.s32.totalorder %s16, 1
    %p97 = por %p95, %p96
    %p98 = scmp.ne.s32.totalorder %s89, %s90
    %p99 = scmp.eq.s32.totalorder %s16, 0
    %p100 = por %p98, %p99
    %p101 = scmp.ne.s32.totalorder %s89, %s90
    %p102 = scmp.eq.s32.totalorder %s17, 1
    %p103 = por %p101, %p102
    %p105 = scmp.ne.s32.totalorder %s90, %s104
    %p106 = scmp.eq.s32.totalorder %s17, 0
    %p107 = por %p105, %p106
    %s109 = sadd.s32 %s108, 1
    %p112 = scmp.eq.s32.totalorder %s11, 1
    %p113 = scmp.ne.s32.totalorder %s108, %s110
    %p114 = scmp.eq.s32.totalorder %s11, 0
    %p115 = por %p113, %p114
    %p116 = scmp.ne.s32.totalorder %s108, %s110
    %p117 = scmp.eq.s32.totalorder %s16, 1
    %p118 = por %p116, %p117
    %p119 = scmp.ne.s32.totalorder %s110, %s111
    %p120 = scmp.eq.s32.totalorder %s16, 0
    %p121 = por %p119, %p120
    %p122 = scmp.ne.s32.totalorder %s110, %s111
    %p123 = scmp.eq.s32.totalorder %s17, 1
    %p124 = por %p122, %p123
    %p126 = scmp.ne.s32.totalorder %s111, %s125
    %p127 = scmp.eq.s32.totalorder %s17, 0
    %p128 = por %p126, %p127
    %s129 = ssub.s32 %s11, %s18
    %p130 = scmp.eq.s32.totalorder %s129, 0
    %s132 = sadd.s32 %s131, 1
    %s133 = scalar_select %p130, %s131, %s132
    %p136 = pneg %p130
    %p137 = scmp.eq.s32.totalorder %s11, 1
    %p138 = por %p136, %p137
    %p139 = scmp.ne.s32.totalorder %s131, %s134
    %p140 = scmp.eq.s32.totalorder %s11, 0
    %p141 = por %p139, %p140
    %p142 = scmp.ne.s32.totalorder %s131, %s134
    %p143 = scmp.eq.s32.totalorder %s16, 1
    %p144 = por %p142, %p143
    %p145 = scmp.ne.s32.totalorder %s134, %s135
    %p146 = scmp.eq.s32.totalorder %s16, 0
    %p147 = por %p145, %p146
    %p148 = scmp.ne.s32.totalorder %s134, %s135
    %p149 = scmp.eq.s32.totalorder %s17, 1
    %p150 = por %p148, %p149
    %p152 = scmp.ne.s32.totalorder %s135, %s151
    %p153 = scmp.eq.s32.totalorder %s17, 0
    %p154 = por %p152, %p153
    %p155 = scmp.le.s32.totalorder 1, %s11
    %p156 = scmp.lt.s32.totalorder %s11, 3
    %p157 = pnand %p155, %p156
    %p158 = pneg %p157
    // Predicated region
    $region9: #{building_block.1} parent=5 // pred_check
      _
    $region10: #{building_block.1} parent=5 // pred_check_branch
      %160 = sbr.rel (%p157) target = $region12
    $region11: #{building_block.1} parent=5 // pred_region
      %s161 = ssub.s32 %s11, 1
      // Predicated region
      $region13: #{building_block.1} parent=11 // pred_check
        %p162 = pneg %p58
      $region14: #{building_block.1} parent=11 // pred_check_branch
        %164 = sbr.rel (%p162) target = $region16
      $region15: #{building_block.1} parent=11 // pred_region
        _
      $region16: #{building_block.1} parent=11 // pred_fallthru
        _
      // Predicated region
      $region17: #{building_block.1} parent=11 // pred_check
        %p165 = pneg %p79
      $region18: #{building_block.1} parent=11 // pred_check_branch
        %167 = sbr.rel (%p165) target = $region20
      $region19: #{building_block.1} parent=11 // pred_region
        _
      $region20: #{building_block.1} parent=11 // pred_fallthru
        _
      // Predicated region
      $region21: #{building_block.1} parent=11 // pred_check
        %p168 = pneg %p100
      $region22: #{building_block.1} parent=11 // pred_check_branch
        %170 = sbr.rel (%p168) target = $region24
      $region23: #{building_block.1} parent=11 // pred_region
        _
      $region24: #{building_block.1} parent=11 // pred_fallthru
        _
      // Predicated region
      $region25: #{building_block.1} parent=11 // pred_check
        %p171 = pneg %p121
      $region26: #{building_block.1} parent=11 // pred_check_branch
        %173 = sbr.rel (%p171) target = $region28
      $region27: #{building_block.1} parent=11 // pred_region
        _
      $region28: #{building_block.1} parent=11 // pred_fallthru
        _
    $region12: #{building_block.1} parent=5 // pred_fallthru
      _
    %p174 = scmp.lt.s32.totalorder %s11, 2
    // Predicated region
    $region29: #{building_block.1} parent=5 // pred_check
      %p175 = pneg %p174
    $region30: #{building_block.1} parent=5 // pred_check_branch
      %177 = sbr.rel (%p175) target = $region32
    $region31: #{building_block.1} parent=5 // pred_region
      // Predicated region
      $region33: #{building_block.1} parent=31 // pred_check
        %p178 = pneg %p31
      $region34: #{building_block.1} parent=31 // pred_check_branch
        %180 = sbr.rel (%p178) target = $region36
      $region35: #{building_block.1} parent=31 // pred_region
        %p181 = scmp.lt.s32.totalorder %s11, 1
        %s182 = scalar_select %p181, %s11, 1
        %s183 = smul.addr %s182, 15
        %s184 = smul.addr %s183, 4
        %s185 = scalar_lea.vmem %s0, %s184
      $region36: #{building_block.1} parent=31 // pred_fallthru
        _
    $region32: #{building_block.1} parent=5 // pred_fallthru
      _
    %p186 = scmp.le.s32.totalorder 1, %s11
    %p187 = scmp.lt.s32.totalorder %s11, 3
    %p188 = pnand %p186, %p187
    %p189 = pneg %p188
    // Predicated region
    $region37: #{building_block.1} parent=5 // pred_check
      _
    $region38: #{building_block.1} parent=5 // pred_check_branch
      %191 = sbr.rel (%p188) target = $region40
    $region39: #{building_block.1} parent=5 // pred_region
      %s192 = ssub.s32 %s11, 1
      %p193 = scmp.lt.s32.totalorder %s16, 1
      %s194 = scalar_select %p193, %s16, 1
      %s195 = smul.addr %s194, 15
      %s196 = smul.addr %s195, 4
      %s197 = scalar_lea.vmem %s0, %s196
      %p198 = pneg %p37
      %p199 = pneg %p34
      %p200 = pneg %p58
      %p201 = pneg %p55
      %p202 = pneg %p79
      %p203 = pneg %p76
      %p204 = pneg %p100
      %p205 = pneg %p97
      %p206 = pneg %p121
      %p207 = pneg %p118
      %p208 = pneg %p147
      %p209 = pneg %p144
      %p210 = scmp.lt.s32.totalorder %s16, 1
      %s211 = scalar_select %p210, %s16, 1
      %s212 = smul.addr %s211, 8
      %s213 = smul.addr %s212, 8
      %s214 = scalar_lea.vmem %s5, %s213
      %p215 = scmp.lt.s32.totalorder %s16, 1
      %s216 = scalar_select %p215, %s16, 1
      %s217 = smul.addr %s216, 15
      %s218 = smul.addr %s217, 4
      %s219 = scalar_lea.vmem %s0, %s218
      %p220 = scmp.lt.s32.totalorder %s16, 1
      %s221 = scalar_select %p220, %s16, 1
      %s222 = smul.addr %s221, 8
      %s223 = smul.addr %s222, 8
      %s224 = scalar_lea.vmem %s5, %s223
      %v226 = vld [vmem:[%s219] sm:$0xff]
      %v227 = vld [vmem:[%s219 + $0x8] sm:$0xff]
      %v228 = vld [vmem:[%s219 + $0x10] sm:$0xf]
      %v229 = vld [vmem:[%s219 + $0x14] sm:$0xff]
      %v230 = vld [vmem:[%s219 + $0x1c] sm:$0xff]
      %v231 = vld [vmem:[%s219 + $0x24] sm:$0xf]
      %v232 = vld [vmem:[%s219 + $0x28] sm:$0x11]
      %v233 = vld [vmem:[%s219 + $0x30] sm:$0x11]
      %v234 = vld [vmem:[%s219 + $0x38] sm:$0x1]
      %v235 = vld [vmem:[%s1] sm:$0xff]
      %v236 = vld [vmem:[%s1 + $0x8] sm:$0xff]
      %v237 = vld [vmem:[%s1 + $0x10] sm:$0xff]
      %v238 = vld [vmem:[%s1 + $0x18] sm:$0xff]
      %v239 = vld [vmem:[%s1 + $0x20] sm:$0xff]
      %v240 = vld [vmem:[%s1 + $0x28] sm:$0xff]
      %v241 = vld [vmem:[%s1 + $0x30] sm:$0xff]
      %v242 = vld [vmem:[%s1 + $0x38] sm:$0xff]
      %v243 = vld [vmem:[%s1 + $0x40] sm:$0xff]
      %v244 = vld [vmem:[%s1 + $0x48] sm:$0xff]
      %v245 = vld [vmem:[%s1 + $0x50] sm:$0xff]
      %v246 = vld [vmem:[%s1 + $0x58] sm:$0xff]
      %v247 = vld [vmem:[%s1 + $0x60] sm:$0xff]
      %v248 = vld [vmem:[%s1 + $0x68] sm:$0xff]
      %v249 = vld [vmem:[%s1 + $0x70] sm:$0xff]
      %v250 = vld [vmem:[%s1 + $0x78] sm:$0xff]
      %v251 = vld [vmem:[%s1 + $0x80] sm:$0xff]
      %v252 = vld [vmem:[%s1 + $0x88] sm:$0xff]
      %v253 = vld [vmem:[%s1 + $0x90] sm:$0xff]
      %v254 = vld [vmem:[%s1 + $0x98] sm:$0xff]
      %v255 = vld [vmem:[%s1 + $0xa0] sm:$0xff]
      %v256 = vld [vmem:[%s1 + $0xa8] sm:$0xff]
      %v257 = vld [vmem:[%s1 + $0xb0] sm:$0xff]
      %v258 = vld [vmem:[%s1 + $0xb8] sm:$0xff]
      %v259 = vld [vmem:[%s1 + $0xc0] sm:$0xff]
      %v260 = vld [vmem:[%s1 + $0xc8] sm:$0xff]
      %v261 = vld [vmem:[%s1 + $0xd0] sm:$0xff]
      %v262 = vld [vmem:[%s1 + $0xd8] sm:$0xff]
      %v263 = vld [vmem:[%s1 + $0xe0] sm:$0xff]
      %v264 = vld [vmem:[%s1 + $0xe8] sm:$0xff]
      %v265 = vld [vmem:[%s1 + $0xf0] sm:$0xff]
      %v266 = vld [vmem:[%s1 + $0xf8] sm:$0xff]
      %v267 = vld [vmem:[%s1 + $0x100] sm:$0xff]
      %v268 = vld [vmem:[%s1 + $0x108] sm:$0xff]
      %v269 = vld [vmem:[%s1 + $0x110] sm:$0xff]
      %v270 = vld [vmem:[%s1 + $0x118] sm:$0xff]
      %v271 = vld [vmem:[%s1 + $0x120] sm:$0xff]
      %v272 = vld [vmem:[%s1 + $0x128] sm:$0xff]
      %v273 = vld [vmem:[%s1 + $0x130] sm:$0xff]
      %v274 = vld [vmem:[%s1 + $0x138] sm:$0xff]
      %v275 = vld [vmem:[%s1 + $0x140] sm:$0xff]
      %v276 = vld [vmem:[%s1 + $0x148] sm:$0xff]
      %v277 = vld [vmem:[%s1 + $0x150] sm:$0xff]
      %v278 = vld [vmem:[%s1 + $0x158] sm:$0xff]
      %v279 = vld [vmem:[%s1 + $0x160] sm:$0xff]
      %v280 = vld [vmem:[%s1 + $0x168] sm:$0xff]
      %v281 = vld [vmem:[%s1 + $0x170] sm:$0xff]
      %v282 = vld [vmem:[%s1 + $0x178] sm:$0xff]
      %v283 = vld [vmem:[%s1 + $0x180] sm:$0xff]
      %v284 = vld [vmem:[%s1 + $0x188] sm:$0xff]
      %v285 = vld [vmem:[%s1 + $0x190] sm:$0xff]
      %v286 = vld [vmem:[%s1 + $0x198] sm:$0xff]
      %v287 = vld [vmem:[%s1 + $0x1a0] sm:$0xff]
      %v288 = vld [vmem:[%s1 + $0x1a8] sm:$0xff]
      %v289 = vld [vmem:[%s1 + $0x1b0] sm:$0xff]
      %v290 = vld [vmem:[%s1 + $0x1b8] sm:$0xff]
      %v291 = vld [vmem:[%s1 + $0x1c0] sm:$0xff]
      %v292 = vld [vmem:[%s1 + $0x1c8] sm:$0xff]
      %v293 = vld [vmem:[%s1 + $0x1d0] sm:$0xff]
      %v294 = vld [vmem:[%s1 + $0x1d8] sm:$0xff]
      %v295 = vld [vmem:[%s1 + $0x1e0] sm:$0xff]
      %v296 = vld [vmem:[%s1 + $0x1e8] sm:$0xff]
      %v297 = vld [vmem:[%s1 + $0x1f0] sm:$0xff]
      %v298 = vld [vmem:[%s1 + $0x1f8] sm:$0xff]
      %v299 = vld [vmem:[%s1 + $0x200] sm:$0xff]
      %v300 = vld [vmem:[%s1 + $0x208] sm:$0xff]
      %v301 = vld [vmem:[%s1 + $0x210] sm:$0xff]
      %v302 = vld [vmem:[%s1 + $0x218] sm:$0xff]
      %v303 = vld [vmem:[%s1 + $0x220] sm:$0xff]
      %v304 = vld [vmem:[%s1 + $0x228] sm:$0xff]
      %v305 = vld [vmem:[%s1 + $0x230] sm:$0xff]
      %v306 = vld [vmem:[%s1 + $0x238] sm:$0xff]
      %v307 = vld [vmem:[%s1 + $0x240] sm:$0xff]
      %v308 = vld [vmem:[%s1 + $0x248] sm:$0xff]
      %v309 = vld [vmem:[%s1 + $0x250] sm:$0xff]
      %v310 = vld [vmem:[%s1 + $0x258] sm:$0xff]
      %v311 = vld [vmem:[%s1 + $0x260] sm:$0xff]
      %v312 = vld [vmem:[%s1 + $0x268] sm:$0xff]
      %v313 = vld [vmem:[%s1 + $0x270] sm:$0xff]
      %v314 = vld [vmem:[%s1 + $0x278] sm:$0xff]
      %v315 = vld [vmem:[%s1 + $0x280] sm:$0xff]
      %v316 = vld [vmem:[%s1 + $0x288] sm:$0xff]
      %v317 = vld [vmem:[%s1 + $0x290] sm:$0xff]
      %v318 = vld [vmem:[%s1 + $0x298] sm:$0xff]
      %v319 = vld [vmem:[%s1 + $0x2a0] sm:$0xff]
      %v320 = vld [vmem:[%s1 + $0x2a8] sm:$0xff]
      %v321 = vld [vmem:[%s1 + $0x2b0] sm:$0xff]
      %v322 = vld [vmem:[%s1 + $0x2b8] sm:$0xff]
      %v323 = vld [vmem:[%s1 + $0x2c0] sm:$0xff]
      %v324 = vld [vmem:[%s1 + $0x2c8] sm:$0xff]
      %v325 = vld [vmem:[%s1 + $0x2d0] sm:$0xff]
      %v326 = vld [vmem:[%s1 + $0x2d8] sm:$0xff]
      %v327 = vld [vmem:[%s1 + $0x2e0] sm:$0xff]
      %v328 = vld [vmem:[%s1 + $0x2e8] sm:$0xff]
      %v329 = vld [vmem:[%s1 + $0x2f0] sm:$0xff]
      %v330 = vld [vmem:[%s1 + $0x2f8] sm:$0xff]
      %v331 = vld [vmem:[%s1 + $0x300] sm:$0xff]
      %v332 = vld [vmem:[%s1 + $0x308] sm:$0xff]
      %v333 = vld [vmem:[%s1 + $0x310] sm:$0xff]
      %v334 = vld [vmem:[%s1 + $0x318] sm:$0xff]
      %v335 = vld [vmem:[%s1 + $0x320] sm:$0xff]
      %v336 = vld [vmem:[%s1 + $0x328] sm:$0xff]
      %v337 = vld [vmem:[%s1 + $0x330] sm:$0xff]
      %v338 = vld [vmem:[%s1 + $0x338] sm:$0xff]
      %v339 = vld [vmem:[%s1 + $0x340] sm:$0xff]
      %v340 = vld [vmem:[%s1 + $0x348] sm:$0xff]
      %v341 = vld [vmem:[%s1 + $0x350] sm:$0xff]
      %v342 = vld [vmem:[%s1 + $0x358] sm:$0xff]
      %v343 = vld [vmem:[%s1 + $0x360] sm:$0xff]
      %v344 = vld [vmem:[%s1 + $0x368] sm:$0xff]
      %v345 = vld [vmem:[%s1 + $0x370] sm:$0xff]
      %v346 = vld [vmem:[%s1 + $0x378] sm:$0xff]
      %v347 = vld [vmem:[%s1 + $0x380] sm:$0xff]
      %v348 = vld [vmem:[%s1 + $0x388] sm:$0xff]
      %v349 = vld [vmem:[%s1 + $0x390] sm:$0xff]
      %v350 = vld [vmem:[%s1 + $0x398] sm:$0xff]
      %v351 = vld [vmem:[%s1 + $0x3a0] sm:$0xff]
      %v352 = vld [vmem:[%s1 + $0x3a8] sm:$0xff]
      %v353 = vld [vmem:[%s1 + $0x3b0] sm:$0xff]
      %v354 = vld [vmem:[%s1 + $0x3b8] sm:$0xff]
      %v355 = vld [vmem:[%s1 + $0x3c0] sm:$0xff]
      %v356 = vld [vmem:[%s1 + $0x3c8] sm:$0xff]
      %v357 = vld [vmem:[%s1 + $0x3d0] sm:$0xff]
      %v358 = vld [vmem:[%s1 + $0x3d8] sm:$0xff]
      %v359 = vld [vmem:[%s1 + $0x3e0] sm:$0xff]
      %v360 = vld [vmem:[%s1 + $0x3e8] sm:$0xff]
      %v361 = vld [vmem:[%s1 + $0x3f0] sm:$0xff]
      %v362 = vld [vmem:[%s1 + $0x3f8] sm:$0xff]
      %v363 = vld [vmem:[%s1 + $0x400] sm:$0xff]
      %v364 = vld [vmem:[%s1 + $0x408] sm:$0xff]
      %v365 = vld [vmem:[%s1 + $0x410] sm:$0xff]
      %v366 = vld [vmem:[%s1 + $0x418] sm:$0xff]
      %v367 = vld [vmem:[%s1 + $0x420] sm:$0xff]
      %v368 = vld [vmem:[%s1 + $0x428] sm:$0xff]
      %v369 = vld [vmem:[%s1 + $0x430] sm:$0xff]
      %v370 = vld [vmem:[%s1 + $0x438] sm:$0xff]
      %v371 = vld [vmem:[%s1 + $0x440] sm:$0xff]
      %v372 = vld [vmem:[%s1 + $0x448] sm:$0xff]
      %v373 = vld [vmem:[%s1 + $0x450] sm:$0xff]
      %v374 = vld [vmem:[%s1 + $0x458] sm:$0xff]
      %v375 = vld [vmem:[%s1 + $0x460] sm:$0xff]
      %v376 = vld [vmem:[%s1 + $0x468] sm:$0xff]
      %v377 = vld [vmem:[%s1 + $0x470] sm:$0xff]
      %v378 = vld [vmem:[%s1 + $0x478] sm:$0xff]
      %s379 = scalar_lea.vmem %s1, 1152
      %v380 = vld [vmem:[%s379] sm:$0xff]
      %v381 = vld [vmem:[%s379 + $0x8] sm:$0xff]
      %v382 = vld [vmem:[%s379 + $0x10] sm:$0xff]
      %v383 = vld [vmem:[%s379 + $0x18] sm:$0xff]
      %v384 = vld [vmem:[%s379 + $0x20] sm:$0xff]
      %v385 = vld [vmem:[%s379 + $0x28] sm:$0xff]
      %v386 = vld [vmem:[%s379 + $0x30] sm:$0xff]
      %v387 = vld [vmem:[%s379 + $0x38] sm:$0xff]
      %v388 = vld [vmem:[%s379 + $0x40] sm:$0xff]
      %v389 = vld [vmem:[%s379 + $0x48] sm:$0xff]
      %v390 = vld [vmem:[%s379 + $0x50] sm:$0xff]
      %v391 = vld [vmem:[%s379 + $0x58] sm:$0xff]
      %v392 = vld [vmem:[%s379 + $0x60] sm:$0xff]
      %v393 = vld [vmem:[%s379 + $0x68] sm:$0xff]
      %v394 = vld [vmem:[%s379 + $0x70] sm:$0xff]
      %v395 = vld [vmem:[%s379 + $0x78] sm:$0xff]
      %v396 = vld [vmem:[%s379 + $0x80] sm:$0xff]
      %v397 = vld [vmem:[%s379 + $0x88] sm:$0xff]
      %v398 = vld [vmem:[%s379 + $0x90] sm:$0xff]
      %v399 = vld [vmem:[%s379 + $0x98] sm:$0xff]
      %v400 = vld [vmem:[%s379 + $0xa0] sm:$0xff]
      %v401 = vld [vmem:[%s379 + $0xa8] sm:$0xff]
      %v402 = vld [vmem:[%s379 + $0xb0] sm:$0xff]
      %v403 = vld [vmem:[%s379 + $0xb8] sm:$0xff]
      %v404 = vld [vmem:[%s379 + $0xc0] sm:$0xff]
      %v405 = vld [vmem:[%s379 + $0xc8] sm:$0xff]
      %v406 = vld [vmem:[%s379 + $0xd0] sm:$0xff]
      %v407 = vld [vmem:[%s379 + $0xd8] sm:$0xff]
      %v408 = vld [vmem:[%s379 + $0xe0] sm:$0xff]
      %v409 = vld [vmem:[%s379 + $0xe8] sm:$0xff]
      %v410 = vld [vmem:[%s379 + $0xf0] sm:$0xff]
      %v411 = vld [vmem:[%s379 + $0xf8] sm:$0xff]
      %v412 = vld [vmem:[%s379 + $0x100] sm:$0xff]
      %v413 = vld [vmem:[%s379 + $0x108] sm:$0xff]
      %v414 = vld [vmem:[%s379 + $0x110] sm:$0xff]
      %v415 = vld [vmem:[%s379 + $0x118] sm:$0xff]
      %v416 = vld [vmem:[%s379 + $0x120] sm:$0xff]
      %v417 = vld [vmem:[%s379 + $0x128] sm:$0xff]
      %v418 = vld [vmem:[%s379 + $0x130] sm:$0xff]
      %v419 = vld [vmem:[%s379 + $0x138] sm:$0xff]
      %v420 = vld [vmem:[%s379 + $0x140] sm:$0xff]
      %v421 = vld [vmem:[%s379 + $0x148] sm:$0xff]
      %v422 = vld [vmem:[%s379 + $0x150] sm:$0xff]
      %v423 = vld [vmem:[%s379 + $0x158] sm:$0xff]
      %v424 = vld [vmem:[%s379 + $0x160] sm:$0xff]
      %v425 = vld [vmem:[%s379 + $0x168] sm:$0xff]
      %v426 = vld [vmem:[%s379 + $0x170] sm:$0xff]
      %v427 = vld [vmem:[%s379 + $0x178] sm:$0xff]
      %v428 = vld [vmem:[%s379 + $0x180] sm:$0xff]
      %v429 = vld [vmem:[%s379 + $0x188] sm:$0xff]
      %v430 = vld [vmem:[%s379 + $0x190] sm:$0xff]
      %v431 = vld [vmem:[%s379 + $0x198] sm:$0xff]
      %v432 = vld [vmem:[%s379 + $0x1a0] sm:$0xff]
      %v433 = vld [vmem:[%s379 + $0x1a8] sm:$0xff]
      %v434 = vld [vmem:[%s379 + $0x1b0] sm:$0xff]
      %v435 = vld [vmem:[%s379 + $0x1b8] sm:$0xff]
      %v436 = vld [vmem:[%s379 + $0x1c0] sm:$0xff]
      %v437 = vld [vmem:[%s379 + $0x1c8] sm:$0xff]
      %v438 = vld [vmem:[%s379 + $0x1d0] sm:$0xff]
      %v439 = vld [vmem:[%s379 + $0x1d8] sm:$0xff]
      %v440 = vld [vmem:[%s379 + $0x1e0] sm:$0xff]
      %v441 = vld [vmem:[%s379 + $0x1e8] sm:$0xff]
      %v442 = vld [vmem:[%s379 + $0x1f0] sm:$0xff]
      %v443 = vld [vmem:[%s379 + $0x1f8] sm:$0xff]
      %v444 = vld [vmem:[%s379 + $0x200] sm:$0xff]
      %v445 = vld [vmem:[%s379 + $0x208] sm:$0xff]
      %v446 = vld [vmem:[%s379 + $0x210] sm:$0xff]
      %v447 = vld [vmem:[%s379 + $0x218] sm:$0xff]
      %v448 = vld [vmem:[%s379 + $0x220] sm:$0xff]
      %v449 = vld [vmem:[%s379 + $0x228] sm:$0xff]
      %v450 = vld [vmem:[%s379 + $0x230] sm:$0xff]
      %v451 = vld [vmem:[%s379 + $0x238] sm:$0xff]
      %v452 = vld [vmem:[%s379 + $0x240] sm:$0xff]
      %v453 = vld [vmem:[%s379 + $0x248] sm:$0xff]
      %v454 = vld [vmem:[%s379 + $0x250] sm:$0xff]
      %v455 = vld [vmem:[%s379 + $0x258] sm:$0xff]
      %v456 = vld [vmem:[%s379 + $0x260] sm:$0xff]
      %v457 = vld [vmem:[%s379 + $0x268] sm:$0xff]
      %v458 = vld [vmem:[%s379 + $0x270] sm:$0xff]
      %v459 = vld [vmem:[%s379 + $0x278] sm:$0xff]
      %v460 = vld [vmem:[%s379 + $0x280] sm:$0xff]
      %v461 = vld [vmem:[%s379 + $0x288] sm:$0xff]
      %v462 = vld [vmem:[%s379 + $0x290] sm:$0xff]
      %v463 = vld [vmem:[%s379 + $0x298] sm:$0xff]
      %v464 = vld [vmem:[%s379 + $0x2a0] sm:$0xff]
      %v465 = vld [vmem:[%s379 + $0x2a8] sm:$0xff]
      %v466 = vld [vmem:[%s379 + $0x2b0] sm:$0xff]
      %v467 = vld [vmem:[%s379 + $0x2b8] sm:$0xff]
      %v468 = vld [vmem:[%s379 + $0x2c0] sm:$0xff]
      %v469 = vld [vmem:[%s379 + $0x2c8] sm:$0xff]
      %v470 = vld [vmem:[%s379 + $0x2d0] sm:$0xff]
      %v471 = vld [vmem:[%s379 + $0x2d8] sm:$0xff]
      %v472 = vld [vmem:[%s379 + $0x2e0] sm:$0xff]
      %v473 = vld [vmem:[%s379 + $0x2e8] sm:$0xff]
      %v474 = vld [vmem:[%s379 + $0x2f0] sm:$0xff]
      %v475 = vld [vmem:[%s379 + $0x2f8] sm:$0xff]
      %v476 = vld [vmem:[%s379 + $0x300] sm:$0xff]
      %v477 = vld [vmem:[%s379 + $0x308] sm:$0xff]
      %v478 = vld [vmem:[%s379 + $0x310] sm:$0xff]
      %v479 = vld [vmem:[%s379 + $0x318] sm:$0xff]
      %v480 = vld [vmem:[%s379 + $0x320] sm:$0xff]
      %v481 = vld [vmem:[%s379 + $0x328] sm:$0xff]
      %v482 = vld [vmem:[%s379 + $0x330] sm:$0xff]
      %v483 = vld [vmem:[%s379 + $0x338] sm:$0xff]
      %v484 = vld [vmem:[%s379 + $0x340] sm:$0xff]
      %v485 = vld [vmem:[%s379 + $0x348] sm:$0xff]
      %v486 = vld [vmem:[%s379 + $0x350] sm:$0xff]
      %v487 = vld [vmem:[%s379 + $0x358] sm:$0xff]
      %v488 = vld [vmem:[%s379 + $0x360] sm:$0xff]
      %v489 = vld [vmem:[%s379 + $0x368] sm:$0xff]
      %v490 = vld [vmem:[%s379 + $0x370] sm:$0xff]
      %v491 = vld [vmem:[%s379 + $0x378] sm:$0xff]
      %v492 = vld [vmem:[%s379 + $0x380] sm:$0xff]
      %v493 = vld [vmem:[%s379 + $0x388] sm:$0xff]
      %v494 = vld [vmem:[%s379 + $0x390] sm:$0xff]
      %v495 = vld [vmem:[%s379 + $0x398] sm:$0xff]
      %v496 = vld [vmem:[%s379 + $0x3a0] sm:$0xff]
      %v497 = vld [vmem:[%s379 + $0x3a8] sm:$0xff]
      %v498 = vld [vmem:[%s379 + $0x3b0] sm:$0xff]
      %v499 = vld [vmem:[%s379 + $0x3b8] sm:$0xff]
      %v500 = vld [vmem:[%s379 + $0x3c0] sm:$0xff]
      %v501 = vld [vmem:[%s379 + $0x3c8] sm:$0xff]
      %v502 = vld [vmem:[%s379 + $0x3d0] sm:$0xff]
      %v503 = vld [vmem:[%s379 + $0x3d8] sm:$0xff]
      %v504 = vld [vmem:[%s379 + $0x3e0] sm:$0xff]
      %v505 = vld [vmem:[%s379 + $0x3e8] sm:$0xff]
      %v506 = vld [vmem:[%s379 + $0x3f0] sm:$0xff]
      %v507 = vld [vmem:[%s379 + $0x3f8] sm:$0xff]
      %v508 = vld [vmem:[%s379 + $0x400] sm:$0xff]
      %v509 = vld [vmem:[%s379 + $0x408] sm:$0xff]
      %v510 = vld [vmem:[%s379 + $0x410] sm:$0xff]
      %v511 = vld [vmem:[%s379 + $0x418] sm:$0xff]
      %v512 = vld [vmem:[%s379 + $0x420] sm:$0xff]
      %v513 = vld [vmem:[%s379 + $0x428] sm:$0xff]
      %v514 = vld [vmem:[%s379 + $0x430] sm:$0xff]
      %v515 = vld [vmem:[%s379 + $0x438] sm:$0xff]
      %v516 = vld [vmem:[%s379 + $0x440] sm:$0xff]
      %v517 = vld [vmem:[%s379 + $0x448] sm:$0xff]
      %v518 = vld [vmem:[%s379 + $0x450] sm:$0xff]
      %v519 = vld [vmem:[%s379 + $0x458] sm:$0xff]
      %v520 = vld [vmem:[%s379 + $0x460] sm:$0xff]
      %v521 = vld [vmem:[%s379 + $0x468] sm:$0xff]
      %v522 = vld [vmem:[%s379 + $0x470] sm:$0xff]
      %v523 = vld [vmem:[%s379 + $0x478] sm:$0xff]
      %v533 = vunpack.c.l.b16 %v226
      %v534 = vunpack.c.h.b16 %v226
      %v535 = vunpack.c.l.b16 %v227
      %v536 = vunpack.c.h.b16 %v227
      %v537 = vunpack.c.l.b16 %v228
      %v538 = vunpack.c.l.b16 %v229
      %v539 = vunpack.c.h.b16 %v229
      %v540 = vunpack.c.l.b16 %v230
      %v541 = vunpack.c.h.b16 %v230
      %v542 = vunpack.c.l.b16 %v231
      %v543 = vunpack.c.l.b16 %v232
      %v544 = vunpack.c.h.b16 %v232
      %v545 = vunpack.c.l.b16 %v233
      %v546 = vunpack.c.h.b16 %v233
      %v547 = vunpack.c.l.b16 %v234
      %v548 = vpack.c.b16 %v538, %v533
      %v549 = vpack.c.b16 %v539, %v534
      %v550 = vpack.c.b16 %v540, %v535
      %v551 = vpack.c.b16 %v541, %v536
      %v552 = vpack.c.b16 %v542, %v537
      %v553 = vpack.c.b16 %v543, %v543
      %v554 = vpack.c.b16 %v544, %v544
      %v555 = vpack.c.b16 %v545, %v545
      %v556 = vpack.c.b16 %v546, %v546
      %v557 = vpack.c.b16 %v547, %v547
      %vm558 = vsmask.f32 7424
      %v560 = vshrl.u32 %v548, 16
      %v562 = vshll.u32 %v548, 16
      %v564 = vrot.slane %v562, 1
      %v565 = vor.u32 %v560, %v564
      %v567 = vshll.u32 %v553, 16
      %v569 = vrot.slane %v567, 1
      %v570 = vsel %vm558, %v565, %v569
      %v572 = vshrl.u32 %v549, 16
      %v574 = vshll.u32 %v549, 16
      %v576 = vrot.slane %v574, 1
      %v577 = vor.u32 %v572, %v576
      %v579 = vshll.u32 %v554, 16
      %v581 = vrot.slane %v579, 1
      %v582 = vsel %vm558, %v577, %v581
      %v584 = vshrl.u32 %v550, 16
      %v586 = vshll.u32 %v550, 16
      %v588 = vrot.slane %v586, 1
      %v589 = vor.u32 %v584, %v588
      %v591 = vshll.u32 %v555, 16
      %v593 = vrot.slane %v591, 1
      %v594 = vsel %vm558, %v589, %v593
      %v596 = vshrl.u32 %v551, 16
      %v598 = vshll.u32 %v551, 16
      %v600 = vrot.slane %v598, 1
      %v601 = vor.u32 %v596, %v600
      %v603 = vshll.u32 %v556, 16
      %v605 = vrot.slane %v603, 1
      %v606 = vsel %vm558, %v601, %v605
      %v608 = vshrl.u32 %v552, 16
      %v610 = vshll.u32 %v552, 16
      %v612 = vrot.slane %v610, 1
      %v613 = vor.u32 %v608, %v612
      %v615 = vshll.u32 %v557, 16
      %v617 = vrot.slane %v615, 1
      %v618 = vsel %vm558, %v613, %v617
      %v767 = vunpack.c.l.b16 %v380
      %v768 = vunpack.c.h.b16 %v380
      %v769 = vunpack.c.l.b16 %v381
      %v770 = vunpack.c.h.b16 %v381
      %v771 = vunpack.c.l.b16 %v382
      %v772 = vunpack.c.h.b16 %v382
      %v773 = vunpack.c.l.b16 %v383
      %v774 = vunpack.c.h.b16 %v383
      %v775 = vunpack.c.l.b16 %v384
      %v776 = vunpack.c.h.b16 %v384
      %v777 = vunpack.c.l.b16 %v385
      %v778 = vunpack.c.h.b16 %v385
      %v779 = vunpack.c.l.b16 %v386
      %v780 = vunpack.c.h.b16 %v386
      %v781 = vunpack.c.l.b16 %v387
      %v782 = vunpack.c.h.b16 %v387
      %v783 = vunpack.c.l.b16 %v388
      %v784 = vunpack.c.h.b16 %v388
      %v785 = vunpack.c.l.b16 %v389
      %v786 = vunpack.c.h.b16 %v389
      %v787 = vunpack.c.l.b16 %v390
      %v788 = vunpack.c.h.b16 %v390
      %v789 = vunpack.c.l.b16 %v391
      %v790 = vunpack.c.h.b16 %v391
      %v791 = vunpack.c.l.b16 %v392
      %v792 = vunpack.c.h.b16 %v392
      %v793 = vunpack.c.l.b16 %v393
      %v794 = vunpack.c.h.b16 %v393
      %v795 = vunpack.c.l.b16 %v394
      %v796 = vunpack.c.h.b16 %v394
      %v797 = vunpack.c.l.b16 %v395
      %v798 = vunpack.c.h.b16 %v395
      %v799 = vunpack.c.l.b16 %v396
      %v800 = vunpack.c.h.b16 %v396
      %v801 = vunpack.c.l.b16 %v397
      %v802 = vunpack.c.h.b16 %v397
      %v803 = vunpack.c.l.b16 %v398
      %v804 = vunpack.c.h.b16 %v398
      %v805 = vunpack.c.l.b16 %v399
      %v806 = vunpack.c.h.b16 %v399
      %v807 = vunpack.c.l.b16 %v400
      %v808 = vunpack.c.h.b16 %v400
      %v809 = vunpack.c.l.b16 %v401
      %v810 = vunpack.c.h.b16 %v401
      %v811 = vunpack.c.l.b16 %v402
      %v812 = vunpack.c.h.b16 %v402
      %v813 = vunpack.c.l.b16 %v403
      %v814 = vunpack.c.h.b16 %v403
      %v815 = vunpack.c.l.b16 %v404
      %v816 = vunpack.c.h.b16 %v404
      %v817 = vunpack.c.l.b16 %v405
      %v818 = vunpack.c.h.b16 %v405
      %v819 = vunpack.c.l.b16 %v406
      %v820 = vunpack.c.h.b16 %v406
      %v821 = vunpack.c.l.b16 %v407
      %v822 = vunpack.c.h.b16 %v407
      %v823 = vunpack.c.l.b16 %v408
      %v824 = vunpack.c.h.b16 %v408
      %v825 = vunpack.c.l.b16 %v409
      %v826 = vunpack.c.h.b16 %v409
      %v827 = vunpack.c.l.b16 %v410
      %v828 = vunpack.c.h.b16 %v410
      %v829 = vunpack.c.l.b16 %v411
      %v830 = vunpack.c.h.b16 %v411
      %v831 = vunpack.c.l.b16 %v412
      %v832 = vunpack.c.h.b16 %v412
      %v833 = vunpack.c.l.b16 %v413
      %v834 = vunpack.c.h.b16 %v413
      %v835 = vunpack.c.l.b16 %v414
      %v836 = vunpack.c.h.b16 %v414
      %v837 = vunpack.c.l.b16 %v415
      %v838 = vunpack.c.h.b16 %v415
      %v839 = vunpack.c.l.b16 %v416
      %v840 = vunpack.c.h.b16 %v416
      %v841 = vunpack.c.l.b16 %v417
      %v842 = vunpack.c.h.b16 %v417
      %v843 = vunpack.c.l.b16 %v418
      %v844 = vunpack.c.h.b16 %v418
      %v845 = vunpack.c.l.b16 %v419
      %v846 = vunpack.c.h.b16 %v419
      %v847 = vunpack.c.l.b16 %v420
      %v848 = vunpack.c.h.b16 %v420
      %v849 = vunpack.c.l.b16 %v421
      %v850 = vunpack.c.h.b16 %v421
      %v851 = vunpack.c.l.b16 %v422
      %v852 = vunpack.c.h.b16 %v422
      %v853 = vunpack.c.l.b16 %v423
      %v854 = vunpack.c.h.b16 %v423
      %v855 = vunpack.c.l.b16 %v424
      %v856 = vunpack.c.h.b16 %v424
      %v857 = vunpack.c.l.b16 %v425
      %v858 = vunpack.c.h.b16 %v425
      %v859 = vunpack.c.l.b16 %v426
      %v860 = vunpack.c.h.b16 %v426
      %v861 = vunpack.c.l.b16 %v427
      %v862 = vunpack.c.h.b16 %v427
      %v863 = vunpack.c.l.b16 %v428
      %v864 = vunpack.c.h.b16 %v428
      %v865 = vunpack.c.l.b16 %v429
      %v866 = vunpack.c.h.b16 %v429
      %v867 = vunpack.c.l.b16 %v430
      %v868 = vunpack.c.h.b16 %v430
      %v869 = vunpack.c.l.b16 %v431
      %v870 = vunpack.c.h.b16 %v431
      %v871 = vunpack.c.l.b16 %v432
      %v872 = vunpack.c.h.b16 %v432
      %v873 = vunpack.c.l.b16 %v433
      %v874 = vunpack.c.h.b16 %v433
      %v875 = vunpack.c.l.b16 %v434
      %v876 = vunpack.c.h.b16 %v434
      %v877 = vunpack.c.l.b16 %v435
      %v878 = vunpack.c.h.b16 %v435
      %v879 = vunpack.c.l.b16 %v436
      %v880 = vunpack.c.h.b16 %v436
      %v881 = vunpack.c.l.b16 %v437
      %v882 = vunpack.c.h.b16 %v437
      %v883 = vunpack.c.l.b16 %v438
      %v884 = vunpack.c.h.b16 %v438
      %v885 = vunpack.c.l.b16 %v439
      %v886 = vunpack.c.h.b16 %v439
      %v887 = vunpack.c.l.b16 %v440
      %v888 = vunpack.c.h.b16 %v440
      %v889 = vunpack.c.l.b16 %v441
      %v890 = vunpack.c.h.b16 %v441
      %v891 = vunpack.c.l.b16 %v442
      %v892 = vunpack.c.h.b16 %v442
      %v893 = vunpack.c.l.b16 %v443
      %v894 = vunpack.c.h.b16 %v443
      %v895 = vunpack.c.l.b16 %v444
      %v896 = vunpack.c.h.b16 %v444
      %v897 = vunpack.c.l.b16 %v445
      %v898 = vunpack.c.h.b16 %v445
      %v899 = vunpack.c.l.b16 %v446
      %v900 = vunpack.c.h.b16 %v446
      %v901 = vunpack.c.l.b16 %v447
      %v902 = vunpack.c.h.b16 %v447
      %v903 = vunpack.c.l.b16 %v448
      %v904 = vunpack.c.h.b16 %v448
      %v905 = vunpack.c.l.b16 %v449
      %v906 = vunpack.c.h.b16 %v449
      %v907 = vunpack.c.l.b16 %v450
      %v908 = vunpack.c.h.b16 %v450
      %v909 = vunpack.c.l.b16 %v451
      %v910 = vunpack.c.h.b16 %v451
      %v911 = vunpack.c.l.b16 %v452
      %v912 = vunpack.c.h.b16 %v452
      %v913 = vunpack.c.l.b16 %v453
      %v914 = vunpack.c.h.b16 %v453
      %v915 = vunpack.c.l.b16 %v454
      %v916 = vunpack.c.h.b16 %v454
      %v917 = vunpack.c.l.b16 %v455
      %v918 = vunpack.c.h.b16 %v455
      %v919 = vunpack.c.l.b16 %v456
      %v920 = vunpack.c.h.b16 %v456
      %v921 = vunpack.c.l.b16 %v457
      %v922 = vunpack.c.h.b16 %v457
      %v923 = vunpack.c.l.b16 %v458
      %v924 = vunpack.c.h.b16 %v458
      %v925 = vunpack.c.l.b16 %v459
      %v926 = vunpack.c.h.b16 %v459
      %v927 = vunpack.c.l.b16 %v460
      %v928 = vunpack.c.h.b16 %v460
      %v929 = vunpack.c.l.b16 %v461
      %v930 = vunpack.c.h.b16 %v461
      %v931 = vunpack.c.l.b16 %v462
      %v932 = vunpack.c.h.b16 %v462
      %v933 = vunpack.c.l.b16 %v463
      %v934 = vunpack.c.h.b16 %v463
      %v935 = vunpack.c.l.b16 %v464
      %v936 = vunpack.c.h.b16 %v464
      %v937 = vunpack.c.l.b16 %v465
      %v938 = vunpack.c.h.b16 %v465
      %v939 = vunpack.c.l.b16 %v466
      %v940 = vunpack.c.h.b16 %v466
      %v941 = vunpack.c.l.b16 %v467
      %v942 = vunpack.c.h.b16 %v467
      %v943 = vunpack.c.l.b16 %v468
      %v944 = vunpack.c.h.b16 %v468
      %v945 = vunpack.c.l.b16 %v469
      %v946 = vunpack.c.h.b16 %v469
      %v947 = vunpack.c.l.b16 %v470
      %v948 = vunpack.c.h.b16 %v470
      %v949 = vunpack.c.l.b16 %v471
      %v950 = vunpack.c.h.b16 %v471
      %v951 = vunpack.c.l.b16 %v472
      %v952 = vunpack.c.h.b16 %v472
      %v953 = vunpack.c.l.b16 %v473
      %v954 = vunpack.c.h.b16 %v473
      %v955 = vunpack.c.l.b16 %v474
      %v956 = vunpack.c.h.b16 %v474
      %v957 = vunpack.c.l.b16 %v475
      %v958 = vunpack.c.h.b16 %v475
      %v959 = vunpack.c.l.b16 %v476
      %v960 = vunpack.c.h.b16 %v476
      %v961 = vunpack.c.l.b16 %v477
      %v962 = vunpack.c.h.b16 %v477
      %v963 = vunpack.c.l.b16 %v478
      %v964 = vunpack.c.h.b16 %v478
      %v965 = vunpack.c.l.b16 %v479
      %v966 = vunpack.c.h.b16 %v479
      %v967 = vunpack.c.l.b16 %v480
      %v968 = vunpack.c.h.b16 %v480
      %v969 = vunpack.c.l.b16 %v481
      %v970 = vunpack.c.h.b16 %v481
      %v971 = vunpack.c.l.b16 %v482
      %v972 = vunpack.c.h.b16 %v482
      %v973 = vunpack.c.l.b16 %v483
      %v974 = vunpack.c.h.b16 %v483
      %v975 = vunpack.c.l.b16 %v484
      %v976 = vunpack.c.h.b16 %v484
      %v977 = vunpack.c.l.b16 %v485
      %v978 = vunpack.c.h.b16 %v485
      %v979 = vunpack.c.l.b16 %v486
      %v980 = vunpack.c.h.b16 %v486
      %v981 = vunpack.c.l.b16 %v487
      %v982 = vunpack.c.h.b16 %v487
      %v983 = vunpack.c.l.b16 %v488
      %v984 = vunpack.c.h.b16 %v488
      %v985 = vunpack.c.l.b16 %v489
      %v986 = vunpack.c.h.b16 %v489
      %v987 = vunpack.c.l.b16 %v490
      %v988 = vunpack.c.h.b16 %v490
      %v989 = vunpack.c.l.b16 %v491
      %v990 = vunpack.c.h.b16 %v491
      %v991 = vunpack.c.l.b16 %v492
      %v992 = vunpack.c.h.b16 %v492
      %v993 = vunpack.c.l.b16 %v493
      %v994 = vunpack.c.h.b16 %v493
      %v995 = vunpack.c.l.b16 %v494
      %v996 = vunpack.c.h.b16 %v494
      %v997 = vunpack.c.l.b16 %v495
      %v998 = vunpack.c.h.b16 %v495
      %v999 = vunpack.c.l.b16 %v496
      %v1000 = vunpack.c.h.b16 %v496
      %v1001 = vunpack.c.l.b16 %v497
      %v1002 = vunpack.c.h.b16 %v497
      %v1003 = vunpack.c.l.b16 %v498
      %v1004 = vunpack.c.h.b16 %v498
      %v1005 = vunpack.c.l.b16 %v499
      %v1006 = vunpack.c.h.b16 %v499
      %v1007 = vunpack.c.l.b16 %v500
      %v1008 = vunpack.c.h.b16 %v500
      %v1009 = vunpack.c.l.b16 %v501
      %v1010 = vunpack.c.h.b16 %v501
      %v1011 = vunpack.c.l.b16 %v502
      %v1012 = vunpack.c.h.b16 %v502
      %v1013 = vunpack.c.l.b16 %v503
      %v1014 = vunpack.c.h.b16 %v503
      %v1015 = vunpack.c.l.b16 %v504
      %v1016 = vunpack.c.h.b16 %v504
      %v1017 = vunpack.c.l.b16 %v505
      %v1018 = vunpack.c.h.b16 %v505
      %v1019 = vunpack.c.l.b16 %v506
      %v1020 = vunpack.c.h.b16 %v506
      %v1021 = vunpack.c.l.b16 %v507
      %v1022 = vunpack.c.h.b16 %v507
      %v1023 = vunpack.c.l.b16 %v508
      %v1024 = vunpack.c.h.b16 %v508
      %v1025 = vunpack.c.l.b16 %v509
      %v1026 = vunpack.c.h.b16 %v509
      %v1027 = vunpack.c.l.b16 %v510
      %v1028 = vunpack.c.h.b16 %v510
      %v1029 = vunpack.c.l.b16 %v511
      %v1030 = vunpack.c.h.b16 %v511
      %v1031 = vunpack.c.l.b16 %v512
      %v1032 = vunpack.c.h.b16 %v512
      %v1033 = vunpack.c.l.b16 %v513
      %v1034 = vunpack.c.h.b16 %v513
      %v1035 = vunpack.c.l.b16 %v514
      %v1036 = vunpack.c.h.b16 %v514
      %v1037 = vunpack.c.l.b16 %v515
      %v1038 = vunpack.c.h.b16 %v515
      %v1039 = vunpack.c.l.b16 %v516
      %v1040 = vunpack.c.h.b16 %v516
      %v1041 = vunpack.c.l.b16 %v517
      %v1042 = vunpack.c.h.b16 %v517
      %v1043 = vunpack.c.l.b16 %v518
      %v1044 = vunpack.c.h.b16 %v518
      %v1045 = vunpack.c.l.b16 %v519
      %v1046 = vunpack.c.h.b16 %v519
      %v1047 = vunpack.c.l.b16 %v520
      %v1048 = vunpack.c.h.b16 %v520
      %v1049 = vunpack.c.l.b16 %v521
      %v1050 = vunpack.c.h.b16 %v521
      %v1051 = vunpack.c.l.b16 %v522
      %v1052 = vunpack.c.h.b16 %v522
      %v1053 = vunpack.c.l.b16 %v523
      %v1054 = vunpack.c.h.b16 %v523
      %v1055 = vpack.c.b16 %v771, %v767
      %v1056 = vpack.c.b16 %v772, %v768
      %v1057 = vpack.c.b16 %v773, %v769
      %v1058 = vpack.c.b16 %v774, %v770
      %v1059 = vpack.c.b16 %v779, %v775
      %v1060 = vpack.c.b16 %v780, %v776
      %v1061 = vpack.c.b16 %v781, %v777
      %v1062 = vpack.c.b16 %v782, %v778
      %v1063 = vpack.c.b16 %v787, %v783
      %v1064 = vpack.c.b16 %v788, %v784
      %v1065 = vpack.c.b16 %v789, %v785
      %v1066 = vpack.c.b16 %v790, %v786
      %v1067 = vpack.c.b16 %v795, %v791
      %v1068 = vpack.c.b16 %v796, %v792
      %v1069 = vpack.c.b16 %v797, %v793
      %v1070 = vpack.c.b16 %v798, %v794
      %v1071 = vpack.c.b16 %v803, %v799
      %v1072 = vpack.c.b16 %v804, %v800
      %v1073 = vpack.c.b16 %v805, %v801
      %v1074 = vpack.c.b16 %v806, %v802
      %v1075 = vpack.c.b16 %v811, %v807
      %v1076 = vpack.c.b16 %v812, %v808
      %v1077 = vpack.c.b16 %v813, %v809
      %v1078 = vpack.c.b16 %v814, %v810
      %v1079 = vpack.c.b16 %v819, %v815
      %v1080 = vpack.c.b16 %v820, %v816
      %v1081 = vpack.c.b16 %v821, %v817
      %v1082 = vpack.c.b16 %v822, %v818
      %v1083 = vpack.c.b16 %v827, %v823
      %v1084 = vpack.c.b16 %v828, %v824
      %v1085 = vpack.c.b16 %v829, %v825
      %v1086 = vpack.c.b16 %v830, %v826
      %v1087 = vpack.c.b16 %v835, %v831
      %v1088 = vpack.c.b16 %v836, %v832
      %v1089 = vpack.c.b16 %v837, %v833
      %v1090 = vpack.c.b16 %v838, %v834
      %v1091 = vpack.c.b16 %v843, %v839
      %v1092 = vpack.c.b16 %v844, %v840
      %v1093 = vpack.c.b16 %v845, %v841
      %v1094 = vpack.c.b16 %v846, %v842
      %v1095 = vpack.c.b16 %v851, %v847
      %v1096 = vpack.c.b16 %v852, %v848
      %v1097 = vpack.c.b16 %v853, %v849
      %v1098 = vpack.c.b16 %v854, %v850
      %v1099 = vpack.c.b16 %v859, %v855
      %v1100 = vpack.c.b16 %v860, %v856
      %v1101 = vpack.c.b16 %v861, %v857
      %v1102 = vpack.c.b16 %v862, %v858
      %v1103 = vpack.c.b16 %v867, %v863
      %v1104 = vpack.c.b16 %v868, %v864
      %v1105 = vpack.c.b16 %v869, %v865
      %v1106 = vpack.c.b16 %v870, %v866
      %v1107 = vpack.c.b16 %v875, %v871
      %v1108 = vpack.c.b16 %v876, %v872
      %v1109 = vpack.c.b16 %v877, %v873
      %v1110 = vpack.c.b16 %v878, %v874
      %v1111 = vpack.c.b16 %v883, %v879
      %v1112 = vpack.c.b16 %v884, %v880
      %v1113 = vpack.c.b16 %v885, %v881
      %v1114 = vpack.c.b16 %v886, %v882
      %v1115 = vpack.c.b16 %v891, %v887
      %v1116 = vpack.c.b16 %v892, %v888
      %v1117 = vpack.c.b16 %v893, %v889
      %v1118 = vpack.c.b16 %v894, %v890
      %v1119 = vpack.c.b16 %v899, %v895
      %v1120 = vpack.c.b16 %v900, %v896
      %v1121 = vpack.c.b16 %v901, %v897
      %v1122 = vpack.c.b16 %v902, %v898
      %v1123 = vpack.c.b16 %v907, %v903
      %v1124 = vpack.c.b16 %v908, %v904
      %v1125 = vpack.c.b16 %v909, %v905
      %v1126 = vpack.c.b16 %v910, %v906
      %v1127 = vpack.c.b16 %v915, %v911
      %v1128 = vpack.c.b16 %v916, %v912
      %v1129 = vpack.c.b16 %v917, %v913
      %v1130 = vpack.c.b16 %v918, %v914
      %v1131 = vpack.c.b16 %v923, %v919
      %v1132 = vpack.c.b16 %v924, %v920
      %v1133 = vpack.c.b16 %v925, %v921
      %v1134 = vpack.c.b16 %v926, %v922
      %v1135 = vpack.c.b16 %v931, %v927
      %v1136 = vpack.c.b16 %v932, %v928
      %v1137 = vpack.c.b16 %v933, %v929
      %v1138 = vpack.c.b16 %v934, %v930
      %v1139 = vpack.c.b16 %v939, %v935
      %v1140 = vpack.c.b16 %v940, %v936
      %v1141 = vpack.c.b16 %v941, %v937
      %v1142 = vpack.c.b16 %v942, %v938
      %v1143 = vpack.c.b16 %v947, %v943
      %v1144 = vpack.c.b16 %v948, %v944
      %v1145 = vpack.c.b16 %v949, %v945
      %v1146 = vpack.c.b16 %v950, %v946
      %v1147 = vpack.c.b16 %v955, %v951
      %v1148 = vpack.c.b16 %v956, %v952
      %v1149 = vpack.c.b16 %v957, %v953
      %v1150 = vpack.c.b16 %v958, %v954
      %v1151 = vpack.c.b16 %v963, %v959
      %v1152 = vpack.c.b16 %v964, %v960
      %v1153 = vpack.c.b16 %v965, %v961
      %v1154 = vpack.c.b16 %v966, %v962
      %v1155 = vpack.c.b16 %v971, %v967
      %v1156 = vpack.c.b16 %v972, %v968
      %v1157 = vpack.c.b16 %v973, %v969
      %v1158 = vpack.c.b16 %v974, %v970
      %v1159 = vpack.c.b16 %v979, %v975
      %v1160 = vpack.c.b16 %v980, %v976
      %v1161 = vpack.c.b16 %v981, %v977
      %v1162 = vpack.c.b16 %v982, %v978
      %v1163 = vpack.c.b16 %v987, %v983
      %v1164 = vpack.c.b16 %v988, %v984
      %v1165 = vpack.c.b16 %v989, %v985
      %v1166 = vpack.c.b16 %v990, %v986
      %v1167 = vpack.c.b16 %v995, %v991
      %v1168 = vpack.c.b16 %v996, %v992
      %v1169 = vpack.c.b16 %v997, %v993
      %v1170 = vpack.c.b16 %v998, %v994
      %v1171 = vpack.c.b16 %v1003, %v999
      %v1172 = vpack.c.b16 %v1004, %v1000
      %v1173 = vpack.c.b16 %v1005, %v1001
      %v1174 = vpack.c.b16 %v1006, %v1002
      %v1175 = vpack.c.b16 %v1011, %v1007
      %v1176 = vpack.c.b16 %v1012, %v1008
      %v1177 = vpack.c.b16 %v1013, %v1009
      %v1178 = vpack.c.b16 %v1014, %v1010
      %v1179 = vpack.c.b16 %v1019, %v1015
      %v1180 = vpack.c.b16 %v1020, %v1016
      %v1181 = vpack.c.b16 %v1021, %v1017
      %v1182 = vpack.c.b16 %v1022, %v1018
      %v1183 = vpack.c.b16 %v1027, %v1023
      %v1184 = vpack.c.b16 %v1028, %v1024
      %v1185 = vpack.c.b16 %v1029, %v1025
      %v1186 = vpack.c.b16 %v1030, %v1026
      %v1187 = vpack.c.b16 %v1035, %v1031
      %v1188 = vpack.c.b16 %v1036, %v1032
      %v1189 = vpack.c.b16 %v1037, %v1033
      %v1190 = vpack.c.b16 %v1038, %v1034
      %v1191 = vpack.c.b16 %v1043, %v1039
      %v1192 = vpack.c.b16 %v1044, %v1040
      %v1193 = vpack.c.b16 %v1045, %v1041
      %v1194 = vpack.c.b16 %v1046, %v1042
      %v1195 = vpack.c.b16 %v1051, %v1047
      %v1196 = vpack.c.b16 %v1052, %v1048
      %v1197 = vpack.c.b16 %v1053, %v1049
      %v1198 = vpack.c.b16 %v1054, %v1050
      %vm1343 = vcmask 523264
      %v1345 = vsel %vm1343, %v618, 0
      %1347 = vmatpush.bf16.msra.mxu0 %v1083
      %1348 = vmatpush.bf16.msra.mxu0 %v1079
      %1349 = vmatpush.bf16.msra.mxu0 %v1075
      %1350 = vmatpush.bf16.msra.mxu0 %v1071
      %1351 = vmatpush.bf16.msra.mxu0 %v1067
      %1352 = vmatpush.bf16.msra.mxu0 %v1063
      %1353 = vmatpush.bf16.msra.mxu0 %v1059
      %1354 = vmatpush.bf16.msra.mxu0 %v1055
      %1355 = vmatmul.bf16.gmra.mxu0 %v570
      %v1356 = vpop.f32.mrf.mxu0
      %v1357 = vadd.f32 0.0, %v1356
      %v1358 = vpop.f32.mrf.mxu0
      %v1359 = vadd.f32 0.0, %v1358
      %1360 = vdwg.mxu0
      %1361 = vmatpush.bf16.msra.mxu0 %v1115
      %1362 = vmatpush.bf16.msra.mxu0 %v1111
      %1363 = vmatpush.bf16.msra.mxu0 %v1107
      %1364 = vmatpush.bf16.msra.mxu0 %v1103
      %1365 = vmatpush.bf16.msra.mxu0 %v1099
      %1366 = vmatpush.bf16.msra.mxu0 %v1095
      %1367 = vmatpush.bf16.msra.mxu0 %v1091
      %1368 = vmatpush.bf16.msra.mxu0 %v1087
      %1369 = vmatmul.bf16.gmra.mxu0 %v582
      %v1370 = vpop.f32.mrf.mxu0
      %v1371 = vadd.f32 %v1357, %v1370
      %v1372 = vpop.f32.mrf.mxu0
      %v1373 = vadd.f32 %v1359, %v1372
      %1374 = vdwg.mxu0
      %1375 = vmatpush.bf16.msra.mxu0 %v1147
      %1376 = vmatpush.bf16.msra.mxu0 %v1143
      %1377 = vmatpush.bf16.msra.mxu0 %v1139
      %1378 = vmatpush.bf16.msra.mxu0 %v1135
      %1379 = vmatpush.bf16.msra.mxu0 %v1131
      %1380 = vmatpush.bf16.msra.mxu0 %v1127
      %1381 = vmatpush.bf16.msra.mxu0 %v1123
      %1382 = vmatpush.bf16.msra.mxu0 %v1119
      %1383 = vmatmul.bf16.gmra.mxu0 %v594
      %v1384 = vpop.f32.mrf.mxu0
      %v1385 = vadd.f32 %v1371, %v1384
      %v1386 = vpop.f32.mrf.mxu0
      %v1387 = vadd.f32 %v1373, %v1386
      %1388 = vdwg.mxu0
      %1389 = vmatpush.bf16.msra.mxu0 %v1179
      %1390 = vmatpush.bf16.msra.mxu0 %v1175
      %1391 = vmatpush.bf16.msra.mxu0 %v1171
      %1392 = vmatpush.bf16.msra.mxu0 %v1167
      %1393 = vmatpush.bf16.msra.mxu0 %v1163
      %1394 = vmatpush.bf16.msra.mxu0 %v1159
      %1395 = vmatpush.bf16.msra.mxu0 %v1155
      %1396 = vmatpush.bf16.msra.mxu0 %v1151
      %1397 = vmatmul.bf16.gmra.mxu0 %v606
      %v1398 = vpop.f32.mrf.mxu0
      %v1399 = vadd.f32 %v1385, %v1398
      %v1400 = vpop.f32.mrf.mxu0
      %v1401 = vadd.f32 %v1387, %v1400
      %1402 = vdwg.mxu0
      %1403 = vmatpush.bf16.msra.mxu0 0
      %1404 = vmatpush.bf16.msra.mxu0 0
      %1405 = vmatpush.bf16.msra.mxu0 0
      %1406 = vmatpush.bf16.msra.mxu0 0
      %1407 = vmatpush.bf16.msra.mxu0 %v1195
      %1408 = vmatpush.bf16.msra.mxu0 %v1191
      %1409 = vmatpush.bf16.msra.mxu0 %v1187
      %1410 = vmatpush.bf16.msra.mxu0 %v1183
      %1411 = vmatmul.bf16.gmra.mxu0 %v1345
      %v1412 = vpop.f32.mrf.mxu0
      %v1413 = vadd.f32 %v1399, %v1412
      %v1414 = vpop.f32.mrf.mxu0
      %v1415 = vadd.f32 %v1401, %v1414
      %1416 = vdwg.mxu0
      %1417 = vmatpush.bf16.msra.mxu0 %v1084
      %1418 = vmatpush.bf16.msra.mxu0 %v1080
      %1419 = vmatpush.bf16.msra.mxu0 %v1076
      %1420 = vmatpush.bf16.msra.mxu0 %v1072
      %1421 = vmatpush.bf16.msra.mxu0 %v1068
      %1422 = vmatpush.bf16.msra.mxu0 %v1064
      %1423 = vmatpush.bf16.msra.mxu0 %v1060
      %1424 = vmatpush.bf16.msra.mxu0 %v1056
      %1425 = vmatmul.bf16.gmra.mxu0 %v570
      %v1426 = vpop.f32.mrf.mxu0
      %v1427 = vadd.f32 0.0, %v1426
      %v1428 = vpop.f32.mrf.mxu0
      %v1429 = vadd.f32 0.0, %v1428
      %1430 = vdwg.mxu0
      %1431 = vmatpush.bf16.msra.mxu0 %v1116
      %1432 = vmatpush.bf16.msra.mxu0 %v1112
      %1433 = vmatpush.bf16.msra.mxu0 %v1108
      %1434 = vmatpush.bf16.msra.mxu0 %v1104
      %1435 = vmatpush.bf16.msra.mxu0 %v1100
      %1436 = vmatpush.bf16.msra.mxu0 %v1096
      %1437 = vmatpush.bf16.msra.mxu0 %v1092
      %1438 = vmatpush.bf16.msra.mxu0 %v1088
      %1439 = vmatmul.bf16.gmra.mxu0 %v582
      %v1440 = vpop.f32.mrf.mxu0
      %v1441 = vadd.f32 %v1427, %v1440
      %v1442 = vpop.f32.mrf.mxu0
      %v1443 = vadd.f32 %v1429, %v1442
      %1444 = vdwg.mxu0
      %1445 = vmatpush.bf16.msra.mxu0 %v1148
      %1446 = vmatpush.bf16.msra.mxu0 %v1144
      %1447 = vmatpush.bf16.msra.mxu0 %v1140
      %1448 = vmatpush.bf16.msra.mxu0 %v1136
      %1449 = vmatpush.bf16.msra.mxu0 %v1132
      %1450 = vmatpush.bf16.msra.mxu0 %v1128
      %1451 = vmatpush.bf16.msra.mxu0 %v1124
      %1452 = vmatpush.bf16.msra.mxu0 %v1120
      %1453 = vmatmul.bf16.gmra.mxu0 %v594
      %v1454 = vpop.f32.mrf.mxu0
      %v1455 = vadd.f32 %v1441, %v1454
      %v1456 = vpop.f32.mrf.mxu0
      %v1457 = vadd.f32 %v1443, %v1456
      %1458 = vdwg.mxu0
      %1459 = vmatpush.bf16.msra.mxu0 %v1180
      %1460 = vmatpush.bf16.msra.mxu0 %v1176
      %1461 = vmatpush.bf16.msra.mxu0 %v1172
      %1462 = vmatpush.bf16.msra.mxu0 %v1168
      %1463 = vmatpush.bf16.msra.mxu0 %v1164
      %1464 = vmatpush.bf16.msra.mxu0 %v1160
      %1465 = vmatpush.bf16.msra.mxu0 %v1156
      %1466 = vmatpush.bf16.msra.mxu0 %v1152
      %1467 = vmatmul.bf16.gmra.mxu0 %v606
      %v1468 = vpop.f32.mrf.mxu0
      %v1469 = vadd.f32 %v1455, %v1468
      %v1470 = vpop.f32.mrf.mxu0
      %v1471 = vadd.f32 %v1457, %v1470
      %1472 = vdwg.mxu0
      %1473 = vmatpush.bf16.msra.mxu0 0
      %1474 = vmatpush.bf16.msra.mxu0 0
      %1475 = vmatpush.bf16.msra.mxu0 0
      %1476 = vmatpush.bf16.msra.mxu0 0
      %1477 = vmatpush.bf16.msra.mxu0 %v1196
      %1478 = vmatpush.bf16.msra.mxu0 %v1192
      %1479 = vmatpush.bf16.msra.mxu0 %v1188
      %1480 = vmatpush.bf16.msra.mxu0 %v1184
      %1481 = vmatmul.bf16.gmra.mxu0 %v1345
      %v1482 = vpop.f32.mrf.mxu0
      %v1483 = vadd.f32 %v1469, %v1482
      %v1484 = vpop.f32.mrf.mxu0
      %v1485 = vadd.f32 %v1471, %v1484
      %1486 = vdwg.mxu0
      %1487 = vmatpush.bf16.msra.mxu0 %v1085
      %1488 = vmatpush.bf16.msra.mxu0 %v1081
      %1489 = vmatpush.bf16.msra.mxu0 %v1077
      %1490 = vmatpush.bf16.msra.mxu0 %v1073
      %1491 = vmatpush.bf16.msra.mxu0 %v1069
      %1492 = vmatpush.bf16.msra.mxu0 %v1065
      %1493 = vmatpush.bf16.msra.mxu0 %v1061
      %1494 = vmatpush.bf16.msra.mxu0 %v1057
      %1495 = vmatmul.bf16.gmra.mxu0 %v570
      %v1496 = vpop.f32.mrf.mxu0
      %v1497 = vadd.f32 0.0, %v1496
      %v1498 = vpop.f32.mrf.mxu0
      %v1499 = vadd.f32 0.0, %v1498
      %1500 = vdwg.mxu0
      %1501 = vmatpush.bf16.msra.mxu0 %v1117
      %1502 = vmatpush.bf16.msra.mxu0 %v1113
      %1503 = vmatpush.bf16.msra.mxu0 %v1109
      %1504 = vmatpush.bf16.msra.mxu0 %v1105
      %1505 = vmatpush.bf16.msra.mxu0 %v1101
      %1506 = vmatpush.bf16.msra.mxu0 %v1097
      %1507 = vmatpush.bf16.msra.mxu0 %v1093
      %1508 = vmatpush.bf16.msra.mxu0 %v1089
      %1509 = vmatmul.bf16.gmra.mxu0 %v582
      %v1510 = vpop.f32.mrf.mxu0
      %v1511 = vadd.f32 %v1497, %v1510
      %v1512 = vpop.f32.mrf.mxu0
      %v1513 = vadd.f32 %v1499, %v1512
      %1514 = vdwg.mxu0
      %1515 = vmatpush.bf16.msra.mxu0 %v1149
      %1516 = vmatpush.bf16.msra.mxu0 %v1145
      %1517 = vmatpush.bf16.msra.mxu0 %v1141
      %1518 = vmatpush.bf16.msra.mxu0 %v1137
      %1519 = vmatpush.bf16.msra.mxu0 %v1133
      %1520 = vmatpush.bf16.msra.mxu0 %v1129
      %1521 = vmatpush.bf16.msra.mxu0 %v1125
      %1522 = vmatpush.bf16.msra.mxu0 %v1121
      %1523 = vmatmul.bf16.gmra.mxu0 %v594
      %v1524 = vpop.f32.mrf.mxu0
      %v1525 = vadd.f32 %v1511, %v1524
      %v1526 = vpop.f32.mrf.mxu0
      %v1527 = vadd.f32 %v1513, %v1526
      %1528 = vdwg.mxu0
      %1529 = vmatpush.bf16.msra.mxu0 %v1181
      %1530 = vmatpush.bf16.msra.mxu0 %v1177
      %1531 = vmatpush.bf16.msra.mxu0 %v1173
      %1532 = vmatpush.bf16.msra.mxu0 %v1169
      %1533 = vmatpush.bf16.msra.mxu0 %v1165
      %1534 = vmatpush.bf16.msra.mxu0 %v1161
      %1535 = vmatpush.bf16.msra.mxu0 %v1157
      %1536 = vmatpush.bf16.msra.mxu0 %v1153
      %1537 = vmatmul.bf16.gmra.mxu0 %v606
      %v1538 = vpop.f32.mrf.mxu0
      %v1539 = vadd.f32 %v1525, %v1538
      %v1540 = vpop.f32.mrf.mxu0
      %v1541 = vadd.f32 %v1527, %v1540
      %1542 = vdwg.mxu0
      %1543 = vmatpush.bf16.msra.mxu0 0
      %1544 = vmatpush.bf16.msra.mxu0 0
      %1545 = vmatpush.bf16.msra.mxu0 0
      %1546 = vmatpush.bf16.msra.mxu0 0
      %1547 = vmatpush.bf16.msra.mxu0 %v1197
      %1548 = vmatpush.bf16.msra.mxu0 %v1193
      %1549 = vmatpush.bf16.msra.mxu0 %v1189
      %1550 = vmatpush.bf16.msra.mxu0 %v1185
      %1551 = vmatmul.bf16.gmra.mxu0 %v1345
      %v1552 = vpop.f32.mrf.mxu0
      %v1553 = vadd.f32 %v1539, %v1552
      %v1554 = vpop.f32.mrf.mxu0
      %v1555 = vadd.f32 %v1541, %v1554
      %1556 = vdwg.mxu0
      %1557 = vmatpush.bf16.msra.mxu0 %v1086
      %1558 = vmatpush.bf16.msra.mxu0 %v1082
      %1559 = vmatpush.bf16.msra.mxu0 %v1078
      %1560 = vmatpush.bf16.msra.mxu0 %v1074
      %1561 = vmatpush.bf16.msra.mxu0 %v1070
      %1562 = vmatpush.bf16.msra.mxu0 %v1066
      %1563 = vmatpush.bf16.msra.mxu0 %v1062
      %1564 = vmatpush.bf16.msra.mxu0 %v1058
      %1565 = vmatmul.bf16.gmra.mxu0 %v570
      %v1566 = vpop.f32.mrf.mxu0
      %v1567 = vadd.f32 0.0, %v1566
      %v1568 = vpop.f32.mrf.mxu0
      %v1569 = vadd.f32 0.0, %v1568
      %1570 = vdwg.mxu0
      %1571 = vmatpush.bf16.msra.mxu0 %v1118
      %1572 = vmatpush.bf16.msra.mxu0 %v1114
      %1573 = vmatpush.bf16.msra.mxu0 %v1110
      %1574 = vmatpush.bf16.msra.mxu0 %v1106
      %1575 = vmatpush.bf16.msra.mxu0 %v1102
      %1576 = vmatpush.bf16.msra.mxu0 %v1098
      %1577 = vmatpush.bf16.msra.mxu0 %v1094
      %1578 = vmatpush.bf16.msra.mxu0 %v1090
      %1579 = vmatmul.bf16.gmra.mxu0 %v582
      %v1580 = vpop.f32.mrf.mxu0
      %v1581 = vadd.f32 %v1567, %v1580
      %v1582 = vpop.f32.mrf.mxu0
      %v1583 = vadd.f32 %v1569, %v1582
      %1584 = vdwg.mxu0
      %1585 = vmatpush.bf16.msra.mxu0 %v1150
      %1586 = vmatpush.bf16.msra.mxu0 %v1146
      %1587 = vmatpush.bf16.msra.mxu0 %v1142
      %1588 = vmatpush.bf16.msra.mxu0 %v1138
      %1589 = vmatpush.bf16.msra.mxu0 %v1134
      %1590 = vmatpush.bf16.msra.mxu0 %v1130
      %1591 = vmatpush.bf16.msra.mxu0 %v1126
      %1592 = vmatpush.bf16.msra.mxu0 %v1122
      %1593 = vmatmul.bf16.gmra.mxu0 %v594
      %v1594 = vpop.f32.mrf.mxu0
      %v1595 = vadd.f32 %v1581, %v1594
      %v1596 = vpop.f32.mrf.mxu0
      %v1597 = vadd.f32 %v1583, %v1596
      %1598 = vdwg.mxu0
      %1599 = vmatpush.bf16.msra.mxu0 %v1182
      %1600 = vmatpush.bf16.msra.mxu0 %v1178
      %1601 = vmatpush.bf16.msra.mxu0 %v1174
      %1602 = vmatpush.bf16.msra.mxu0 %v1170
      %1603 = vmatpush.bf16.msra.mxu0 %v1166
      %1604 = vmatpush.bf16.msra.mxu0 %v1162
      %1605 = vmatpush.bf16.msra.mxu0 %v1158
      %1606 = vmatpush.bf16.msra.mxu0 %v1154
      %1607 = vmatmul.bf16.gmra.mxu0 %v606
      %v1608 = vpop.f32.mrf.mxu0
      %v1609 = vadd.f32 %v1595, %v1608
      %v1610 = vpop.f32.mrf.mxu0
      %v1611 = vadd.f32 %v1597, %v1610
      %1612 = vdwg.mxu0
      %1613 = vmatpush.bf16.msra.mxu0 0
      %1614 = vmatpush.bf16.msra.mxu0 0
      %1615 = vmatpush.bf16.msra.mxu0 0
      %1616 = vmatpush.bf16.msra.mxu0 0
      %1617 = vmatpush.bf16.msra.mxu0 %v1198
      %1618 = vmatpush.bf16.msra.mxu0 %v1194
      %1619 = vmatpush.bf16.msra.mxu0 %v1190
      %1620 = vmatpush.bf16.msra.mxu0 %v1186
      %1621 = vmatmul.bf16.gmra.mxu0 %v1345
      %v1622 = vpop.f32.mrf.mxu0
      %v1623 = vadd.f32 %v1609, %v1622
      %v1624 = vpop.f32.mrf.mxu0
      %v1625 = vadd.f32 %v1611, %v1624
      %1626 = vdwg.mxu0
      %v1775 = vunpack.c.l.b16 %v235
      %v1776 = vunpack.c.h.b16 %v235
      %v1777 = vunpack.c.l.b16 %v236
      %v1778 = vunpack.c.h.b16 %v236
      %v1779 = vunpack.c.l.b16 %v237
      %v1780 = vunpack.c.h.b16 %v237
      %v1781 = vunpack.c.l.b16 %v238
      %v1782 = vunpack.c.h.b16 %v238
      %v1783 = vunpack.c.l.b16 %v239
      %v1784 = vunpack.c.h.b16 %v239
      %v1785 = vunpack.c.l.b16 %v240
      %v1786 = vunpack.c.h.b16 %v240
      %v1787 = vunpack.c.l.b16 %v241
      %v1788 = vunpack.c.h.b16 %v241
      %v1789 = vunpack.c.l.b16 %v242
      %v1790 = vunpack.c.h.b16 %v242
      %v1791 = vunpack.c.l.b16 %v243
      %v1792 = vunpack.c.h.b16 %v243
      %v1793 = vunpack.c.l.b16 %v244
      %v1794 = vunpack.c.h.b16 %v244
      %v1795 = vunpack.c.l.b16 %v245
      %v1796 = vunpack.c.h.b16 %v245
      %v1797 = vunpack.c.l.b16 %v246
      %v1798 = vunpack.c.h.b16 %v246
      %v1799 = vunpack.c.l.b16 %v247
      %v1800 = vunpack.c.h.b16 %v247
      %v1801 = vunpack.c.l.b16 %v248
      %v1802 = vunpack.c.h.b16 %v248
      %v1803 = vunpack.c.l.b16 %v249
      %v1804 = vunpack.c.h.b16 %v249
      %v1805 = vunpack.c.l.b16 %v250
      %v1806 = vunpack.c.h.b16 %v250
      %v1807 = vunpack.c.l.b16 %v251
      %v1808 = vunpack.c.h.b16 %v251
      %v1809 = vunpack.c.l.b16 %v252
      %v1810 = vunpack.c.h.b16 %v252
      %v1811 = vunpack.c.l.b16 %v253
      %v1812 = vunpack.c.h.b16 %v253
      %v1813 = vunpack.c.l.b16 %v254
      %v1814 = vunpack.c.h.b16 %v254
      %v1815 = vunpack.c.l.b16 %v255
      %v1816 = vunpack.c.h.b16 %v255
      %v1817 = vunpack.c.l.b16 %v256
      %v1818 = vunpack.c.h.b16 %v256
      %v1819 = vunpack.c.l.b16 %v257
      %v1820 = vunpack.c.h.b16 %v257
      %v1821 = vunpack.c.l.b16 %v258
      %v1822 = vunpack.c.h.b16 %v258
      %v1823 = vunpack.c.l.b16 %v259
      %v1824 = vunpack.c.h.b16 %v259
      %v1825 = vunpack.c.l.b16 %v260
      %v1826 = vunpack.c.h.b16 %v260
      %v1827 = vunpack.c.l.b16 %v261
      %v1828 = vunpack.c.h.b16 %v261
      %v1829 = vunpack.c.l.b16 %v262
      %v1830 = vunpack.c.h.b16 %v262
      %v1831 = vunpack.c.l.b16 %v263
      %v1832 = vunpack.c.h.b16 %v263
      %v1833 = vunpack.c.l.b16 %v264
      %v1834 = vunpack.c.h.b16 %v264
      %v1835 = vunpack.c.l.b16 %v265
      %v1836 = vunpack.c.h.b16 %v265
      %v1837 = vunpack.c.l.b16 %v266
      %v1838 = vunpack.c.h.b16 %v266
      %v1839 = vunpack.c.l.b16 %v267
      %v1840 = vunpack.c.h.b16 %v267
      %v1841 = vunpack.c.l.b16 %v268
      %v1842 = vunpack.c.h.b16 %v268
      %v1843 = vunpack.c.l.b16 %v269
      %v1844 = vunpack.c.h.b16 %v269
      %v1845 = vunpack.c.l.b16 %v270
      %v1846 = vunpack.c.h.b16 %v270
      %v1847 = vunpack.c.l.b16 %v271
      %v1848 = vunpack.c.h.b16 %v271
      %v1849 = vunpack.c.l.b16 %v272
      %v1850 = vunpack.c.h.b16 %v272
      %v1851 = vunpack.c.l.b16 %v273
      %v1852 = vunpack.c.h.b16 %v273
      %v1853 = vunpack.c.l.b16 %v274
      %v1854 = vunpack.c.h.b16 %v274
      %v1855 = vunpack.c.l.b16 %v275
      %v1856 = vunpack.c.h.b16 %v275
      %v1857 = vunpack.c.l.b16 %v276
      %v1858 = vunpack.c.h.b16 %v276
      %v1859 = vunpack.c.l.b16 %v277
      %v1860 = vunpack.c.h.b16 %v277
      %v1861 = vunpack.c.l.b16 %v278
      %v1862 = vunpack.c.h.b16 %v278
      %v1863 = vunpack.c.l.b16 %v279
      %v1864 = vunpack.c.h.b16 %v279
      %v1865 = vunpack.c.l.b16 %v280
      %v1866 = vunpack.c.h.b16 %v280
      %v1867 = vunpack.c.l.b16 %v281
      %v1868 = vunpack.c.h.b16 %v281
      %v1869 = vunpack.c.l.b16 %v282
      %v1870 = vunpack.c.h.b16 %v282
      %v1871 = vunpack.c.l.b16 %v283
      %v1872 = vunpack.c.h.b16 %v283
      %v1873 = vunpack.c.l.b16 %v284
      %v1874 = vunpack.c.h.b16 %v284
      %v1875 = vunpack.c.l.b16 %v285
      %v1876 = vunpack.c.h.b16 %v285
      %v1877 = vunpack.c.l.b16 %v286
      %v1878 = vunpack.c.h.b16 %v286
      %v1879 = vunpack.c.l.b16 %v287
      %v1880 = vunpack.c.h.b16 %v287
      %v1881 = vunpack.c.l.b16 %v288
      %v1882 = vunpack.c.h.b16 %v288
      %v1883 = vunpack.c.l.b16 %v289
      %v1884 = vunpack.c.h.b16 %v289
      %v1885 = vunpack.c.l.b16 %v290
      %v1886 = vunpack.c.h.b16 %v290
      %v1887 = vunpack.c.l.b16 %v291
      %v1888 = vunpack.c.h.b16 %v291
      %v1889 = vunpack.c.l.b16 %v292
      %v1890 = vunpack.c.h.b16 %v292
      %v1891 = vunpack.c.l.b16 %v293
      %v1892 = vunpack.c.h.b16 %v293
      %v1893 = vunpack.c.l.b16 %v294
      %v1894 = vunpack.c.h.b16 %v294
      %v1895 = vunpack.c.l.b16 %v295
      %v1896 = vunpack.c.h.b16 %v295
      %v1897 = vunpack.c.l.b16 %v296
      %v1898 = vunpack.c.h.b16 %v296
      %v1899 = vunpack.c.l.b16 %v297
      %v1900 = vunpack.c.h.b16 %v297
      %v1901 = vunpack.c.l.b16 %v298
      %v1902 = vunpack.c.h.b16 %v298
      %v1903 = vunpack.c.l.b16 %v299
      %v1904 = vunpack.c.h.b16 %v299
      %v1905 = vunpack.c.l.b16 %v300
      %v1906 = vunpack.c.h.b16 %v300
      %v1907 = vunpack.c.l.b16 %v301
      %v1908 = vunpack.c.h.b16 %v301
      %v1909 = vunpack.c.l.b16 %v302
      %v1910 = vunpack.c.h.b16 %v302
      %v1911 = vunpack.c.l.b16 %v303
      %v1912 = vunpack.c.h.b16 %v303
      %v1913 = vunpack.c.l.b16 %v304
      %v1914 = vunpack.c.h.b16 %v304
      %v1915 = vunpack.c.l.b16 %v305
      %v1916 = vunpack.c.h.b16 %v305
      %v1917 = vunpack.c.l.b16 %v306
      %v1918 = vunpack.c.h.b16 %v306
      %v1919 = vunpack.c.l.b16 %v307
      %v1920 = vunpack.c.h.b16 %v307
      %v1921 = vunpack.c.l.b16 %v308
      %v1922 = vunpack.c.h.b16 %v308
      %v1923 = vunpack.c.l.b16 %v309
      %v1924 = vunpack.c.h.b16 %v309
      %v1925 = vunpack.c.l.b16 %v310
      %v1926 = vunpack.c.h.b16 %v310
      %v1927 = vunpack.c.l.b16 %v311
      %v1928 = vunpack.c.h.b16 %v311
      %v1929 = vunpack.c.l.b16 %v312
      %v1930 = vunpack.c.h.b16 %v312
      %v1931 = vunpack.c.l.b16 %v313
      %v1932 = vunpack.c.h.b16 %v313
      %v1933 = vunpack.c.l.b16 %v314
      %v1934 = vunpack.c.h.b16 %v314
      %v1935 = vunpack.c.l.b16 %v315
      %v1936 = vunpack.c.h.b16 %v315
      %v1937 = vunpack.c.l.b16 %v316
      %v1938 = vunpack.c.h.b16 %v316
      %v1939 = vunpack.c.l.b16 %v317
      %v1940 = vunpack.c.h.b16 %v317
      %v1941 = vunpack.c.l.b16 %v318
      %v1942 = vunpack.c.h.b16 %v318
      %v1943 = vunpack.c.l.b16 %v319
      %v1944 = vunpack.c.h.b16 %v319
      %v1945 = vunpack.c.l.b16 %v320
      %v1946 = vunpack.c.h.b16 %v320
      %v1947 = vunpack.c.l.b16 %v321
      %v1948 = vunpack.c.h.b16 %v321
      %v1949 = vunpack.c.l.b16 %v322
      %v1950 = vunpack.c.h.b16 %v322
      %v1951 = vunpack.c.l.b16 %v323
      %v1952 = vunpack.c.h.b16 %v323
      %v1953 = vunpack.c.l.b16 %v324
      %v1954 = vunpack.c.h.b16 %v324
      %v1955 = vunpack.c.l.b16 %v325
      %v1956 = vunpack.c.h.b16 %v325
      %v1957 = vunpack.c.l.b16 %v326
      %v1958 = vunpack.c.h.b16 %v326
      %v1959 = vunpack.c.l.b16 %v327
      %v1960 = vunpack.c.h.b16 %v327
      %v1961 = vunpack.c.l.b16 %v328
      %v1962 = vunpack.c.h.b16 %v328
      %v1963 = vunpack.c.l.b16 %v329
      %v1964 = vunpack.c.h.b16 %v329
      %v1965 = vunpack.c.l.b16 %v330
      %v1966 = vunpack.c.h.b16 %v330
      %v1967 = vunpack.c.l.b16 %v331
      %v1968 = vunpack.c.h.b16 %v331
      %v1969 = vunpack.c.l.b16 %v332
      %v1970 = vunpack.c.h.b16 %v332
      %v1971 = vunpack.c.l.b16 %v333
      %v1972 = vunpack.c.h.b16 %v333
      %v1973 = vunpack.c.l.b16 %v334
      %v1974 = vunpack.c.h.b16 %v334
      %v1975 = vunpack.c.l.b16 %v335
      %v1976 = vunpack.c.h.b16 %v335
      %v1977 = vunpack.c.l.b16 %v336
      %v1978 = vunpack.c.h.b16 %v336
      %v1979 = vunpack.c.l.b16 %v337
      %v1980 = vunpack.c.h.b16 %v337
      %v1981 = vunpack.c.l.b16 %v338
      %v1982 = vunpack.c.h.b16 %v338
      %v1983 = vunpack.c.l.b16 %v339
      %v1984 = vunpack.c.h.b16 %v339
      %v1985 = vunpack.c.l.b16 %v340
      %v1986 = vunpack.c.h.b16 %v340
      %v1987 = vunpack.c.l.b16 %v341
      %v1988 = vunpack.c.h.b16 %v341
      %v1989 = vunpack.c.l.b16 %v342
      %v1990 = vunpack.c.h.b16 %v342
      %v1991 = vunpack.c.l.b16 %v343
      %v1992 = vunpack.c.h.b16 %v343
      %v1993 = vunpack.c.l.b16 %v344
      %v1994 = vunpack.c.h.b16 %v344
      %v1995 = vunpack.c.l.b16 %v345
      %v1996 = vunpack.c.h.b16 %v345
      %v1997 = vunpack.c.l.b16 %v346
      %v1998 = vunpack.c.h.b16 %v346
      %v1999 = vunpack.c.l.b16 %v347
      %v2000 = vunpack.c.h.b16 %v347
      %v2001 = vunpack.c.l.b16 %v348
      %v2002 = vunpack.c.h.b16 %v348
      %v2003 = vunpack.c.l.b16 %v349
      %v2004 = vunpack.c.h.b16 %v349
      %v2005 = vunpack.c.l.b16 %v350
      %v2006 = vunpack.c.h.b16 %v350
      %v2007 = vunpack.c.l.b16 %v351
      %v2008 = vunpack.c.h.b16 %v351
      %v2009 = vunpack.c.l.b16 %v352
      %v2010 = vunpack.c.h.b16 %v352
      %v2011 = vunpack.c.l.b16 %v353
      %v2012 = vunpack.c.h.b16 %v353
      %v2013 = vunpack.c.l.b16 %v354
      %v2014 = vunpack.c.h.b16 %v354
      %v2015 = vunpack.c.l.b16 %v355
      %v2016 = vunpack.c.h.b16 %v355
      %v2017 = vunpack.c.l.b16 %v356
      %v2018 = vunpack.c.h.b16 %v356
      %v2019 = vunpack.c.l.b16 %v357
      %v2020 = vunpack.c.h.b16 %v357
      %v2021 = vunpack.c.l.b16 %v358
      %v2022 = vunpack.c.h.b16 %v358
      %v2023 = vunpack.c.l.b16 %v359
      %v2024 = vunpack.c.h.b16 %v359
      %v2025 = vunpack.c.l.b16 %v360
      %v2026 = vunpack.c.h.b16 %v360
      %v2027 = vunpack.c.l.b16 %v361
      %v2028 = vunpack.c.h.b16 %v361
      %v2029 = vunpack.c.l.b16 %v362
      %v2030 = vunpack.c.h.b16 %v362
      %v2031 = vunpack.c.l.b16 %v363
      %v2032 = vunpack.c.h.b16 %v363
      %v2033 = vunpack.c.l.b16 %v364
      %v2034 = vunpack.c.h.b16 %v364
      %v2035 = vunpack.c.l.b16 %v365
      %v2036 = vunpack.c.h.b16 %v365
      %v2037 = vunpack.c.l.b16 %v366
      %v2038 = vunpack.c.h.b16 %v366
      %v2039 = vunpack.c.l.b16 %v367
      %v2040 = vunpack.c.h.b16 %v367
      %v2041 = vunpack.c.l.b16 %v368
      %v2042 = vunpack.c.h.b16 %v368
      %v2043 = vunpack.c.l.b16 %v369
      %v2044 = vunpack.c.h.b16 %v369
      %v2045 = vunpack.c.l.b16 %v370
      %v2046 = vunpack.c.h.b16 %v370
      %v2047 = vunpack.c.l.b16 %v371
      %v2048 = vunpack.c.h.b16 %v371
      %v2049 = vunpack.c.l.b16 %v372
      %v2050 = vunpack.c.h.b16 %v372
      %v2051 = vunpack.c.l.b16 %v373
      %v2052 = vunpack.c.h.b16 %v373
      %v2053 = vunpack.c.l.b16 %v374
      %v2054 = vunpack.c.h.b16 %v374
      %v2055 = vunpack.c.l.b16 %v375
      %v2056 = vunpack.c.h.b16 %v375
      %v2057 = vunpack.c.l.b16 %v376
      %v2058 = vunpack.c.h.b16 %v376
      %v2059 = vunpack.c.l.b16 %v377
      %v2060 = vunpack.c.h.b16 %v377
      %v2061 = vunpack.c.l.b16 %v378
      %v2062 = vunpack.c.h.b16 %v378
      %v2063 = vpack.c.b16 %v1779, %v1775
      %v2064 = vpack.c.b16 %v1780, %v1776
      %v2065 = vpack.c.b16 %v1781, %v1777
      %v2066 = vpack.c.b16 %v1782, %v1778
      %v2067 = vpack.c.b16 %v1787, %v1783
      %v2068 = vpack.c.b16 %v1788, %v1784
      %v2069 = vpack.c.b16 %v1789, %v1785
      %v2070 = vpack.c.b16 %v1790, %v1786
      %v2071 = vpack.c.b16 %v1795, %v1791
      %v2072 = vpack.c.b16 %v1796, %v1792
      %v2073 = vpack.c.b16 %v1797, %v1793
      %v2074 = vpack.c.b16 %v1798, %v1794
      %v2075 = vpack.c.b16 %v1803, %v1799
      %v2076 = vpack.c.b16 %v1804, %v1800
      %v2077 = vpack.c.b16 %v1805, %v1801
      %v2078 = vpack.c.b16 %v1806, %v1802
      %v2079 = vpack.c.b16 %v1811, %v1807
      %v2080 = vpack.c.b16 %v1812, %v1808
      %v2081 = vpack.c.b16 %v1813, %v1809
      %v2082 = vpack.c.b16 %v1814, %v1810
      %v2083 = vpack.c.b16 %v1819, %v1815
      %v2084 = vpack.c.b16 %v1820, %v1816
      %v2085 = vpack.c.b16 %v1821, %v1817
      %v2086 = vpack.c.b16 %v1822, %v1818
      %v2087 = vpack.c.b16 %v1827, %v1823
      %v2088 = vpack.c.b16 %v1828, %v1824
      %v2089 = vpack.c.b16 %v1829, %v1825
      %v2090 = vpack.c.b16 %v1830, %v1826
      %v2091 = vpack.c.b16 %v1835, %v1831
      %v2092 = vpack.c.b16 %v1836, %v1832
      %v2093 = vpack.c.b16 %v1837, %v1833
      %v2094 = vpack.c.b16 %v1838, %v1834
      %v2095 = vpack.c.b16 %v1843, %v1839
      %v2096 = vpack.c.b16 %v1844, %v1840
      %v2097 = vpack.c.b16 %v1845, %v1841
      %v2098 = vpack.c.b16 %v1846, %v1842
      %v2099 = vpack.c.b16 %v1851, %v1847
      %v2100 = vpack.c.b16 %v1852, %v1848
      %v2101 = vpack.c.b16 %v1853, %v1849
      %v2102 = vpack.c.b16 %v1854, %v1850
      %v2103 = vpack.c.b16 %v1859, %v1855
      %v2104 = vpack.c.b16 %v1860, %v1856
      %v2105 = vpack.c.b16 %v1861, %v1857
      %v2106 = vpack.c.b16 %v1862, %v1858
      %v2107 = vpack.c.b16 %v1867, %v1863
      %v2108 = vpack.c.b16 %v1868, %v1864
      %v2109 = vpack.c.b16 %v1869, %v1865
      %v2110 = vpack.c.b16 %v1870, %v1866
      %v2111 = vpack.c.b16 %v1875, %v1871
      %v2112 = vpack.c.b16 %v1876, %v1872
      %v2113 = vpack.c.b16 %v1877, %v1873
      %v2114 = vpack.c.b16 %v1878, %v1874
      %v2115 = vpack.c.b16 %v1883, %v1879
      %v2116 = vpack.c.b16 %v1884, %v1880
      %v2117 = vpack.c.b16 %v1885, %v1881
      %v2118 = vpack.c.b16 %v1886, %v1882
      %v2119 = vpack.c.b16 %v1891, %v1887
      %v2120 = vpack.c.b16 %v1892, %v1888
      %v2121 = vpack.c.b16 %v1893, %v1889
      %v2122 = vpack.c.b16 %v1894, %v1890
      %v2123 = vpack.c.b16 %v1899, %v1895
      %v2124 = vpack.c.b16 %v1900, %v1896
      %v2125 = vpack.c.b16 %v1901, %v1897
      %v2126 = vpack.c.b16 %v1902, %v1898
      %v2127 = vpack.c.b16 %v1907, %v1903
      %v2128 = vpack.c.b16 %v1908, %v1904
      %v2129 = vpack.c.b16 %v1909, %v1905
      %v2130 = vpack.c.b16 %v1910, %v1906
      %v2131 = vpack.c.b16 %v1915, %v1911
      %v2132 = vpack.c.b16 %v1916, %v1912
      %v2133 = vpack.c.b16 %v1917, %v1913
      %v2134 = vpack.c.b16 %v1918, %v1914
      %v2135 = vpack.c.b16 %v1923, %v1919
      %v2136 = vpack.c.b16 %v1924, %v1920
      %v2137 = vpack.c.b16 %v1925, %v1921
      %v2138 = vpack.c.b16 %v1926, %v1922
      %v2139 = vpack.c.b16 %v1931, %v1927
      %v2140 = vpack.c.b16 %v1932, %v1928
      %v2141 = vpack.c.b16 %v1933, %v1929
      %v2142 = vpack.c.b16 %v1934, %v1930
      %v2143 = vpack.c.b16 %v1939, %v1935
      %v2144 = vpack.c.b16 %v1940, %v1936
      %v2145 = vpack.c.b16 %v1941, %v1937
      %v2146 = vpack.c.b16 %v1942, %v1938
      %v2147 = vpack.c.b16 %v1947, %v1943
      %v2148 = vpack.c.b16 %v1948, %v1944
      %v2149 = vpack.c.b16 %v1949, %v1945
      %v2150 = vpack.c.b16 %v1950, %v1946
      %v2151 = vpack.c.b16 %v1955, %v1951
      %v2152 = vpack.c.b16 %v1956, %v1952
      %v2153 = vpack.c.b16 %v1957, %v1953
      %v2154 = vpack.c.b16 %v1958, %v1954
      %v2155 = vpack.c.b16 %v1963, %v1959
      %v2156 = vpack.c.b16 %v1964, %v1960
      %v2157 = vpack.c.b16 %v1965, %v1961
      %v2158 = vpack.c.b16 %v1966, %v1962
      %v2159 = vpack.c.b16 %v1971, %v1967
      %v2160 = vpack.c.b16 %v1972, %v1968
      %v2161 = vpack.c.b16 %v1973, %v1969
      %v2162 = vpack.c.b16 %v1974, %v1970
      %v2163 = vpack.c.b16 %v1979, %v1975
      %v2164 = vpack.c.b16 %v1980, %v1976
      %v2165 = vpack.c.b16 %v1981, %v1977
      %v2166 = vpack.c.b16 %v1982, %v1978
      %v2167 = vpack.c.b16 %v1987, %v1983
      %v2168 = vpack.c.b16 %v1988, %v1984
      %v2169 = vpack.c.b16 %v1989, %v1985
      %v2170 = vpack.c.b16 %v1990, %v1986
      %v2171 = vpack.c.b16 %v1995, %v1991
      %v2172 = vpack.c.b16 %v1996, %v1992
      %v2173 = vpack.c.b16 %v1997, %v1993
      %v2174 = vpack.c.b16 %v1998, %v1994
      %v2175 = vpack.c.b16 %v2003, %v1999
      %v2176 = vpack.c.b16 %v2004, %v2000
      %v2177 = vpack.c.b16 %v2005, %v2001
      %v2178 = vpack.c.b16 %v2006, %v2002
      %v2179 = vpack.c.b16 %v2011, %v2007
      %v2180 = vpack.c.b16 %v2012, %v2008
      %v2181 = vpack.c.b16 %v2013, %v2009
      %v2182 = vpack.c.b16 %v2014, %v2010
      %v2183 = vpack.c.b16 %v2019, %v2015
      %v2184 = vpack.c.b16 %v2020, %v2016
      %v2185 = vpack.c.b16 %v2021, %v2017
      %v2186 = vpack.c.b16 %v2022, %v2018
      %v2187 = vpack.c.b16 %v2027, %v2023
      %v2188 = vpack.c.b16 %v2028, %v2024
      %v2189 = vpack.c.b16 %v2029, %v2025
      %v2190 = vpack.c.b16 %v2030, %v2026
      %v2191 = vpack.c.b16 %v2035, %v2031
      %v2192 = vpack.c.b16 %v2036, %v2032
      %v2193 = vpack.c.b16 %v2037, %v2033
      %v2194 = vpack.c.b16 %v2038, %v2034
      %v2195 = vpack.c.b16 %v2043, %v2039
      %v2196 = vpack.c.b16 %v2044, %v2040
      %v2197 = vpack.c.b16 %v2045, %v2041
      %v2198 = vpack.c.b16 %v2046, %v2042
      %v2199 = vpack.c.b16 %v2051, %v2047
      %v2200 = vpack.c.b16 %v2052, %v2048
      %v2201 = vpack.c.b16 %v2053, %v2049
      %v2202 = vpack.c.b16 %v2054, %v2050
      %v2203 = vpack.c.b16 %v2059, %v2055
      %v2204 = vpack.c.b16 %v2060, %v2056
      %v2205 = vpack.c.b16 %v2061, %v2057
      %v2206 = vpack.c.b16 %v2062, %v2058
      %v2351 = vsel %vm1343, %v552, 0
      %2353 = vmatpush.bf16.msra.mxu0 %v2091
      %2354 = vmatpush.bf16.msra.mxu0 %v2087
      %2355 = vmatpush.bf16.msra.mxu0 %v2083
      %2356 = vmatpush.bf16.msra.mxu0 %v2079
      %2357 = vmatpush.bf16.msra.mxu0 %v2075
      %2358 = vmatpush.bf16.msra.mxu0 %v2071
      %2359 = vmatpush.bf16.msra.mxu0 %v2067
      %2360 = vmatpush.bf16.msra.mxu0 %v2063
      %2361 = vmatmul.bf16.gmra.mxu0 %v548
      %v2362 = vpop.f32.mrf.mxu0
      %v2363 = vadd.f32 %v1413, %v2362
      %v2364 = vpop.f32.mrf.mxu0
      %v2365 = vadd.f32 %v1415, %v2364
      %2366 = vdwg.mxu0
      %2367 = vmatpush.bf16.msra.mxu0 %v2123
      %2368 = vmatpush.bf16.msra.mxu0 %v2119
      %2369 = vmatpush.bf16.msra.mxu0 %v2115
      %2370 = vmatpush.bf16.msra.mxu0 %v2111
      %2371 = vmatpush.bf16.msra.mxu0 %v2107
      %2372 = vmatpush.bf16.msra.mxu0 %v2103
      %2373 = vmatpush.bf16.msra.mxu0 %v2099
      %2374 = vmatpush.bf16.msra.mxu0 %v2095
      %2375 = vmatmul.bf16.gmra.mxu0 %v549
      %v2376 = vpop.f32.mrf.mxu0
      %v2377 = vadd.f32 %v2363, %v2376
      %v2378 = vpop.f32.mrf.mxu0
      %v2379 = vadd.f32 %v2365, %v2378
      %2380 = vdwg.mxu0
      %2381 = vmatpush.bf16.msra.mxu0 %v2155
      %2382 = vmatpush.bf16.msra.mxu0 %v2151
      %2383 = vmatpush.bf16.msra.mxu0 %v2147
      %2384 = vmatpush.bf16.msra.mxu0 %v2143
      %2385 = vmatpush.bf16.msra.mxu0 %v2139
      %2386 = vmatpush.bf16.msra.mxu0 %v2135
      %2387 = vmatpush.bf16.msra.mxu0 %v2131
      %2388 = vmatpush.bf16.msra.mxu0 %v2127
      %2389 = vmatmul.bf16.gmra.mxu0 %v550
      %v2390 = vpop.f32.mrf.mxu0
      %v2391 = vadd.f32 %v2377, %v2390
      %v2392 = vpop.f32.mrf.mxu0
      %v2393 = vadd.f32 %v2379, %v2392
      %2394 = vdwg.mxu0
      %2395 = vmatpush.bf16.msra.mxu0 %v2187
      %2396 = vmatpush.bf16.msra.mxu0 %v2183
      %2397 = vmatpush.bf16.msra.mxu0 %v2179
      %2398 = vmatpush.bf16.msra.mxu0 %v2175
      %2399 = vmatpush.bf16.msra.mxu0 %v2171
      %2400 = vmatpush.bf16.msra.mxu0 %v2167
      %2401 = vmatpush.bf16.msra.mxu0 %v2163
      %2402 = vmatpush.bf16.msra.mxu0 %v2159
      %2403 = vmatmul.bf16.gmra.mxu0 %v551
      %v2404 = vpop.f32.mrf.mxu0
      %v2405 = vadd.f32 %v2391, %v2404
      %v2406 = vpop.f32.mrf.mxu0
      %v2407 = vadd.f32 %v2393, %v2406
      %2408 = vdwg.mxu0
      %2409 = vmatpush.bf16.msra.mxu0 0
      %2410 = vmatpush.bf16.msra.mxu0 0
      %2411 = vmatpush.bf16.msra.mxu0 0
      %2412 = vmatpush.bf16.msra.mxu0 0
      %2413 = vmatpush.bf16.msra.mxu0 %v2203
      %2414 = vmatpush.bf16.msra.mxu0 %v2199
      %2415 = vmatpush.bf16.msra.mxu0 %v2195
      %2416 = vmatpush.bf16.msra.mxu0 %v2191
      %2417 = vmatmul.bf16.gmra.mxu0 %v2351
      %v2418 = vpop.f32.mrf.mxu0
      %v2419 = vadd.f32 %v2405, %v2418
      %v2420 = vpop.f32.mrf.mxu0
      %v2421 = vadd.f32 %v2407, %v2420
      %2422 = vdwg.mxu0
      %2423 = vmatpush.bf16.msra.mxu0 %v2092
      %2424 = vmatpush.bf16.msra.mxu0 %v2088
      %2425 = vmatpush.bf16.msra.mxu0 %v2084
      %2426 = vmatpush.bf16.msra.mxu0 %v2080
      %2427 = vmatpush.bf16.msra.mxu0 %v2076
      %2428 = vmatpush.bf16.msra.mxu0 %v2072
      %2429 = vmatpush.bf16.msra.mxu0 %v2068
      %2430 = vmatpush.bf16.msra.mxu0 %v2064
      %2431 = vmatmul.bf16.gmra.mxu0 %v548
      %v2432 = vpop.f32.mrf.mxu0
      %v2433 = vadd.f32 %v1483, %v2432
      %v2434 = vpop.f32.mrf.mxu0
      %v2435 = vadd.f32 %v1485, %v2434
      %2436 = vdwg.mxu0
      %2437 = vmatpush.bf16.msra.mxu0 %v2124
      %2438 = vmatpush.bf16.msra.mxu0 %v2120
      %2439 = vmatpush.bf16.msra.mxu0 %v2116
      %2440 = vmatpush.bf16.msra.mxu0 %v2112
      %2441 = vmatpush.bf16.msra.mxu0 %v2108
      %2442 = vmatpush.bf16.msra.mxu0 %v2104
      %2443 = vmatpush.bf16.msra.mxu0 %v2100
      %2444 = vmatpush.bf16.msra.mxu0 %v2096
      %2445 = vmatmul.bf16.gmra.mxu0 %v549
      %v2446 = vpop.f32.mrf.mxu0
      %v2447 = vadd.f32 %v2433, %v2446
      %v2448 = vpop.f32.mrf.mxu0
      %v2449 = vadd.f32 %v2435, %v2448
      %2450 = vdwg.mxu0
      %2451 = vmatpush.bf16.msra.mxu0 %v2156
      %2452 = vmatpush.bf16.msra.mxu0 %v2152
      %2453 = vmatpush.bf16.msra.mxu0 %v2148
      %2454 = vmatpush.bf16.msra.mxu0 %v2144
      %2455 = vmatpush.bf16.msra.mxu0 %v2140
      %2456 = vmatpush.bf16.msra.mxu0 %v2136
      %2457 = vmatpush.bf16.msra.mxu0 %v2132
      %2458 = vmatpush.bf16.msra.mxu0 %v2128
      %2459 = vmatmul.bf16.gmra.mxu0 %v550
      %v2460 = vpop.f32.mrf.mxu0
      %v2461 = vadd.f32 %v2447, %v2460
      %v2462 = vpop.f32.mrf.mxu0
      %v2463 = vadd.f32 %v2449, %v2462
      %2464 = vdwg.mxu0
      %2465 = vmatpush.bf16.msra.mxu0 %v2188
      %2466 = vmatpush.bf16.msra.mxu0 %v2184
      %2467 = vmatpush.bf16.msra.mxu0 %v2180
      %2468 = vmatpush.bf16.msra.mxu0 %v2176
      %2469 = vmatpush.bf16.msra.mxu0 %v2172
      %2470 = vmatpush.bf16.msra.mxu0 %v2168
      %2471 = vmatpush.bf16.msra.mxu0 %v2164
      %2472 = vmatpush.bf16.msra.mxu0 %v2160
      %2473 = vmatmul.bf16.gmra.mxu0 %v551
      %v2474 = vpop.f32.mrf.mxu0
      %v2475 = vadd.f32 %v2461, %v2474
      %v2476 = vpop.f32.mrf.mxu0
      %v2477 = vadd.f32 %v2463, %v2476
      %2478 = vdwg.mxu0
      %2479 = vmatpush.bf16.msra.mxu0 0
      %2480 = vmatpush.bf16.msra.mxu0 0
      %2481 = vmatpush.bf16.msra.mxu0 0
      %2482 = vmatpush.bf16.msra.mxu0 0
      %2483 = vmatpush.bf16.msra.mxu0 %v2204
      %2484 = vmatpush.bf16.msra.mxu0 %v2200
      %2485 = vmatpush.bf16.msra.mxu0 %v2196
      %2486 = vmatpush.bf16.msra.mxu0 %v2192
      %2487 = vmatmul.bf16.gmra.mxu0 %v2351
      %v2488 = vpop.f32.mrf.mxu0
      %v2489 = vadd.f32 %v2475, %v2488
      %v2490 = vpop.f32.mrf.mxu0
      %v2491 = vadd.f32 %v2477, %v2490
      %2492 = vdwg.mxu0
      %2493 = vmatpush.bf16.msra.mxu0 %v2093
      %2494 = vmatpush.bf16.msra.mxu0 %v2089
      %2495 = vmatpush.bf16.msra.mxu0 %v2085
      %2496 = vmatpush.bf16.msra.mxu0 %v2081
      %2497 = vmatpush.bf16.msra.mxu0 %v2077
      %2498 = vmatpush.bf16.msra.mxu0 %v2073
      %2499 = vmatpush.bf16.msra.mxu0 %v2069
      %2500 = vmatpush.bf16.msra.mxu0 %v2065
      %2501 = vmatmul.bf16.gmra.mxu0 %v548
      %v2502 = vpop.f32.mrf.mxu0
      %v2503 = vadd.f32 %v1553, %v2502
      %v2504 = vpop.f32.mrf.mxu0
      %v2505 = vadd.f32 %v1555, %v2504
      %2506 = vdwg.mxu0
      %2507 = vmatpush.bf16.msra.mxu0 %v2125
      %2508 = vmatpush.bf16.msra.mxu0 %v2121
      %2509 = vmatpush.bf16.msra.mxu0 %v2117
      %2510 = vmatpush.bf16.msra.mxu0 %v2113
      %2511 = vmatpush.bf16.msra.mxu0 %v2109
      %2512 = vmatpush.bf16.msra.mxu0 %v2105
      %2513 = vmatpush.bf16.msra.mxu0 %v2101
      %2514 = vmatpush.bf16.msra.mxu0 %v2097
      %2515 = vmatmul.bf16.gmra.mxu0 %v549
      %v2516 = vpop.f32.mrf.mxu0
      %v2517 = vadd.f32 %v2503, %v2516
      %v2518 = vpop.f32.mrf.mxu0
      %v2519 = vadd.f32 %v2505, %v2518
      %2520 = vdwg.mxu0
      %2521 = vmatpush.bf16.msra.mxu0 %v2157
      %2522 = vmatpush.bf16.msra.mxu0 %v2153
      %2523 = vmatpush.bf16.msra.mxu0 %v2149
      %2524 = vmatpush.bf16.msra.mxu0 %v2145
      %2525 = vmatpush.bf16.msra.mxu0 %v2141
      %2526 = vmatpush.bf16.msra.mxu0 %v2137
      %2527 = vmatpush.bf16.msra.mxu0 %v2133
      %2528 = vmatpush.bf16.msra.mxu0 %v2129
      %2529 = vmatmul.bf16.gmra.mxu0 %v550
      %v2530 = vpop.f32.mrf.mxu0
      %v2531 = vadd.f32 %v2517, %v2530
      %v2532 = vpop.f32.mrf.mxu0
      %v2533 = vadd.f32 %v2519, %v2532
      %2534 = vdwg.mxu0
      %2535 = vmatpush.bf16.msra.mxu0 %v2189
      %2536 = vmatpush.bf16.msra.mxu0 %v2185
      %2537 = vmatpush.bf16.msra.mxu0 %v2181
      %2538 = vmatpush.bf16.msra.mxu0 %v2177
      %2539 = vmatpush.bf16.msra.mxu0 %v2173
      %2540 = vmatpush.bf16.msra.mxu0 %v2169
      %2541 = vmatpush.bf16.msra.mxu0 %v2165
      %2542 = vmatpush.bf16.msra.mxu0 %v2161
      %2543 = vmatmul.bf16.gmra.mxu0 %v551
      %v2544 = vpop.f32.mrf.mxu0
      %v2545 = vadd.f32 %v2531, %v2544
      %v2546 = vpop.f32.mrf.mxu0
      %v2547 = vadd.f32 %v2533, %v2546
      %2548 = vdwg.mxu0
      %2549 = vmatpush.bf16.msra.mxu0 0
      %2550 = vmatpush.bf16.msra.mxu0 0
      %2551 = vmatpush.bf16.msra.mxu0 0
      %2552 = vmatpush.bf16.msra.mxu0 0
      %2553 = vmatpush.bf16.msra.mxu0 %v2205
      %2554 = vmatpush.bf16.msra.mxu0 %v2201
      %2555 = vmatpush.bf16.msra.mxu0 %v2197
      %2556 = vmatpush.bf16.msra.mxu0 %v2193
      %2557 = vmatmul.bf16.gmra.mxu0 %v2351
      %v2558 = vpop.f32.mrf.mxu0
      %v2559 = vadd.f32 %v2545, %v2558
      %v2560 = vpop.f32.mrf.mxu0
      %v2561 = vadd.f32 %v2547, %v2560
      %2562 = vdwg.mxu0
      %2563 = vmatpush.bf16.msra.mxu0 %v2094
      %2564 = vmatpush.bf16.msra.mxu0 %v2090
      %2565 = vmatpush.bf16.msra.mxu0 %v2086
      %2566 = vmatpush.bf16.msra.mxu0 %v2082
      %2567 = vmatpush.bf16.msra.mxu0 %v2078
      %2568 = vmatpush.bf16.msra.mxu0 %v2074
      %2569 = vmatpush.bf16.msra.mxu0 %v2070
      %2570 = vmatpush.bf16.msra.mxu0 %v2066
      %2571 = vmatmul.bf16.gmra.mxu0 %v548
      %v2572 = vpop.f32.mrf.mxu0
      %v2573 = vadd.f32 %v1623, %v2572
      %v2574 = vpop.f32.mrf.mxu0
      %v2575 = vadd.f32 %v1625, %v2574
      %2576 = vdwg.mxu0
      %2577 = vmatpush.bf16.msra.mxu0 %v2126
      %2578 = vmatpush.bf16.msra.mxu0 %v2122
      %2579 = vmatpush.bf16.msra.mxu0 %v2118
      %2580 = vmatpush.bf16.msra.mxu0 %v2114
      %2581 = vmatpush.bf16.msra.mxu0 %v2110
      %2582 = vmatpush.bf16.msra.mxu0 %v2106
      %2583 = vmatpush.bf16.msra.mxu0 %v2102
      %2584 = vmatpush.bf16.msra.mxu0 %v2098
      %2585 = vmatmul.bf16.gmra.mxu0 %v549
      %v2586 = vpop.f32.mrf.mxu0
      %v2587 = vadd.f32 %v2573, %v2586
      %v2588 = vpop.f32.mrf.mxu0
      %v2589 = vadd.f32 %v2575, %v2588
      %2590 = vdwg.mxu0
      %2591 = vmatpush.bf16.msra.mxu0 %v2158
      %2592 = vmatpush.bf16.msra.mxu0 %v2154
      %2593 = vmatpush.bf16.msra.mxu0 %v2150
      %2594 = vmatpush.bf16.msra.mxu0 %v2146
      %2595 = vmatpush.bf16.msra.mxu0 %v2142
      %2596 = vmatpush.bf16.msra.mxu0 %v2138
      %2597 = vmatpush.bf16.msra.mxu0 %v2134
      %2598 = vmatpush.bf16.msra.mxu0 %v2130
      %2599 = vmatmul.bf16.gmra.mxu0 %v550
      %v2600 = vpop.f32.mrf.mxu0
      %v2601 = vadd.f32 %v2587, %v2600
      %v2602 = vpop.f32.mrf.mxu0
      %v2603 = vadd.f32 %v2589, %v2602
      %2604 = vdwg.mxu0
      %2605 = vmatpush.bf16.msra.mxu0 %v2190
      %2606 = vmatpush.bf16.msra.mxu0 %v2186
      %2607 = vmatpush.bf16.msra.mxu0 %v2182
      %2608 = vmatpush.bf16.msra.mxu0 %v2178
      %2609 = vmatpush.bf16.msra.mxu0 %v2174
      %2610 = vmatpush.bf16.msra.mxu0 %v2170
      %2611 = vmatpush.bf16.msra.mxu0 %v2166
      %2612 = vmatpush.bf16.msra.mxu0 %v2162
      %2613 = vmatmul.bf16.gmra.mxu0 %v551
      %v2614 = vpop.f32.mrf.mxu0
      %v2615 = vadd.f32 %v2601, %v2614
      %v2616 = vpop.f32.mrf.mxu0
      %v2617 = vadd.f32 %v2603, %v2616
      %2618 = vdwg.mxu0
      %2619 = vmatpush.bf16.msra.mxu0 0
      %2620 = vmatpush.bf16.msra.mxu0 0
      %2621 = vmatpush.bf16.msra.mxu0 0
      %2622 = vmatpush.bf16.msra.mxu0 0
      %2623 = vmatpush.bf16.msra.mxu0 %v2206
      %2624 = vmatpush.bf16.msra.mxu0 %v2202
      %2625 = vmatpush.bf16.msra.mxu0 %v2198
      %2626 = vmatpush.bf16.msra.mxu0 %v2194
      %2627 = vmatmul.bf16.gmra.mxu0 %v2351
      %v2628 = vpop.f32.mrf.mxu0
      %v2629 = vadd.f32 %v2615, %v2628
      %v2630 = vpop.f32.mrf.mxu0
      %v2631 = vadd.f32 %v2617, %v2630
      %2632 = vdwg.mxu0
      %s2633 = scalar_lea.vmem %s1, 2304
      %v2634 = vld [vmem:[%s2633] sm:$0xff]
      %v2635 = vld [vmem:[%s2633 + $0x8] sm:$0xff]
      %v2636 = vld [vmem:[%s2633 + $0x10] sm:$0xff]
      %v2637 = vld [vmem:[%s2633 + $0x18] sm:$0xff]
      %v2638 = vld [vmem:[%s2633 + $0x20] sm:$0xff]
      %v2639 = vld [vmem:[%s2633 + $0x28] sm:$0xff]
      %v2640 = vld [vmem:[%s2633 + $0x30] sm:$0xff]
      %v2641 = vld [vmem:[%s2633 + $0x38] sm:$0xff]
      %v2642 = vld [vmem:[%s2633 + $0x40] sm:$0xff]
      %v2643 = vld [vmem:[%s2633 + $0x48] sm:$0xff]
      %v2644 = vld [vmem:[%s2633 + $0x50] sm:$0xff]
      %v2645 = vld [vmem:[%s2633 + $0x58] sm:$0xff]
      %v2646 = vld [vmem:[%s2633 + $0x60] sm:$0xff]
      %v2647 = vld [vmem:[%s2633 + $0x68] sm:$0xff]
      %v2648 = vld [vmem:[%s2633 + $0x70] sm:$0xff]
      %v2649 = vld [vmem:[%s2633 + $0x78] sm:$0xff]
      %v2650 = vld [vmem:[%s2633 + $0x80] sm:$0xff]
      %v2651 = vld [vmem:[%s2633 + $0x88] sm:$0xff]
      %v2652 = vld [vmem:[%s2633 + $0x90] sm:$0xff]
      %v2653 = vld [vmem:[%s2633 + $0x98] sm:$0xff]
      %v2654 = vld [vmem:[%s2633 + $0xa0] sm:$0xff]
      %v2655 = vld [vmem:[%s2633 + $0xa8] sm:$0xff]
      %v2656 = vld [vmem:[%s2633 + $0xb0] sm:$0xff]
      %v2657 = vld [vmem:[%s2633 + $0xb8] sm:$0xff]
      %v2658 = vld [vmem:[%s2633 + $0xc0] sm:$0xff]
      %v2659 = vld [vmem:[%s2633 + $0xc8] sm:$0xff]
      %v2660 = vld [vmem:[%s2633 + $0xd0] sm:$0xff]
      %v2661 = vld [vmem:[%s2633 + $0xd8] sm:$0xff]
      %v2662 = vld [vmem:[%s2633 + $0xe0] sm:$0xff]
      %v2663 = vld [vmem:[%s2633 + $0xe8] sm:$0xff]
      %v2664 = vld [vmem:[%s2633 + $0xf0] sm:$0xff]
      %v2665 = vld [vmem:[%s2633 + $0xf8] sm:$0xff]
      %v2666 = vld [vmem:[%s2633 + $0x100] sm:$0xff]
      %v2667 = vld [vmem:[%s2633 + $0x108] sm:$0xff]
      %v2668 = vld [vmem:[%s2633 + $0x110] sm:$0xff]
      %v2669 = vld [vmem:[%s2633 + $0x118] sm:$0xff]
      %v2670 = vld [vmem:[%s2633 + $0x120] sm:$0xff]
      %v2671 = vld [vmem:[%s2633 + $0x128] sm:$0xff]
      %v2672 = vld [vmem:[%s2633 + $0x130] sm:$0xff]
      %v2673 = vld [vmem:[%s2633 + $0x138] sm:$0xff]
      %v2674 = vld [vmem:[%s2633 + $0x140] sm:$0xff]
      %v2675 = vld [vmem:[%s2633 + $0x148] sm:$0xff]
      %v2676 = vld [vmem:[%s2633 + $0x150] sm:$0xff]
      %v2677 = vld [vmem:[%s2633 + $0x158] sm:$0xff]
      %v2678 = vld [vmem:[%s2633 + $0x160] sm:$0xff]
      %v2679 = vld [vmem:[%s2633 + $0x168] sm:$0xff]
      %v2680 = vld [vmem:[%s2633 + $0x170] sm:$0xff]
      %v2681 = vld [vmem:[%s2633 + $0x178] sm:$0xff]
      %v2682 = vld [vmem:[%s2633 + $0x180] sm:$0xff]
      %v2683 = vld [vmem:[%s2633 + $0x188] sm:$0xff]
      %v2684 = vld [vmem:[%s2633 + $0x190] sm:$0xff]
      %v2685 = vld [vmem:[%s2633 + $0x198] sm:$0xff]
      %v2686 = vld [vmem:[%s2633 + $0x1a0] sm:$0xff]
      %v2687 = vld [vmem:[%s2633 + $0x1a8] sm:$0xff]
      %v2688 = vld [vmem:[%s2633 + $0x1b0] sm:$0xff]
      %v2689 = vld [vmem:[%s2633 + $0x1b8] sm:$0xff]
      %v2690 = vld [vmem:[%s2633 + $0x1c0] sm:$0xff]
      %v2691 = vld [vmem:[%s2633 + $0x1c8] sm:$0xff]
      %v2692 = vld [vmem:[%s2633 + $0x1d0] sm:$0xff]
      %v2693 = vld [vmem:[%s2633 + $0x1d8] sm:$0xff]
      %v2694 = vld [vmem:[%s2633 + $0x1e0] sm:$0xff]
      %v2695 = vld [vmem:[%s2633 + $0x1e8] sm:$0xff]
      %v2696 = vld [vmem:[%s2633 + $0x1f0] sm:$0xff]
      %v2697 = vld [vmem:[%s2633 + $0x1f8] sm:$0xff]
      %v2698 = vld [vmem:[%s2633 + $0x200] sm:$0xff]
      %v2699 = vld [vmem:[%s2633 + $0x208] sm:$0xff]
      %v2700 = vld [vmem:[%s2633 + $0x210] sm:$0xff]
      %v2701 = vld [vmem:[%s2633 + $0x218] sm:$0xff]
      %v2702 = vld [vmem:[%s2633 + $0x220] sm:$0xff]
      %v2703 = vld [vmem:[%s2633 + $0x228] sm:$0xff]
      %v2704 = vld [vmem:[%s2633 + $0x230] sm:$0xff]
      %v2705 = vld [vmem:[%s2633 + $0x238] sm:$0xff]
      %v2706 = vld [vmem:[%s2633 + $0x240] sm:$0xff]
      %v2707 = vld [vmem:[%s2633 + $0x248] sm:$0xff]
      %v2708 = vld [vmem:[%s2633 + $0x250] sm:$0xff]
      %v2709 = vld [vmem:[%s2633 + $0x258] sm:$0xff]
      %v2710 = vld [vmem:[%s2633 + $0x260] sm:$0xff]
      %v2711 = vld [vmem:[%s2633 + $0x268] sm:$0xff]
      %v2712 = vld [vmem:[%s2633 + $0x270] sm:$0xff]
      %v2713 = vld [vmem:[%s2633 + $0x278] sm:$0xff]
      %v2714 = vld [vmem:[%s2633 + $0x280] sm:$0xff]
      %v2715 = vld [vmem:[%s2633 + $0x288] sm:$0xff]
      %v2716 = vld [vmem:[%s2633 + $0x290] sm:$0xff]
      %v2717 = vld [vmem:[%s2633 + $0x298] sm:$0xff]
      %v2718 = vld [vmem:[%s2633 + $0x2a0] sm:$0xff]
      %v2719 = vld [vmem:[%s2633 + $0x2a8] sm:$0xff]
      %v2720 = vld [vmem:[%s2633 + $0x2b0] sm:$0xff]
      %v2721 = vld [vmem:[%s2633 + $0x2b8] sm:$0xff]
      %v2722 = vld [vmem:[%s2633 + $0x2c0] sm:$0xff]
      %v2723 = vld [vmem:[%s2633 + $0x2c8] sm:$0xff]
      %v2724 = vld [vmem:[%s2633 + $0x2d0] sm:$0xff]
      %v2725 = vld [vmem:[%s2633 + $0x2d8] sm:$0xff]
      %v2726 = vld [vmem:[%s2633 + $0x2e0] sm:$0xff]
      %v2727 = vld [vmem:[%s2633 + $0x2e8] sm:$0xff]
      %v2728 = vld [vmem:[%s2633 + $0x2f0] sm:$0xff]
      %v2729 = vld [vmem:[%s2633 + $0x2f8] sm:$0xff]
      %v2730 = vld [vmem:[%s2633 + $0x300] sm:$0xff]
      %v2731 = vld [vmem:[%s2633 + $0x308] sm:$0xff]
      %v2732 = vld [vmem:[%s2633 + $0x310] sm:$0xff]
      %v2733 = vld [vmem:[%s2633 + $0x318] sm:$0xff]
      %v2734 = vld [vmem:[%s2633 + $0x320] sm:$0xff]
      %v2735 = vld [vmem:[%s2633 + $0x328] sm:$0xff]
      %v2736 = vld [vmem:[%s2633 + $0x330] sm:$0xff]
      %v2737 = vld [vmem:[%s2633 + $0x338] sm:$0xff]
      %v2738 = vld [vmem:[%s2633 + $0x340] sm:$0xff]
      %v2739 = vld [vmem:[%s2633 + $0x348] sm:$0xff]
      %v2740 = vld [vmem:[%s2633 + $0x350] sm:$0xff]
      %v2741 = vld [vmem:[%s2633 + $0x358] sm:$0xff]
      %v2742 = vld [vmem:[%s2633 + $0x360] sm:$0xff]
      %v2743 = vld [vmem:[%s2633 + $0x368] sm:$0xff]
      %v2744 = vld [vmem:[%s2633 + $0x370] sm:$0xff]
      %v2745 = vld [vmem:[%s2633 + $0x378] sm:$0xff]
      %v2746 = vld [vmem:[%s2633 + $0x380] sm:$0xff]
      %v2747 = vld [vmem:[%s2633 + $0x388] sm:$0xff]
      %v2748 = vld [vmem:[%s2633 + $0x390] sm:$0xff]
      %v2749 = vld [vmem:[%s2633 + $0x398] sm:$0xff]
      %v2750 = vld [vmem:[%s2633 + $0x3a0] sm:$0xff]
      %v2751 = vld [vmem:[%s2633 + $0x3a8] sm:$0xff]
      %v2752 = vld [vmem:[%s2633 + $0x3b0] sm:$0xff]
      %v2753 = vld [vmem:[%s2633 + $0x3b8] sm:$0xff]
      %v2754 = vld [vmem:[%s2633 + $0x3c0] sm:$0xff]
      %v2755 = vld [vmem:[%s2633 + $0x3c8] sm:$0xff]
      %v2756 = vld [vmem:[%s2633 + $0x3d0] sm:$0xff]
      %v2757 = vld [vmem:[%s2633 + $0x3d8] sm:$0xff]
      %v2758 = vld [vmem:[%s2633 + $0x3e0] sm:$0xff]
      %v2759 = vld [vmem:[%s2633 + $0x3e8] sm:$0xff]
      %v2760 = vld [vmem:[%s2633 + $0x3f0] sm:$0xff]
      %v2761 = vld [vmem:[%s2633 + $0x3f8] sm:$0xff]
      %v2762 = vld [vmem:[%s2633 + $0x400] sm:$0xff]
      %v2763 = vld [vmem:[%s2633 + $0x408] sm:$0xff]
      %v2764 = vld [vmem:[%s2633 + $0x410] sm:$0xff]
      %v2765 = vld [vmem:[%s2633 + $0x418] sm:$0xff]
      %v2766 = vld [vmem:[%s2633 + $0x420] sm:$0xff]
      %v2767 = vld [vmem:[%s2633 + $0x428] sm:$0xff]
      %v2768 = vld [vmem:[%s2633 + $0x430] sm:$0xff]
      %v2769 = vld [vmem:[%s2633 + $0x438] sm:$0xff]
      %v2770 = vld [vmem:[%s2633 + $0x440] sm:$0xff]
      %v2771 = vld [vmem:[%s2633 + $0x448] sm:$0xff]
      %v2772 = vld [vmem:[%s2633 + $0x450] sm:$0xff]
      %v2773 = vld [vmem:[%s2633 + $0x458] sm:$0xff]
      %v2774 = vld [vmem:[%s2633 + $0x460] sm:$0xff]
      %v2775 = vld [vmem:[%s2633 + $0x468] sm:$0xff]
      %v2776 = vld [vmem:[%s2633 + $0x470] sm:$0xff]
      %v2777 = vld [vmem:[%s2633 + $0x478] sm:$0xff]
      %vm2778 = vcmask 1046528
      %v2779 = vrot.slane %v548, 1
      %v2780 = vrot.slane %v553, 1
      %v2781 = vsel %vm2778, %v2779, %v2780
      %v2782 = vrot.slane %v549, 1
      %v2783 = vrot.slane %v554, 1
      %v2784 = vsel %vm2778, %v2782, %v2783
      %v2785 = vrot.slane %v550, 1
      %v2786 = vrot.slane %v555, 1
      %v2787 = vsel %vm2778, %v2785, %v2786
      %v2788 = vrot.slane %v551, 1
      %v2789 = vrot.slane %v556, 1
      %v2790 = vsel %vm2778, %v2788, %v2789
      %v2791 = vrot.slane %v552, 1
      %v2792 = vrot.slane %v557, 1
      %v2793 = vsel %vm2778, %v2791, %v2792
      %v2942 = vunpack.c.l.b16 %v2634
      %v2943 = vunpack.c.h.b16 %v2634
      %v2944 = vunpack.c.l.b16 %v2635
      %v2945 = vunpack.c.h.b16 %v2635
      %v2946 = vunpack.c.l.b16 %v2636
      %v2947 = vunpack.c.h.b16 %v2636
      %v2948 = vunpack.c.l.b16 %v2637
      %v2949 = vunpack.c.h.b16 %v2637
      %v2950 = vunpack.c.l.b16 %v2638
      %v2951 = vunpack.c.h.b16 %v2638
      %v2952 = vunpack.c.l.b16 %v2639
      %v2953 = vunpack.c.h.b16 %v2639
      %v2954 = vunpack.c.l.b16 %v2640
      %v2955 = vunpack.c.h.b16 %v2640
      %v2956 = vunpack.c.l.b16 %v2641
      %v2957 = vunpack.c.h.b16 %v2641
      %v2958 = vunpack.c.l.b16 %v2642
      %v2959 = vunpack.c.h.b16 %v2642
      %v2960 = vunpack.c.l.b16 %v2643
      %v2961 = vunpack.c.h.b16 %v2643
      %v2962 = vunpack.c.l.b16 %v2644
      %v2963 = vunpack.c.h.b16 %v2644
      %v2964 = vunpack.c.l.b16 %v2645
      %v2965 = vunpack.c.h.b16 %v2645
      %v2966 = vunpack.c.l.b16 %v2646
      %v2967 = vunpack.c.h.b16 %v2646
      %v2968 = vunpack.c.l.b16 %v2647
      %v2969 = vunpack.c.h.b16 %v2647
      %v2970 = vunpack.c.l.b16 %v2648
      %v2971 = vunpack.c.h.b16 %v2648
      %v2972 = vunpack.c.l.b16 %v2649
      %v2973 = vunpack.c.h.b16 %v2649
      %v2974 = vunpack.c.l.b16 %v2650
      %v2975 = vunpack.c.h.b16 %v2650
      %v2976 = vunpack.c.l.b16 %v2651
      %v2977 = vunpack.c.h.b16 %v2651
      %v2978 = vunpack.c.l.b16 %v2652
      %v2979 = vunpack.c.h.b16 %v2652
      %v2980 = vunpack.c.l.b16 %v2653
      %v2981 = vunpack.c.h.b16 %v2653
      %v2982 = vunpack.c.l.b16 %v2654
      %v2983 = vunpack.c.h.b16 %v2654
      %v2984 = vunpack.c.l.b16 %v2655
      %v2985 = vunpack.c.h.b16 %v2655
      %v2986 = vunpack.c.l.b16 %v2656
      %v2987 = vunpack.c.h.b16 %v2656
      %v2988 = vunpack.c.l.b16 %v2657
      %v2989 = vunpack.c.h.b16 %v2657
      %v2990 = vunpack.c.l.b16 %v2658
      %v2991 = vunpack.c.h.b16 %v2658
      %v2992 = vunpack.c.l.b16 %v2659
      %v2993 = vunpack.c.h.b16 %v2659
      %v2994 = vunpack.c.l.b16 %v2660
      %v2995 = vunpack.c.h.b16 %v2660
      %v2996 = vunpack.c.l.b16 %v2661
      %v2997 = vunpack.c.h.b16 %v2661
      %v2998 = vunpack.c.l.b16 %v2662
      %v2999 = vunpack.c.h.b16 %v2662
      %v3000 = vunpack.c.l.b16 %v2663
      %v3001 = vunpack.c.h.b16 %v2663
      %v3002 = vunpack.c.l.b16 %v2664
      %v3003 = vunpack.c.h.b16 %v2664
      %v3004 = vunpack.c.l.b16 %v2665
      %v3005 = vunpack.c.h.b16 %v2665
      %v3006 = vunpack.c.l.b16 %v2666
      %v3007 = vunpack.c.h.b16 %v2666
      %v3008 = vunpack.c.l.b16 %v2667
      %v3009 = vunpack.c.h.b16 %v2667
      %v3010 = vunpack.c.l.b16 %v2668
      %v3011 = vunpack.c.h.b16 %v2668
      %v3012 = vunpack.c.l.b16 %v2669
      %v3013 = vunpack.c.h.b16 %v2669
      %v3014 = vunpack.c.l.b16 %v2670
      %v3015 = vunpack.c.h.b16 %v2670
      %v3016 = vunpack.c.l.b16 %v2671
      %v3017 = vunpack.c.h.b16 %v2671
      %v3018 = vunpack.c.l.b16 %v2672
      %v3019 = vunpack.c.h.b16 %v2672
      %v3020 = vunpack.c.l.b16 %v2673
      %v3021 = vunpack.c.h.b16 %v2673
      %v3022 = vunpack.c.l.b16 %v2674
      %v3023 = vunpack.c.h.b16 %v2674
      %v3024 = vunpack.c.l.b16 %v2675
      %v3025 = vunpack.c.h.b16 %v2675
      %v3026 = vunpack.c.l.b16 %v2676
      %v3027 = vunpack.c.h.b16 %v2676
      %v3028 = vunpack.c.l.b16 %v2677
      %v3029 = vunpack.c.h.b16 %v2677
      %v3030 = vunpack.c.l.b16 %v2678
      %v3031 = vunpack.c.h.b16 %v2678
      %v3032 = vunpack.c.l.b16 %v2679
      %v3033 = vunpack.c.h.b16 %v2679
      %v3034 = vunpack.c.l.b16 %v2680
      %v3035 = vunpack.c.h.b16 %v2680
      %v3036 = vunpack.c.l.b16 %v2681
      %v3037 = vunpack.c.h.b16 %v2681
      %v3038 = vunpack.c.l.b16 %v2682
      %v3039 = vunpack.c.h.b16 %v2682
      %v3040 = vunpack.c.l.b16 %v2683
      %v3041 = vunpack.c.h.b16 %v2683
      %v3042 = vunpack.c.l.b16 %v2684
      %v3043 = vunpack.c.h.b16 %v2684
      %v3044 = vunpack.c.l.b16 %v2685
      %v3045 = vunpack.c.h.b16 %v2685
      %v3046 = vunpack.c.l.b16 %v2686
      %v3047 = vunpack.c.h.b16 %v2686
      %v3048 = vunpack.c.l.b16 %v2687
      %v3049 = vunpack.c.h.b16 %v2687
      %v3050 = vunpack.c.l.b16 %v2688
      %v3051 = vunpack.c.h.b16 %v2688
      %v3052 = vunpack.c.l.b16 %v2689
      %v3053 = vunpack.c.h.b16 %v2689
      %v3054 = vunpack.c.l.b16 %v2690
      %v3055 = vunpack.c.h.b16 %v2690
      %v3056 = vunpack.c.l.b16 %v2691
      %v3057 = vunpack.c.h.b16 %v2691
      %v3058 = vunpack.c.l.b16 %v2692
      %v3059 = vunpack.c.h.b16 %v2692
      %v3060 = vunpack.c.l.b16 %v2693
      %v3061 = vunpack.c.h.b16 %v2693
      %v3062 = vunpack.c.l.b16 %v2694
      %v3063 = vunpack.c.h.b16 %v2694
      %v3064 = vunpack.c.l.b16 %v2695
      %v3065 = vunpack.c.h.b16 %v2695
      %v3066 = vunpack.c.l.b16 %v2696
      %v3067 = vunpack.c.h.b16 %v2696
      %v3068 = vunpack.c.l.b16 %v2697
      %v3069 = vunpack.c.h.b16 %v2697
      %v3070 = vunpack.c.l.b16 %v2698
      %v3071 = vunpack.c.h.b16 %v2698
      %v3072 = vunpack.c.l.b16 %v2699
      %v3073 = vunpack.c.h.b16 %v2699
      %v3074 = vunpack.c.l.b16 %v2700
      %v3075 = vunpack.c.h.b16 %v2700
      %v3076 = vunpack.c.l.b16 %v2701
      %v3077 = vunpack.c.h.b16 %v2701
      %v3078 = vunpack.c.l.b16 %v2702
      %v3079 = vunpack.c.h.b16 %v2702
      %v3080 = vunpack.c.l.b16 %v2703
      %v3081 = vunpack.c.h.b16 %v2703
      %v3082 = vunpack.c.l.b16 %v2704
      %v3083 = vunpack.c.h.b16 %v2704
      %v3084 = vunpack.c.l.b16 %v2705
      %v3085 = vunpack.c.h.b16 %v2705
      %v3086 = vunpack.c.l.b16 %v2706
      %v3087 = vunpack.c.h.b16 %v2706
      %v3088 = vunpack.c.l.b16 %v2707
      %v3089 = vunpack.c.h.b16 %v2707
      %v3090 = vunpack.c.l.b16 %v2708
      %v3091 = vunpack.c.h.b16 %v2708
      %v3092 = vunpack.c.l.b16 %v2709
      %v3093 = vunpack.c.h.b16 %v2709
      %v3094 = vunpack.c.l.b16 %v2710
      %v3095 = vunpack.c.h.b16 %v2710
      %v3096 = vunpack.c.l.b16 %v2711
      %v3097 = vunpack.c.h.b16 %v2711
      %v3098 = vunpack.c.l.b16 %v2712
      %v3099 = vunpack.c.h.b16 %v2712
      %v3100 = vunpack.c.l.b16 %v2713
      %v3101 = vunpack.c.h.b16 %v2713
      %v3102 = vunpack.c.l.b16 %v2714
      %v3103 = vunpack.c.h.b16 %v2714
      %v3104 = vunpack.c.l.b16 %v2715
      %v3105 = vunpack.c.h.b16 %v2715
      %v3106 = vunpack.c.l.b16 %v2716
      %v3107 = vunpack.c.h.b16 %v2716
      %v3108 = vunpack.c.l.b16 %v2717
      %v3109 = vunpack.c.h.b16 %v2717
      %v3110 = vunpack.c.l.b16 %v2718
      %v3111 = vunpack.c.h.b16 %v2718
      %v3112 = vunpack.c.l.b16 %v2719
      %v3113 = vunpack.c.h.b16 %v2719
      %v3114 = vunpack.c.l.b16 %v2720
      %v3115 = vunpack.c.h.b16 %v2720
      %v3116 = vunpack.c.l.b16 %v2721
      %v3117 = vunpack.c.h.b16 %v2721
      %v3118 = vunpack.c.l.b16 %v2722
      %v3119 = vunpack.c.h.b16 %v2722
      %v3120 = vunpack.c.l.b16 %v2723
      %v3121 = vunpack.c.h.b16 %v2723
      %v3122 = vunpack.c.l.b16 %v2724
      %v3123 = vunpack.c.h.b16 %v2724
      %v3124 = vunpack.c.l.b16 %v2725
      %v3125 = vunpack.c.h.b16 %v2725
      %v3126 = vunpack.c.l.b16 %v2726
      %v3127 = vunpack.c.h.b16 %v2726
      %v3128 = vunpack.c.l.b16 %v2727
      %v3129 = vunpack.c.h.b16 %v2727
      %v3130 = vunpack.c.l.b16 %v2728
      %v3131 = vunpack.c.h.b16 %v2728
      %v3132 = vunpack.c.l.b16 %v2729
      %v3133 = vunpack.c.h.b16 %v2729
      %v3134 = vunpack.c.l.b16 %v2730
      %v3135 = vunpack.c.h.b16 %v2730
      %v3136 = vunpack.c.l.b16 %v2731
      %v3137 = vunpack.c.h.b16 %v2731
      %v3138 = vunpack.c.l.b16 %v2732
      %v3139 = vunpack.c.h.b16 %v2732
      %v3140 = vunpack.c.l.b16 %v2733
      %v3141 = vunpack.c.h.b16 %v2733
      %v3142 = vunpack.c.l.b16 %v2734
      %v3143 = vunpack.c.h.b16 %v2734
      %v3144 = vunpack.c.l.b16 %v2735
      %v3145 = vunpack.c.h.b16 %v2735
      %v3146 = vunpack.c.l.b16 %v2736
      %v3147 = vunpack.c.h.b16 %v2736
      %v3148 = vunpack.c.l.b16 %v2737
      %v3149 = vunpack.c.h.b16 %v2737
      %v3150 = vunpack.c.l.b16 %v2738
      %v3151 = vunpack.c.h.b16 %v2738
      %v3152 = vunpack.c.l.b16 %v2739
      %v3153 = vunpack.c.h.b16 %v2739
      %v3154 = vunpack.c.l.b16 %v2740
      %v3155 = vunpack.c.h.b16 %v2740
      %v3156 = vunpack.c.l.b16 %v2741
      %v3157 = vunpack.c.h.b16 %v2741
      %v3158 = vunpack.c.l.b16 %v2742
      %v3159 = vunpack.c.h.b16 %v2742
      %v3160 = vunpack.c.l.b16 %v2743
      %v3161 = vunpack.c.h.b16 %v2743
      %v3162 = vunpack.c.l.b16 %v2744
      %v3163 = vunpack.c.h.b16 %v2744
      %v3164 = vunpack.c.l.b16 %v2745
      %v3165 = vunpack.c.h.b16 %v2745
      %v3166 = vunpack.c.l.b16 %v2746
      %v3167 = vunpack.c.h.b16 %v2746
      %v3168 = vunpack.c.l.b16 %v2747
      %v3169 = vunpack.c.h.b16 %v2747
      %v3170 = vunpack.c.l.b16 %v2748
      %v3171 = vunpack.c.h.b16 %v2748
      %v3172 = vunpack.c.l.b16 %v2749
      %v3173 = vunpack.c.h.b16 %v2749
      %v3174 = vunpack.c.l.b16 %v2750
      %v3175 = vunpack.c.h.b16 %v2750
      %v3176 = vunpack.c.l.b16 %v2751
      %v3177 = vunpack.c.h.b16 %v2751
      %v3178 = vunpack.c.l.b16 %v2752
      %v3179 = vunpack.c.h.b16 %v2752
      %v3180 = vunpack.c.l.b16 %v2753
      %v3181 = vunpack.c.h.b16 %v2753
      %v3182 = vunpack.c.l.b16 %v2754
      %v3183 = vunpack.c.h.b16 %v2754
      %v3184 = vunpack.c.l.b16 %v2755
      %v3185 = vunpack.c.h.b16 %v2755
      %v3186 = vunpack.c.l.b16 %v2756
      %v3187 = vunpack.c.h.b16 %v2756
      %v3188 = vunpack.c.l.b16 %v2757
      %v3189 = vunpack.c.h.b16 %v2757
      %v3190 = vunpack.c.l.b16 %v2758
      %v3191 = vunpack.c.h.b16 %v2758
      %v3192 = vunpack.c.l.b16 %v2759
      %v3193 = vunpack.c.h.b16 %v2759
      %v3194 = vunpack.c.l.b16 %v2760
      %v3195 = vunpack.c.h.b16 %v2760
      %v3196 = vunpack.c.l.b16 %v2761
      %v3197 = vunpack.c.h.b16 %v2761
      %v3198 = vunpack.c.l.b16 %v2762
      %v3199 = vunpack.c.h.b16 %v2762
      %v3200 = vunpack.c.l.b16 %v2763
      %v3201 = vunpack.c.h.b16 %v2763
      %v3202 = vunpack.c.l.b16 %v2764
      %v3203 = vunpack.c.h.b16 %v2764
      %v3204 = vunpack.c.l.b16 %v2765
      %v3205 = vunpack.c.h.b16 %v2765
      %v3206 = vunpack.c.l.b16 %v2766
      %v3207 = vunpack.c.h.b16 %v2766
      %v3208 = vunpack.c.l.b16 %v2767
      %v3209 = vunpack.c.h.b16 %v2767
      %v3210 = vunpack.c.l.b16 %v2768
      %v3211 = vunpack.c.h.b16 %v2768
      %v3212 = vunpack.c.l.b16 %v2769
      %v3213 = vunpack.c.h.b16 %v2769
      %v3214 = vunpack.c.l.b16 %v2770
      %v3215 = vunpack.c.h.b16 %v2770
      %v3216 = vunpack.c.l.b16 %v2771
      %v3217 = vunpack.c.h.b16 %v2771
      %v3218 = vunpack.c.l.b16 %v2772
      %v3219 = vunpack.c.h.b16 %v2772
      %v3220 = vunpack.c.l.b16 %v2773
      %v3221 = vunpack.c.h.b16 %v2773
      %v3222 = vunpack.c.l.b16 %v2774
      %v3223 = vunpack.c.h.b16 %v2774
      %v3224 = vunpack.c.l.b16 %v2775
      %v3225 = vunpack.c.h.b16 %v2775
      %v3226 = vunpack.c.l.b16 %v2776
      %v3227 = vunpack.c.h.b16 %v2776
      %v3228 = vunpack.c.l.b16 %v2777
      %v3229 = vunpack.c.h.b16 %v2777
      %v3230 = vpack.c.b16 %v2946, %v2942
      %v3231 = vpack.c.b16 %v2947, %v2943
      %v3232 = vpack.c.b16 %v2948, %v2944
      %v3233 = vpack.c.b16 %v2949, %v2945
      %v3234 = vpack.c.b16 %v2954, %v2950
      %v3235 = vpack.c.b16 %v2955, %v2951
      %v3236 = vpack.c.b16 %v2956, %v2952
      %v3237 = vpack.c.b16 %v2957, %v2953
      %v3238 = vpack.c.b16 %v2962, %v2958
      %v3239 = vpack.c.b16 %v2963, %v2959
      %v3240 = vpack.c.b16 %v2964, %v2960
      %v3241 = vpack.c.b16 %v2965, %v2961
      %v3242 = vpack.c.b16 %v2970, %v2966
      %v3243 = vpack.c.b16 %v2971, %v2967
      %v3244 = vpack.c.b16 %v2972, %v2968
      %v3245 = vpack.c.b16 %v2973, %v2969
      %v3246 = vpack.c.b16 %v2978, %v2974
      %v3247 = vpack.c.b16 %v2979, %v2975
      %v3248 = vpack.c.b16 %v2980, %v2976
      %v3249 = vpack.c.b16 %v2981, %v2977
      %v3250 = vpack.c.b16 %v2986, %v2982
      %v3251 = vpack.c.b16 %v2987, %v2983
      %v3252 = vpack.c.b16 %v2988, %v2984
      %v3253 = vpack.c.b16 %v2989, %v2985
      %v3254 = vpack.c.b16 %v2994, %v2990
      %v3255 = vpack.c.b16 %v2995, %v2991
      %v3256 = vpack.c.b16 %v2996, %v2992
      %v3257 = vpack.c.b16 %v2997, %v2993
      %v3258 = vpack.c.b16 %v3002, %v2998
      %v3259 = vpack.c.b16 %v3003, %v2999
      %v3260 = vpack.c.b16 %v3004, %v3000
      %v3261 = vpack.c.b16 %v3005, %v3001
      %v3262 = vpack.c.b16 %v3010, %v3006
      %v3263 = vpack.c.b16 %v3011, %v3007
      %v3264 = vpack.c.b16 %v3012, %v3008
      %v3265 = vpack.c.b16 %v3013, %v3009
      %v3266 = vpack.c.b16 %v3018, %v3014
      %v3267 = vpack.c.b16 %v3019, %v3015
      %v3268 = vpack.c.b16 %v3020, %v3016
      %v3269 = vpack.c.b16 %v3021, %v3017
      %v3270 = vpack.c.b16 %v3026, %v3022
      %v3271 = vpack.c.b16 %v3027, %v3023
      %v3272 = vpack.c.b16 %v3028, %v3024
      %v3273 = vpack.c.b16 %v3029, %v3025
      %v3274 = vpack.c.b16 %v3034, %v3030
      %v3275 = vpack.c.b16 %v3035, %v3031
      %v3276 = vpack.c.b16 %v3036, %v3032
      %v3277 = vpack.c.b16 %v3037, %v3033
      %v3278 = vpack.c.b16 %v3042, %v3038
      %v3279 = vpack.c.b16 %v3043, %v3039
      %v3280 = vpack.c.b16 %v3044, %v3040
      %v3281 = vpack.c.b16 %v3045, %v3041
      %v3282 = vpack.c.b16 %v3050, %v3046
      %v3283 = vpack.c.b16 %v3051, %v3047
      %v3284 = vpack.c.b16 %v3052, %v3048
      %v3285 = vpack.c.b16 %v3053, %v3049
      %v3286 = vpack.c.b16 %v3058, %v3054
      %v3287 = vpack.c.b16 %v3059, %v3055
      %v3288 = vpack.c.b16 %v3060, %v3056
      %v3289 = vpack.c.b16 %v3061, %v3057
      %v3290 = vpack.c.b16 %v3066, %v3062
      %v3291 = vpack.c.b16 %v3067, %v3063
      %v3292 = vpack.c.b16 %v3068, %v3064
      %v3293 = vpack.c.b16 %v3069, %v3065
      %v3294 = vpack.c.b16 %v3074, %v3070
      %v3295 = vpack.c.b16 %v3075, %v3071
      %v3296 = vpack.c.b16 %v3076, %v3072
      %v3297 = vpack.c.b16 %v3077, %v3073
      %v3298 = vpack.c.b16 %v3082, %v3078
      %v3299 = vpack.c.b16 %v3083, %v3079
      %v3300 = vpack.c.b16 %v3084, %v3080
      %v3301 = vpack.c.b16 %v3085, %v3081
      %v3302 = vpack.c.b16 %v3090, %v3086
      %v3303 = vpack.c.b16 %v3091, %v3087
      %v3304 = vpack.c.b16 %v3092, %v3088
      %v3305 = vpack.c.b16 %v3093, %v3089
      %v3306 = vpack.c.b16 %v3098, %v3094
      %v3307 = vpack.c.b16 %v3099, %v3095
      %v3308 = vpack.c.b16 %v3100, %v3096
      %v3309 = vpack.c.b16 %v3101, %v3097
      %v3310 = vpack.c.b16 %v3106, %v3102
      %v3311 = vpack.c.b16 %v3107, %v3103
      %v3312 = vpack.c.b16 %v3108, %v3104
      %v3313 = vpack.c.b16 %v3109, %v3105
      %v3314 = vpack.c.b16 %v3114, %v3110
      %v3315 = vpack.c.b16 %v3115, %v3111
      %v3316 = vpack.c.b16 %v3116, %v3112
      %v3317 = vpack.c.b16 %v3117, %v3113
      %v3318 = vpack.c.b16 %v3122, %v3118
      %v3319 = vpack.c.b16 %v3123, %v3119
      %v3320 = vpack.c.b16 %v3124, %v3120
      %v3321 = vpack.c.b16 %v3125, %v3121
      %v3322 = vpack.c.b16 %v3130, %v3126
      %v3323 = vpack.c.b16 %v3131, %v3127
      %v3324 = vpack.c.b16 %v3132, %v3128
      %v3325 = vpack.c.b16 %v3133, %v3129
      %v3326 = vpack.c.b16 %v3138, %v3134
      %v3327 = vpack.c.b16 %v3139, %v3135
      %v3328 = vpack.c.b16 %v3140, %v3136
      %v3329 = vpack.c.b16 %v3141, %v3137
      %v3330 = vpack.c.b16 %v3146, %v3142
      %v3331 = vpack.c.b16 %v3147, %v3143
      %v3332 = vpack.c.b16 %v3148, %v3144
      %v3333 = vpack.c.b16 %v3149, %v3145
      %v3334 = vpack.c.b16 %v3154, %v3150
      %v3335 = vpack.c.b16 %v3155, %v3151
      %v3336 = vpack.c.b16 %v3156, %v3152
      %v3337 = vpack.c.b16 %v3157, %v3153
      %v3338 = vpack.c.b16 %v3162, %v3158
      %v3339 = vpack.c.b16 %v3163, %v3159
      %v3340 = vpack.c.b16 %v3164, %v3160
      %v3341 = vpack.c.b16 %v3165, %v3161
      %v3342 = vpack.c.b16 %v3170, %v3166
      %v3343 = vpack.c.b16 %v3171, %v3167
      %v3344 = vpack.c.b16 %v3172, %v3168
      %v3345 = vpack.c.b16 %v3173, %v3169
      %v3346 = vpack.c.b16 %v3178, %v3174
      %v3347 = vpack.c.b16 %v3179, %v3175
      %v3348 = vpack.c.b16 %v3180, %v3176
      %v3349 = vpack.c.b16 %v3181, %v3177
      %v3350 = vpack.c.b16 %v3186, %v3182
      %v3351 = vpack.c.b16 %v3187, %v3183
      %v3352 = vpack.c.b16 %v3188, %v3184
      %v3353 = vpack.c.b16 %v3189, %v3185
      %v3354 = vpack.c.b16 %v3194, %v3190
      %v3355 = vpack.c.b16 %v3195, %v3191
      %v3356 = vpack.c.b16 %v3196, %v3192
      %v3357 = vpack.c.b16 %v3197, %v3193
      %v3358 = vpack.c.b16 %v3202, %v3198
      %v3359 = vpack.c.b16 %v3203, %v3199
      %v3360 = vpack.c.b16 %v3204, %v3200
      %v3361 = vpack.c.b16 %v3205, %v3201
      %v3362 = vpack.c.b16 %v3210, %v3206
      %v3363 = vpack.c.b16 %v3211, %v3207
      %v3364 = vpack.c.b16 %v3212, %v3208
      %v3365 = vpack.c.b16 %v3213, %v3209
      %v3366 = vpack.c.b16 %v3218, %v3214
      %v3367 = vpack.c.b16 %v3219, %v3215
      %v3368 = vpack.c.b16 %v3220, %v3216
      %v3369 = vpack.c.b16 %v3221, %v3217
      %v3370 = vpack.c.b16 %v3226, %v3222
      %v3371 = vpack.c.b16 %v3227, %v3223
      %v3372 = vpack.c.b16 %v3228, %v3224
      %v3373 = vpack.c.b16 %v3229, %v3225
      %v3519 = vsel %vm1343, %v2793, 0
      %3521 = vmatpush.bf16.msra.mxu0 %v3258
      %3522 = vmatpush.bf16.msra.mxu0 %v3254
      %3523 = vmatpush.bf16.msra.mxu0 %v3250
      %3524 = vmatpush.bf16.msra.mxu0 %v3246
      %3525 = vmatpush.bf16.msra.mxu0 %v3242
      %3526 = vmatpush.bf16.msra.mxu0 %v3238
      %3527 = vmatpush.bf16.msra.mxu0 %v3234
      %3528 = vmatpush.bf16.msra.mxu0 %v3230
      %3529 = vmatmul.bf16.gmra.mxu0 %v2781
      %v3530 = vpop.f32.mrf.mxu0
      %v3531 = vadd.f32 0.0, %v3530
      %v3532 = vpop.f32.mrf.mxu0
      %v3533 = vadd.f32 0.0, %v3532
      %3534 = vdwg.mxu0
      %3535 = vmatpush.bf16.msra.mxu0 %v3290
      %3536 = vmatpush.bf16.msra.mxu0 %v3286
      %3537 = vmatpush.bf16.msra.mxu0 %v3282
      %3538 = vmatpush.bf16.msra.mxu0 %v3278
      %3539 = vmatpush.bf16.msra.mxu0 %v3274
      %3540 = vmatpush.bf16.msra.mxu0 %v3270
      %3541 = vmatpush.bf16.msra.mxu0 %v3266
      %3542 = vmatpush.bf16.msra.mxu0 %v3262
      %3543 = vmatmul.bf16.gmra.mxu0 %v2784
      %v3544 = vpop.f32.mrf.mxu0
      %v3545 = vadd.f32 %v3531, %v3544
      %v3546 = vpop.f32.mrf.mxu0
      %v3547 = vadd.f32 %v3533, %v3546
      %3548 = vdwg.mxu0
      %3549 = vmatpush.bf16.msra.mxu0 %v3322
      %3550 = vmatpush.bf16.msra.mxu0 %v3318
      %3551 = vmatpush.bf16.msra.mxu0 %v3314
      %3552 = vmatpush.bf16.msra.mxu0 %v3310
      %3553 = vmatpush.bf16.msra.mxu0 %v3306
      %3554 = vmatpush.bf16.msra.mxu0 %v3302
      %3555 = vmatpush.bf16.msra.mxu0 %v3298
      %3556 = vmatpush.bf16.msra.mxu0 %v3294
      %3557 = vmatmul.bf16.gmra.mxu0 %v2787
      %v3558 = vpop.f32.mrf.mxu0
      %v3559 = vadd.f32 %v3545, %v3558
      %v3560 = vpop.f32.mrf.mxu0
      %v3561 = vadd.f32 %v3547, %v3560
      %3562 = vdwg.mxu0
      %3563 = vmatpush.bf16.msra.mxu0 %v3354
      %3564 = vmatpush.bf16.msra.mxu0 %v3350
      %3565 = vmatpush.bf16.msra.mxu0 %v3346
      %3566 = vmatpush.bf16.msra.mxu0 %v3342
      %3567 = vmatpush.bf16.msra.mxu0 %v3338
      %3568 = vmatpush.bf16.msra.mxu0 %v3334
      %3569 = vmatpush.bf16.msra.mxu0 %v3330
      %3570 = vmatpush.bf16.msra.mxu0 %v3326
      %3571 = vmatmul.bf16.gmra.mxu0 %v2790
      %v3572 = vpop.f32.mrf.mxu0
      %v3573 = vadd.f32 %v3559, %v3572
      %v3574 = vpop.f32.mrf.mxu0
      %v3575 = vadd.f32 %v3561, %v3574
      %3576 = vdwg.mxu0
      %3577 = vmatpush.bf16.msra.mxu0 0
      %3578 = vmatpush.bf16.msra.mxu0 0
      %3579 = vmatpush.bf16.msra.mxu0 0
      %3580 = vmatpush.bf16.msra.mxu0 0
      %3581 = vmatpush.bf16.msra.mxu0 %v3370
      %3582 = vmatpush.bf16.msra.mxu0 %v3366
      %3583 = vmatpush.bf16.msra.mxu0 %v3362
      %3584 = vmatpush.bf16.msra.mxu0 %v3358
      %3585 = vmatmul.bf16.gmra.mxu0 %v3519
      %v3586 = vpop.f32.mrf.mxu0
      %v3587 = vadd.f32 %v3573, %v3586
      %v3588 = vpop.f32.mrf.mxu0
      %v3589 = vadd.f32 %v3575, %v3588
      %3590 = vdwg.mxu0
      %3591 = vmatpush.bf16.msra.mxu0 %v3259
      %3592 = vmatpush.bf16.msra.mxu0 %v3255
      %3593 = vmatpush.bf16.msra.mxu0 %v3251
      %3594 = vmatpush.bf16.msra.mxu0 %v3247
      %3595 = vmatpush.bf16.msra.mxu0 %v3243
      %3596 = vmatpush.bf16.msra.mxu0 %v3239
      %3597 = vmatpush.bf16.msra.mxu0 %v3235
      %3598 = vmatpush.bf16.msra.mxu0 %v3231
      %3599 = vmatmul.bf16.gmra.mxu0 %v2781
      %v3600 = vpop.f32.mrf.mxu0
      %v3601 = vadd.f32 0.0, %v3600
      %v3602 = vpop.f32.mrf.mxu0
      %v3603 = vadd.f32 0.0, %v3602
      %3604 = vdwg.mxu0
      %3605 = vmatpush.bf16.msra.mxu0 %v3291
      %3606 = vmatpush.bf16.msra.mxu0 %v3287
      %3607 = vmatpush.bf16.msra.mxu0 %v3283
      %3608 = vmatpush.bf16.msra.mxu0 %v3279
      %3609 = vmatpush.bf16.msra.mxu0 %v3275
      %3610 = vmatpush.bf16.msra.mxu0 %v3271
      %3611 = vmatpush.bf16.msra.mxu0 %v3267
      %3612 = vmatpush.bf16.msra.mxu0 %v3263
      %3613 = vmatmul.bf16.gmra.mxu0 %v2784
      %v3614 = vpop.f32.mrf.mxu0
      %v3615 = vadd.f32 %v3601, %v3614
      %v3616 = vpop.f32.mrf.mxu0
      %v3617 = vadd.f32 %v3603, %v3616
      %3618 = vdwg.mxu0
      %3619 = vmatpush.bf16.msra.mxu0 %v3323
      %3620 = vmatpush.bf16.msra.mxu0 %v3319
      %3621 = vmatpush.bf16.msra.mxu0 %v3315
      %3622 = vmatpush.bf16.msra.mxu0 %v3311
      %3623 = vmatpush.bf16.msra.mxu0 %v3307
      %3624 = vmatpush.bf16.msra.mxu0 %v3303
      %3625 = vmatpush.bf16.msra.mxu0 %v3299
      %3626 = vmatpush.bf16.msra.mxu0 %v3295
      %3627 = vmatmul.bf16.gmra.mxu0 %v2787
      %v3628 = vpop.f32.mrf.mxu0
      %v3629 = vadd.f32 %v3615, %v3628
      %v3630 = vpop.f32.mrf.mxu0
      %v3631 = vadd.f32 %v3617, %v3630
      %3632 = vdwg.mxu0
      %3633 = vmatpush.bf16.msra.mxu0 %v3355
      %3634 = vmatpush.bf16.msra.mxu0 %v3351
      %3635 = vmatpush.bf16.msra.mxu0 %v3347
      %3636 = vmatpush.bf16.msra.mxu0 %v3343
      %3637 = vmatpush.bf16.msra.mxu0 %v3339
      %3638 = vmatpush.bf16.msra.mxu0 %v3335
      %3639 = vmatpush.bf16.msra.mxu0 %v3331
      %3640 = vmatpush.bf16.msra.mxu0 %v3327
      %3641 = vmatmul.bf16.gmra.mxu0 %v2790
      %v3642 = vpop.f32.mrf.mxu0
      %v3643 = vadd.f32 %v3629, %v3642
      %v3644 = vpop.f32.mrf.mxu0
      %v3645 = vadd.f32 %v3631, %v3644
      %3646 = vdwg.mxu0
      %3647 = vmatpush.bf16.msra.mxu0 0
      %3648 = vmatpush.bf16.msra.mxu0 0
      %3649 = vmatpush.bf16.msra.mxu0 0
      %3650 = vmatpush.bf16.msra.mxu0 0
      %3651 = vmatpush.bf16.msra.mxu0 %v3371
      %3652 = vmatpush.bf16.msra.mxu0 %v3367
      %3653 = vmatpush.bf16.msra.mxu0 %v3363
      %3654 = vmatpush.bf16.msra.mxu0 %v3359
      %3655 = vmatmul.bf16.gmra.mxu0 %v3519
      %v3656 = vpop.f32.mrf.mxu0
      %v3657 = vadd.f32 %v3643, %v3656
      %v3658 = vpop.f32.mrf.mxu0
      %v3659 = vadd.f32 %v3645, %v3658
      %3660 = vdwg.mxu0
      %3661 = vmatpush.bf16.msra.mxu0 %v3260
      %3662 = vmatpush.bf16.msra.mxu0 %v3256
      %3663 = vmatpush.bf16.msra.mxu0 %v3252
      %3664 = vmatpush.bf16.msra.mxu0 %v3248
      %3665 = vmatpush.bf16.msra.mxu0 %v3244
      %3666 = vmatpush.bf16.msra.mxu0 %v3240
      %3667 = vmatpush.bf16.msra.mxu0 %v3236
      %3668 = vmatpush.bf16.msra.mxu0 %v3232
      %3669 = vmatmul.bf16.gmra.mxu0 %v2781
      %v3670 = vpop.f32.mrf.mxu0
      %v3671 = vadd.f32 0.0, %v3670
      %v3672 = vpop.f32.mrf.mxu0
      %v3673 = vadd.f32 0.0, %v3672
      %3674 = vdwg.mxu0
      %3675 = vmatpush.bf16.msra.mxu0 %v3292
      %3676 = vmatpush.bf16.msra.mxu0 %v3288
      %3677 = vmatpush.bf16.msra.mxu0 %v3284
      %3678 = vmatpush.bf16.msra.mxu0 %v3280
      %3679 = vmatpush.bf16.msra.mxu0 %v3276
      %3680 = vmatpush.bf16.msra.mxu0 %v3272
      %3681 = vmatpush.bf16.msra.mxu0 %v3268
      %3682 = vmatpush.bf16.msra.mxu0 %v3264
      %3683 = vmatmul.bf16.gmra.mxu0 %v2784
      %v3684 = vpop.f32.mrf.mxu0
      %v3685 = vadd.f32 %v3671, %v3684
      %v3686 = vpop.f32.mrf.mxu0
      %v3687 = vadd.f32 %v3673, %v3686
      %3688 = vdwg.mxu0
      %3689 = vmatpush.bf16.msra.mxu0 %v3324
      %3690 = vmatpush.bf16.msra.mxu0 %v3320
      %3691 = vmatpush.bf16.msra.mxu0 %v3316
      %3692 = vmatpush.bf16.msra.mxu0 %v3312
      %3693 = vmatpush.bf16.msra.mxu0 %v3308
      %3694 = vmatpush.bf16.msra.mxu0 %v3304
      %3695 = vmatpush.bf16.msra.mxu0 %v3300
      %3696 = vmatpush.bf16.msra.mxu0 %v3296
      %3697 = vmatmul.bf16.gmra.mxu0 %v2787
      %v3698 = vpop.f32.mrf.mxu0
      %v3699 = vadd.f32 %v3685, %v3698
      %v3700 = vpop.f32.mrf.mxu0
      %v3701 = vadd.f32 %v3687, %v3700
      %3702 = vdwg.mxu0
      %3703 = vmatpush.bf16.msra.mxu0 %v3356
      %3704 = vmatpush.bf16.msra.mxu0 %v3352
      %3705 = vmatpush.bf16.msra.mxu0 %v3348
      %3706 = vmatpush.bf16.msra.mxu0 %v3344
      %3707 = vmatpush.bf16.msra.mxu0 %v3340
      %3708 = vmatpush.bf16.msra.mxu0 %v3336
      %3709 = vmatpush.bf16.msra.mxu0 %v3332
      %3710 = vmatpush.bf16.msra.mxu0 %v3328
      %3711 = vmatmul.bf16.gmra.mxu0 %v2790
      %v3712 = vpop.f32.mrf.mxu0
      %v3713 = vadd.f32 %v3699, %v3712
      %v3714 = vpop.f32.mrf.mxu0
      %v3715 = vadd.f32 %v3701, %v3714
      %3716 = vdwg.mxu0
      %3717 = vmatpush.bf16.msra.mxu0 0
      %3718 = vmatpush.bf16.msra.mxu0 0
      %3719 = vmatpush.bf16.msra.mxu0 0
      %3720 = vmatpush.bf16.msra.mxu0 0
      %3721 = vmatpush.bf16.msra.mxu0 %v3372
      %3722 = vmatpush.bf16.msra.mxu0 %v3368
      %3723 = vmatpush.bf16.msra.mxu0 %v3364
      %3724 = vmatpush.bf16.msra.mxu0 %v3360
      %3725 = vmatmul.bf16.gmra.mxu0 %v3519
      %v3726 = vpop.f32.mrf.mxu0
      %v3727 = vadd.f32 %v3713, %v3726
      %v3728 = vpop.f32.mrf.mxu0
      %v3729 = vadd.f32 %v3715, %v3728
      %3730 = vdwg.mxu0
      %3731 = vmatpush.bf16.msra.mxu0 %v3261
      %3732 = vmatpush.bf16.msra.mxu0 %v3257
      %3733 = vmatpush.bf16.msra.mxu0 %v3253
      %3734 = vmatpush.bf16.msra.mxu0 %v3249
      %3735 = vmatpush.bf16.msra.mxu0 %v3245
      %3736 = vmatpush.bf16.msra.mxu0 %v3241
      %3737 = vmatpush.bf16.msra.mxu0 %v3237
      %3738 = vmatpush.bf16.msra.mxu0 %v3233
      %3739 = vmatmul.bf16.gmra.mxu0 %v2781
      %v3740 = vpop.f32.mrf.mxu0
      %v3741 = vadd.f32 0.0, %v3740
      %v3742 = vpop.f32.mrf.mxu0
      %v3743 = vadd.f32 0.0, %v3742
      %3744 = vdwg.mxu0
      %3745 = vmatpush.bf16.msra.mxu0 %v3293
      %3746 = vmatpush.bf16.msra.mxu0 %v3289
      %3747 = vmatpush.bf16.msra.mxu0 %v3285
      %3748 = vmatpush.bf16.msra.mxu0 %v3281
      %3749 = vmatpush.bf16.msra.mxu0 %v3277
      %3750 = vmatpush.bf16.msra.mxu0 %v3273
      %3751 = vmatpush.bf16.msra.mxu0 %v3269
      %3752 = vmatpush.bf16.msra.mxu0 %v3265
      %3753 = vmatmul.bf16.gmra.mxu0 %v2784
      %v3754 = vpop.f32.mrf.mxu0
      %v3755 = vadd.f32 %v3741, %v3754
      %v3756 = vpop.f32.mrf.mxu0
      %v3757 = vadd.f32 %v3743, %v3756
      %3758 = vdwg.mxu0
      %3759 = vmatpush.bf16.msra.mxu0 %v3325
      %3760 = vmatpush.bf16.msra.mxu0 %v3321
      %3761 = vmatpush.bf16.msra.mxu0 %v3317
      %3762 = vmatpush.bf16.msra.mxu0 %v3313
      %3763 = vmatpush.bf16.msra.mxu0 %v3309
      %3764 = vmatpush.bf16.msra.mxu0 %v3305
      %3765 = vmatpush.bf16.msra.mxu0 %v3301
      %3766 = vmatpush.bf16.msra.mxu0 %v3297
      %3767 = vmatmul.bf16.gmra.mxu0 %v2787
      %v3768 = vpop.f32.mrf.mxu0
      %v3769 = vadd.f32 %v3755, %v3768
      %v3770 = vpop.f32.mrf.mxu0
      %v3771 = vadd.f32 %v3757, %v3770
      %3772 = vdwg.mxu0
      %3773 = vmatpush.bf16.msra.mxu0 %v3357
      %3774 = vmatpush.bf16.msra.mxu0 %v3353
      %3775 = vmatpush.bf16.msra.mxu0 %v3349
      %3776 = vmatpush.bf16.msra.mxu0 %v3345
      %3777 = vmatpush.bf16.msra.mxu0 %v3341
      %3778 = vmatpush.bf16.msra.mxu0 %v3337
      %3779 = vmatpush.bf16.msra.mxu0 %v3333
      %3780 = vmatpush.bf16.msra.mxu0 %v3329
      %3781 = vmatmul.bf16.gmra.mxu0 %v2790
      %v3782 = vpop.f32.mrf.mxu0
      %v3783 = vadd.f32 %v3769, %v3782
      %v3784 = vpop.f32.mrf.mxu0
      %v3785 = vadd.f32 %v3771, %v3784
      %3786 = vdwg.mxu0
      %3787 = vmatpush.bf16.msra.mxu0 0
      %3788 = vmatpush.bf16.msra.mxu0 0
      %3789 = vmatpush.bf16.msra.mxu0 0
      %3790 = vmatpush.bf16.msra.mxu0 0
      %3791 = vmatpush.bf16.msra.mxu0 %v3373
      %3792 = vmatpush.bf16.msra.mxu0 %v3369
      %3793 = vmatpush.bf16.msra.mxu0 %v3365
      %3794 = vmatpush.bf16.msra.mxu0 %v3361
      %3795 = vmatmul.bf16.gmra.mxu0 %v3519
      %v3796 = vpop.f32.mrf.mxu0
      %v3797 = vadd.f32 %v3783, %v3796
      %v3798 = vpop.f32.mrf.mxu0
      %v3799 = vadd.f32 %v3785, %v3798
      %3800 = vdwg.mxu0
      %v3801 = vadd.f32 %v2419, %v3587
      %v3802 = vadd.f32 %v2489, %v3657
      %v3803 = vadd.f32 %v2559, %v3727
      %v3804 = vadd.f32 %v2629, %v3797
      %v3805 = vadd.f32 %v2421, %v3589
      %v3806 = vadd.f32 %v2491, %v3659
      %v3807 = vadd.f32 %v2561, %v3729
      %v3808 = vadd.f32 %v2631, %v3799
      %v3809 = vld [vmem:[%s2] sm:$0xf]
      %v3811 = vperm.slane %v3809, 0
      %v3812 = vperm.slane %v3809, 1
      %v3813 = vperm.slane %v3809, 2
      %v3814 = vperm.slane %v3809, 3
      %v3819 = vadd.f32 %v3801, %v3811
      %v3820 = vadd.f32 %v3802, %v3812
      %v3821 = vadd.f32 %v3803, %v3813
      %v3822 = vadd.f32 %v3804, %v3814
      %v3823 = vadd.f32 %v3805, %v3811
      %v3824 = vadd.f32 %v3806, %v3812
      %v3825 = vadd.f32 %v3807, %v3813
      %v3826 = vadd.f32 %v3808, %v3814
      %v3827 = vmax.f32 %v3819, 0.0
      %v3828 = vmax.f32 %v3820, 0.0
      %v3829 = vmax.f32 %v3821, 0.0
      %v3830 = vmax.f32 %v3822, 0.0
      %v3831 = vmax.f32 %v3823, 0.0
      %v3832 = vmax.f32 %v3824, 0.0
      %v3833 = vmax.f32 %v3825, 0.0
      %v3834 = vmax.f32 %v3826, 0.0
      %v3835 = vpack.c.bf16 %v3831, %v3827
      %v3836 = vpack.c.bf16 %v3832, %v3828
      %v3837 = vpack.c.bf16 %v3833, %v3829
      %v3838 = vpack.c.bf16 %v3834, %v3830
      %v3839 = vld [vmem:[%s3] sm:$0xff]
      %v3840 = vld [vmem:[%s3 + $0x8] sm:$0xff]
      %v3841 = vld [vmem:[%s3 + $0x10] sm:$0xff]
      %v3842 = vld [vmem:[%s3 + $0x18] sm:$0xff]
      %v3843 = vld [vmem:[%s3 + $0x20] sm:$0xff]
      %v3844 = vld [vmem:[%s3 + $0x28] sm:$0xff]
      %v3845 = vld [vmem:[%s3 + $0x30] sm:$0xff]
      %v3846 = vld [vmem:[%s3 + $0x38] sm:$0xff]
      %v3847 = vld [vmem:[%s3 + $0x40] sm:$0xff]
      %v3848 = vld [vmem:[%s3 + $0x48] sm:$0xff]
      %v3849 = vld [vmem:[%s3 + $0x50] sm:$0xff]
      %v3850 = vld [vmem:[%s3 + $0x58] sm:$0xff]
      %v3851 = vld [vmem:[%s3 + $0x60] sm:$0xff]
      %v3852 = vld [vmem:[%s3 + $0x68] sm:$0xff]
      %v3853 = vld [vmem:[%s3 + $0x70] sm:$0xff]
      %v3854 = vld [vmem:[%s3 + $0x78] sm:$0xff]
      %v3855 = vld [vmem:[%s3 + $0x80] sm:$0xff]
      %v3856 = vld [vmem:[%s3 + $0x88] sm:$0xff]
      %v3857 = vld [vmem:[%s3 + $0x90] sm:$0xff]
      %v3858 = vld [vmem:[%s3 + $0x98] sm:$0xff]
      %v3859 = vld [vmem:[%s3 + $0xa0] sm:$0xff]
      %v3860 = vld [vmem:[%s3 + $0xa8] sm:$0xff]
      %v3861 = vld [vmem:[%s3 + $0xb0] sm:$0xff]
      %v3862 = vld [vmem:[%s3 + $0xb8] sm:$0xff]
      %v3863 = vld [vmem:[%s3 + $0xc0] sm:$0xff]
      %v3864 = vld [vmem:[%s3 + $0xc8] sm:$0xff]
      %v3865 = vld [vmem:[%s3 + $0xd0] sm:$0xff]
      %v3866 = vld [vmem:[%s3 + $0xd8] sm:$0xff]
      %v3867 = vld [vmem:[%s3 + $0xe0] sm:$0xff]
      %v3868 = vld [vmem:[%s3 + $0xe8] sm:$0xff]
      %v3869 = vld [vmem:[%s3 + $0xf0] sm:$0xff]
      %v3870 = vld [vmem:[%s3 + $0xf8] sm:$0xff]
      %v3871 = vld [vmem:[%s3 + $0x100] sm:$0xff]
      %v3872 = vld [vmem:[%s3 + $0x108] sm:$0xff]
      %v3873 = vld [vmem:[%s3 + $0x110] sm:$0xff]
      %v3874 = vld [vmem:[%s3 + $0x118] sm:$0xff]
      %v3875 = vld [vmem:[%s3 + $0x120] sm:$0xff]
      %v3876 = vld [vmem:[%s3 + $0x128] sm:$0xff]
      %v3877 = vld [vmem:[%s3 + $0x130] sm:$0xff]
      %v3878 = vld [vmem:[%s3 + $0x138] sm:$0xff]
      %v3879 = vld [vmem:[%s3 + $0x140] sm:$0xff]
      %v3880 = vld [vmem:[%s3 + $0x148] sm:$0xff]
      %v3881 = vld [vmem:[%s3 + $0x150] sm:$0xff]
      %v3882 = vld [vmem:[%s3 + $0x158] sm:$0xff]
      %v3883 = vld [vmem:[%s3 + $0x160] sm:$0xff]
      %v3884 = vld [vmem:[%s3 + $0x168] sm:$0xff]
      %v3885 = vld [vmem:[%s3 + $0x170] sm:$0xff]
      %v3886 = vld [vmem:[%s3 + $0x178] sm:$0xff]
      %v3887 = vld [vmem:[%s3 + $0x180] sm:$0xff]
      %v3888 = vld [vmem:[%s3 + $0x188] sm:$0xff]
      %v3889 = vld [vmem:[%s3 + $0x190] sm:$0xff]
      %v3890 = vld [vmem:[%s3 + $0x198] sm:$0xff]
      %v3891 = vld [vmem:[%s3 + $0x1a0] sm:$0xff]
      %v3892 = vld [vmem:[%s3 + $0x1a8] sm:$0xff]
      %v3893 = vld [vmem:[%s3 + $0x1b0] sm:$0xff]
      %v3894 = vld [vmem:[%s3 + $0x1b8] sm:$0xff]
      %v3895 = vld [vmem:[%s3 + $0x1c0] sm:$0xff]
      %v3896 = vld [vmem:[%s3 + $0x1c8] sm:$0xff]
      %v3897 = vld [vmem:[%s3 + $0x1d0] sm:$0xff]
      %v3898 = vld [vmem:[%s3 + $0x1d8] sm:$0xff]
      %v3899 = vld [vmem:[%s3 + $0x1e0] sm:$0xff]
      %v3900 = vld [vmem:[%s3 + $0x1e8] sm:$0xff]
      %v3901 = vld [vmem:[%s3 + $0x1f0] sm:$0xff]
      %v3902 = vld [vmem:[%s3 + $0x1f8] sm:$0xff]
      %v3903 = vld [vmem:[%s3 + $0x200] sm:$0xff]
      %v3904 = vld [vmem:[%s3 + $0x208] sm:$0xff]
      %v3905 = vld [vmem:[%s3 + $0x210] sm:$0xff]
      %v3906 = vld [vmem:[%s3 + $0x218] sm:$0xff]
      %v3907 = vld [vmem:[%s3 + $0x220] sm:$0xff]
      %v3908 = vld [vmem:[%s3 + $0x228] sm:$0xff]
      %v3909 = vld [vmem:[%s3 + $0x230] sm:$0xff]
      %v3910 = vld [vmem:[%s3 + $0x238] sm:$0xff]
      %v3911 = vld [vmem:[%s3 + $0x240] sm:$0xff]
      %v3912 = vld [vmem:[%s3 + $0x248] sm:$0xff]
      %v3913 = vld [vmem:[%s3 + $0x250] sm:$0xff]
      %v3914 = vld [vmem:[%s3 + $0x258] sm:$0xff]
      %v3915 = vld [vmem:[%s3 + $0x260] sm:$0xff]
      %v3916 = vld [vmem:[%s3 + $0x268] sm:$0xff]
      %v3917 = vld [vmem:[%s3 + $0x270] sm:$0xff]
      %v3918 = vld [vmem:[%s3 + $0x278] sm:$0xff]
      %v3919 = vld [vmem:[%s3 + $0x280] sm:$0xff]
      %v3920 = vld [vmem:[%s3 + $0x288] sm:$0xff]
      %v3921 = vld [vmem:[%s3 + $0x290] sm:$0xff]
      %v3922 = vld [vmem:[%s3 + $0x298] sm:$0xff]
      %v3923 = vld [vmem:[%s3 + $0x2a0] sm:$0xff]
      %v3924 = vld [vmem:[%s3 + $0x2a8] sm:$0xff]
      %v3925 = vld [vmem:[%s3 + $0x2b0] sm:$0xff]
      %v3926 = vld [vmem:[%s3 + $0x2b8] sm:$0xff]
      %v3927 = vld [vmem:[%s3 + $0x2c0] sm:$0xff]
      %v3928 = vld [vmem:[%s3 + $0x2c8] sm:$0xff]
      %v3929 = vld [vmem:[%s3 + $0x2d0] sm:$0xff]
      %v3930 = vld [vmem:[%s3 + $0x2d8] sm:$0xff]
      %v3931 = vld [vmem:[%s3 + $0x2e0] sm:$0xff]
      %v3932 = vld [vmem:[%s3 + $0x2e8] sm:$0xff]
      %v3933 = vld [vmem:[%s3 + $0x2f0] sm:$0xff]
      %v3934 = vld [vmem:[%s3 + $0x2f8] sm:$0xff]
      %v3935 = vld [vmem:[%s3 + $0x300] sm:$0xff]
      %v3936 = vld [vmem:[%s3 + $0x308] sm:$0xff]
      %v3937 = vld [vmem:[%s3 + $0x310] sm:$0xff]
      %v3938 = vld [vmem:[%s3 + $0x318] sm:$0xff]
      %v3939 = vld [vmem:[%s3 + $0x320] sm:$0xff]
      %v3940 = vld [vmem:[%s3 + $0x328] sm:$0xff]
      %v3941 = vld [vmem:[%s3 + $0x330] sm:$0xff]
      %v3942 = vld [vmem:[%s3 + $0x338] sm:$0xff]
      %v3943 = vld [vmem:[%s3 + $0x340] sm:$0xff]
      %v3944 = vld [vmem:[%s3 + $0x348] sm:$0xff]
      %v3945 = vld [vmem:[%s3 + $0x350] sm:$0xff]
      %v3946 = vld [vmem:[%s3 + $0x358] sm:$0xff]
      %v3947 = vld [vmem:[%s3 + $0x360] sm:$0xff]
      %v3948 = vld [vmem:[%s3 + $0x368] sm:$0xff]
      %v3949 = vld [vmem:[%s3 + $0x370] sm:$0xff]
      %v3950 = vld [vmem:[%s3 + $0x378] sm:$0xff]
      %v3951 = vld [vmem:[%s3 + $0x380] sm:$0xff]
      %v3952 = vld [vmem:[%s3 + $0x388] sm:$0xff]
      %v3953 = vld [vmem:[%s3 + $0x390] sm:$0xff]
      %v3954 = vld [vmem:[%s3 + $0x398] sm:$0xff]
      %v3955 = vld [vmem:[%s3 + $0x3a0] sm:$0xff]
      %v3956 = vld [vmem:[%s3 + $0x3a8] sm:$0xff]
      %v3957 = vld [vmem:[%s3 + $0x3b0] sm:$0xff]
      %v3958 = vld [vmem:[%s3 + $0x3b8] sm:$0xff]
      %v3959 = vld [vmem:[%s3 + $0x3c0] sm:$0xff]
      %v3960 = vld [vmem:[%s3 + $0x3c8] sm:$0xff]
      %v3961 = vld [vmem:[%s3 + $0x3d0] sm:$0xff]
      %v3962 = vld [vmem:[%s3 + $0x3d8] sm:$0xff]
      %v3963 = vld [vmem:[%s3 + $0x3e0] sm:$0xff]
      %v3964 = vld [vmem:[%s3 + $0x3e8] sm:$0xff]
      %v3965 = vld [vmem:[%s3 + $0x3f0] sm:$0xff]
      %v3966 = vld [vmem:[%s3 + $0x3f8] sm:$0xff]
      %v3967 = vld [vmem:[%s4] sm:$0xf]
      %v3969 = vperm.slane %v3967, 0
      %v3970 = vperm.slane %v3967, 1
      %v3971 = vperm.slane %v3967, 2
      %v3972 = vperm.slane %v3967, 3
      %v4105 = vunpack.c.l.b16 %v3839
      %v4106 = vunpack.c.h.b16 %v3839
      %v4107 = vunpack.c.l.b16 %v3840
      %v4108 = vunpack.c.h.b16 %v3840
      %v4109 = vunpack.c.l.b16 %v3841
      %v4110 = vunpack.c.h.b16 %v3841
      %v4111 = vunpack.c.l.b16 %v3842
      %v4112 = vunpack.c.h.b16 %v3842
      %v4113 = vunpack.c.l.b16 %v3843
      %v4114 = vunpack.c.h.b16 %v3843
      %v4115 = vunpack.c.l.b16 %v3844
      %v4116 = vunpack.c.h.b16 %v3844
      %v4117 = vunpack.c.l.b16 %v3845
      %v4118 = vunpack.c.h.b16 %v3845
      %v4119 = vunpack.c.l.b16 %v3846
      %v4120 = vunpack.c.h.b16 %v3846
      %v4121 = vunpack.c.l.b16 %v3847
      %v4122 = vunpack.c.h.b16 %v3847
      %v4123 = vunpack.c.l.b16 %v3848
      %v4124 = vunpack.c.h.b16 %v3848
      %v4125 = vunpack.c.l.b16 %v3849
      %v4126 = vunpack.c.h.b16 %v3849
      %v4127 = vunpack.c.l.b16 %v3850
      %v4128 = vunpack.c.h.b16 %v3850
      %v4129 = vunpack.c.l.b16 %v3851
      %v4130 = vunpack.c.h.b16 %v3851
      %v4131 = vunpack.c.l.b16 %v3852
      %v4132 = vunpack.c.h.b16 %v3852
      %v4133 = vunpack.c.l.b16 %v3853
      %v4134 = vunpack.c.h.b16 %v3853
      %v4135 = vunpack.c.l.b16 %v3854
      %v4136 = vunpack.c.h.b16 %v3854
      %v4137 = vunpack.c.l.b16 %v3855
      %v4138 = vunpack.c.h.b16 %v3855
      %v4139 = vunpack.c.l.b16 %v3856
      %v4140 = vunpack.c.h.b16 %v3856
      %v4141 = vunpack.c.l.b16 %v3857
      %v4142 = vunpack.c.h.b16 %v3857
      %v4143 = vunpack.c.l.b16 %v3858
      %v4144 = vunpack.c.h.b16 %v3858
      %v4145 = vunpack.c.l.b16 %v3859
      %v4146 = vunpack.c.h.b16 %v3859
      %v4147 = vunpack.c.l.b16 %v3860
      %v4148 = vunpack.c.h.b16 %v3860
      %v4149 = vunpack.c.l.b16 %v3861
      %v4150 = vunpack.c.h.b16 %v3861
      %v4151 = vunpack.c.l.b16 %v3862
      %v4152 = vunpack.c.h.b16 %v3862
      %v4153 = vunpack.c.l.b16 %v3863
      %v4154 = vunpack.c.h.b16 %v3863
      %v4155 = vunpack.c.l.b16 %v3864
      %v4156 = vunpack.c.h.b16 %v3864
      %v4157 = vunpack.c.l.b16 %v3865
      %v4158 = vunpack.c.h.b16 %v3865
      %v4159 = vunpack.c.l.b16 %v3866
      %v4160 = vunpack.c.h.b16 %v3866
      %v4161 = vunpack.c.l.b16 %v3867
      %v4162 = vunpack.c.h.b16 %v3867
      %v4163 = vunpack.c.l.b16 %v3868
      %v4164 = vunpack.c.h.b16 %v3868
      %v4165 = vunpack.c.l.b16 %v3869
      %v4166 = vunpack.c.h.b16 %v3869
      %v4167 = vunpack.c.l.b16 %v3870
      %v4168 = vunpack.c.h.b16 %v3870
      %v4169 = vunpack.c.l.b16 %v3871
      %v4170 = vunpack.c.h.b16 %v3871
      %v4171 = vunpack.c.l.b16 %v3872
      %v4172 = vunpack.c.h.b16 %v3872
      %v4173 = vunpack.c.l.b16 %v3873
      %v4174 = vunpack.c.h.b16 %v3873
      %v4175 = vunpack.c.l.b16 %v3874
      %v4176 = vunpack.c.h.b16 %v3874
      %v4177 = vunpack.c.l.b16 %v3875
      %v4178 = vunpack.c.h.b16 %v3875
      %v4179 = vunpack.c.l.b16 %v3876
      %v4180 = vunpack.c.h.b16 %v3876
      %v4181 = vunpack.c.l.b16 %v3877
      %v4182 = vunpack.c.h.b16 %v3877
      %v4183 = vunpack.c.l.b16 %v3878
      %v4184 = vunpack.c.h.b16 %v3878
      %v4185 = vunpack.c.l.b16 %v3879
      %v4186 = vunpack.c.h.b16 %v3879
      %v4187 = vunpack.c.l.b16 %v3880
      %v4188 = vunpack.c.h.b16 %v3880
      %v4189 = vunpack.c.l.b16 %v3881
      %v4190 = vunpack.c.h.b16 %v3881
      %v4191 = vunpack.c.l.b16 %v3882
      %v4192 = vunpack.c.h.b16 %v3882
      %v4193 = vunpack.c.l.b16 %v3883
      %v4194 = vunpack.c.h.b16 %v3883
      %v4195 = vunpack.c.l.b16 %v3884
      %v4196 = vunpack.c.h.b16 %v3884
      %v4197 = vunpack.c.l.b16 %v3885
      %v4198 = vunpack.c.h.b16 %v3885
      %v4199 = vunpack.c.l.b16 %v3886
      %v4200 = vunpack.c.h.b16 %v3886
      %v4201 = vunpack.c.l.b16 %v3887
      %v4202 = vunpack.c.h.b16 %v3887
      %v4203 = vunpack.c.l.b16 %v3888
      %v4204 = vunpack.c.h.b16 %v3888
      %v4205 = vunpack.c.l.b16 %v3889
      %v4206 = vunpack.c.h.b16 %v3889
      %v4207 = vunpack.c.l.b16 %v3890
      %v4208 = vunpack.c.h.b16 %v3890
      %v4209 = vunpack.c.l.b16 %v3891
      %v4210 = vunpack.c.h.b16 %v3891
      %v4211 = vunpack.c.l.b16 %v3892
      %v4212 = vunpack.c.h.b16 %v3892
      %v4213 = vunpack.c.l.b16 %v3893
      %v4214 = vunpack.c.h.b16 %v3893
      %v4215 = vunpack.c.l.b16 %v3894
      %v4216 = vunpack.c.h.b16 %v3894
      %v4217 = vunpack.c.l.b16 %v3895
      %v4218 = vunpack.c.h.b16 %v3895
      %v4219 = vunpack.c.l.b16 %v3896
      %v4220 = vunpack.c.h.b16 %v3896
      %v4221 = vunpack.c.l.b16 %v3897
      %v4222 = vunpack.c.h.b16 %v3897
      %v4223 = vunpack.c.l.b16 %v3898
      %v4224 = vunpack.c.h.b16 %v3898
      %v4225 = vunpack.c.l.b16 %v3899
      %v4226 = vunpack.c.h.b16 %v3899
      %v4227 = vunpack.c.l.b16 %v3900
      %v4228 = vunpack.c.h.b16 %v3900
      %v4229 = vunpack.c.l.b16 %v3901
      %v4230 = vunpack.c.h.b16 %v3901
      %v4231 = vunpack.c.l.b16 %v3902
      %v4232 = vunpack.c.h.b16 %v3902
      %v4233 = vunpack.c.l.b16 %v3903
      %v4234 = vunpack.c.h.b16 %v3903
      %v4235 = vunpack.c.l.b16 %v3904
      %v4236 = vunpack.c.h.b16 %v3904
      %v4237 = vunpack.c.l.b16 %v3905
      %v4238 = vunpack.c.h.b16 %v3905
      %v4239 = vunpack.c.l.b16 %v3906
      %v4240 = vunpack.c.h.b16 %v3906
      %v4241 = vunpack.c.l.b16 %v3907
      %v4242 = vunpack.c.h.b16 %v3907
      %v4243 = vunpack.c.l.b16 %v3908
      %v4244 = vunpack.c.h.b16 %v3908
      %v4245 = vunpack.c.l.b16 %v3909
      %v4246 = vunpack.c.h.b16 %v3909
      %v4247 = vunpack.c.l.b16 %v3910
      %v4248 = vunpack.c.h.b16 %v3910
      %v4249 = vunpack.c.l.b16 %v3911
      %v4250 = vunpack.c.h.b16 %v3911
      %v4251 = vunpack.c.l.b16 %v3912
      %v4252 = vunpack.c.h.b16 %v3912
      %v4253 = vunpack.c.l.b16 %v3913
      %v4254 = vunpack.c.h.b16 %v3913
      %v4255 = vunpack.c.l.b16 %v3914
      %v4256 = vunpack.c.h.b16 %v3914
      %v4257 = vunpack.c.l.b16 %v3915
      %v4258 = vunpack.c.h.b16 %v3915
      %v4259 = vunpack.c.l.b16 %v3916
      %v4260 = vunpack.c.h.b16 %v3916
      %v4261 = vunpack.c.l.b16 %v3917
      %v4262 = vunpack.c.h.b16 %v3917
      %v4263 = vunpack.c.l.b16 %v3918
      %v4264 = vunpack.c.h.b16 %v3918
      %v4265 = vunpack.c.l.b16 %v3919
      %v4266 = vunpack.c.h.b16 %v3919
      %v4267 = vunpack.c.l.b16 %v3920
      %v4268 = vunpack.c.h.b16 %v3920
      %v4269 = vunpack.c.l.b16 %v3921
      %v4270 = vunpack.c.h.b16 %v3921
      %v4271 = vunpack.c.l.b16 %v3922
      %v4272 = vunpack.c.h.b16 %v3922
      %v4273 = vunpack.c.l.b16 %v3923
      %v4274 = vunpack.c.h.b16 %v3923
      %v4275 = vunpack.c.l.b16 %v3924
      %v4276 = vunpack.c.h.b16 %v3924
      %v4277 = vunpack.c.l.b16 %v3925
      %v4278 = vunpack.c.h.b16 %v3925
      %v4279 = vunpack.c.l.b16 %v3926
      %v4280 = vunpack.c.h.b16 %v3926
      %v4281 = vunpack.c.l.b16 %v3927
      %v4282 = vunpack.c.h.b16 %v3927
      %v4283 = vunpack.c.l.b16 %v3928
      %v4284 = vunpack.c.h.b16 %v3928
      %v4285 = vunpack.c.l.b16 %v3929
      %v4286 = vunpack.c.h.b16 %v3929
      %v4287 = vunpack.c.l.b16 %v3930
      %v4288 = vunpack.c.h.b16 %v3930
      %v4289 = vunpack.c.l.b16 %v3931
      %v4290 = vunpack.c.h.b16 %v3931
      %v4291 = vunpack.c.l.b16 %v3932
      %v4292 = vunpack.c.h.b16 %v3932
      %v4293 = vunpack.c.l.b16 %v3933
      %v4294 = vunpack.c.h.b16 %v3933
      %v4295 = vunpack.c.l.b16 %v3934
      %v4296 = vunpack.c.h.b16 %v3934
      %v4297 = vunpack.c.l.b16 %v3935
      %v4298 = vunpack.c.h.b16 %v3935
      %v4299 = vunpack.c.l.b16 %v3936
      %v4300 = vunpack.c.h.b16 %v3936
      %v4301 = vunpack.c.l.b16 %v3937
      %v4302 = vunpack.c.h.b16 %v3937
      %v4303 = vunpack.c.l.b16 %v3938
      %v4304 = vunpack.c.h.b16 %v3938
      %v4305 = vunpack.c.l.b16 %v3939
      %v4306 = vunpack.c.h.b16 %v3939
      %v4307 = vunpack.c.l.b16 %v3940
      %v4308 = vunpack.c.h.b16 %v3940
      %v4309 = vunpack.c.l.b16 %v3941
      %v4310 = vunpack.c.h.b16 %v3941
      %v4311 = vunpack.c.l.b16 %v3942
      %v4312 = vunpack.c.h.b16 %v3942
      %v4313 = vunpack.c.l.b16 %v3943
      %v4314 = vunpack.c.h.b16 %v3943
      %v4315 = vunpack.c.l.b16 %v3944
      %v4316 = vunpack.c.h.b16 %v3944
      %v4317 = vunpack.c.l.b16 %v3945
      %v4318 = vunpack.c.h.b16 %v3945
      %v4319 = vunpack.c.l.b16 %v3946
      %v4320 = vunpack.c.h.b16 %v3946
      %v4321 = vunpack.c.l.b16 %v3947
      %v4322 = vunpack.c.h.b16 %v3947
      %v4323 = vunpack.c.l.b16 %v3948
      %v4324 = vunpack.c.h.b16 %v3948
      %v4325 = vunpack.c.l.b16 %v3949
      %v4326 = vunpack.c.h.b16 %v3949
      %v4327 = vunpack.c.l.b16 %v3950
      %v4328 = vunpack.c.h.b16 %v3950
      %v4329 = vunpack.c.l.b16 %v3951
      %v4330 = vunpack.c.h.b16 %v3951
      %v4331 = vunpack.c.l.b16 %v3952
      %v4332 = vunpack.c.h.b16 %v3952
      %v4333 = vunpack.c.l.b16 %v3953
      %v4334 = vunpack.c.h.b16 %v3953
      %v4335 = vunpack.c.l.b16 %v3954
      %v4336 = vunpack.c.h.b16 %v3954
      %v4337 = vunpack.c.l.b16 %v3955
      %v4338 = vunpack.c.h.b16 %v3955
      %v4339 = vunpack.c.l.b16 %v3956
      %v4340 = vunpack.c.h.b16 %v3956
      %v4341 = vunpack.c.l.b16 %v3957
      %v4342 = vunpack.c.h.b16 %v3957
      %v4343 = vunpack.c.l.b16 %v3958
      %v4344 = vunpack.c.h.b16 %v3958
      %v4345 = vunpack.c.l.b16 %v3959
      %v4346 = vunpack.c.h.b16 %v3959
      %v4347 = vunpack.c.l.b16 %v3960
      %v4348 = vunpack.c.h.b16 %v3960
      %v4349 = vunpack.c.l.b16 %v3961
      %v4350 = vunpack.c.h.b16 %v3961
      %v4351 = vunpack.c.l.b16 %v3962
      %v4352 = vunpack.c.h.b16 %v3962
      %v4353 = vunpack.c.l.b16 %v3963
      %v4354 = vunpack.c.h.b16 %v3963
      %v4355 = vunpack.c.l.b16 %v3964
      %v4356 = vunpack.c.h.b16 %v3964
      %v4357 = vunpack.c.l.b16 %v3965
      %v4358 = vunpack.c.h.b16 %v3965
      %v4359 = vunpack.c.l.b16 %v3966
      %v4360 = vunpack.c.h.b16 %v3966
      %v4361 = vpack.c.b16 %v4109, %v4105
      %v4362 = vpack.c.b16 %v4110, %v4106
      %v4363 = vpack.c.b16 %v4111, %v4107
      %v4364 = vpack.c.b16 %v4112, %v4108
      %v4365 = vpack.c.b16 %v4117, %v4113
      %v4366 = vpack.c.b16 %v4118, %v4114
      %v4367 = vpack.c.b16 %v4119, %v4115
      %v4368 = vpack.c.b16 %v4120, %v4116
      %v4369 = vpack.c.b16 %v4125, %v4121
      %v4370 = vpack.c.b16 %v4126, %v4122
      %v4371 = vpack.c.b16 %v4127, %v4123
      %v4372 = vpack.c.b16 %v4128, %v4124
      %v4373 = vpack.c.b16 %v4133, %v4129
      %v4374 = vpack.c.b16 %v4134, %v4130
      %v4375 = vpack.c.b16 %v4135, %v4131
      %v4376 = vpack.c.b16 %v4136, %v4132
      %v4377 = vpack.c.b16 %v4141, %v4137
      %v4378 = vpack.c.b16 %v4142, %v4138
      %v4379 = vpack.c.b16 %v4143, %v4139
      %v4380 = vpack.c.b16 %v4144, %v4140
      %v4381 = vpack.c.b16 %v4149, %v4145
      %v4382 = vpack.c.b16 %v4150, %v4146
      %v4383 = vpack.c.b16 %v4151, %v4147
      %v4384 = vpack.c.b16 %v4152, %v4148
      %v4385 = vpack.c.b16 %v4157, %v4153
      %v4386 = vpack.c.b16 %v4158, %v4154
      %v4387 = vpack.c.b16 %v4159, %v4155
      %v4388 = vpack.c.b16 %v4160, %v4156
      %v4389 = vpack.c.b16 %v4165, %v4161
      %v4390 = vpack.c.b16 %v4166, %v4162
      %v4391 = vpack.c.b16 %v4167, %v4163
      %v4392 = vpack.c.b16 %v4168, %v4164
      %v4393 = vpack.c.b16 %v4173, %v4169
      %v4394 = vpack.c.b16 %v4174, %v4170
      %v4395 = vpack.c.b16 %v4175, %v4171
      %v4396 = vpack.c.b16 %v4176, %v4172
      %v4397 = vpack.c.b16 %v4181, %v4177
      %v4398 = vpack.c.b16 %v4182, %v4178
      %v4399 = vpack.c.b16 %v4183, %v4179
      %v4400 = vpack.c.b16 %v4184, %v4180
      %v4401 = vpack.c.b16 %v4189, %v4185
      %v4402 = vpack.c.b16 %v4190, %v4186
      %v4403 = vpack.c.b16 %v4191, %v4187
      %v4404 = vpack.c.b16 %v4192, %v4188
      %v4405 = vpack.c.b16 %v4197, %v4193
      %v4406 = vpack.c.b16 %v4198, %v4194
      %v4407 = vpack.c.b16 %v4199, %v4195
      %v4408 = vpack.c.b16 %v4200, %v4196
      %v4409 = vpack.c.b16 %v4205, %v4201
      %v4410 = vpack.c.b16 %v4206, %v4202
      %v4411 = vpack.c.b16 %v4207, %v4203
      %v4412 = vpack.c.b16 %v4208, %v4204
      %v4413 = vpack.c.b16 %v4213, %v4209
      %v4414 = vpack.c.b16 %v4214, %v4210
      %v4415 = vpack.c.b16 %v4215, %v4211
      %v4416 = vpack.c.b16 %v4216, %v4212
      %v4417 = vpack.c.b16 %v4221, %v4217
      %v4418 = vpack.c.b16 %v4222, %v4218
      %v4419 = vpack.c.b16 %v4223, %v4219
      %v4420 = vpack.c.b16 %v4224, %v4220
      %v4421 = vpack.c.b16 %v4229, %v4225
      %v4422 = vpack.c.b16 %v4230, %v4226
      %v4423 = vpack.c.b16 %v4231, %v4227
      %v4424 = vpack.c.b16 %v4232, %v4228
      %v4425 = vpack.c.b16 %v4237, %v4233
      %v4426 = vpack.c.b16 %v4238, %v4234
      %v4427 = vpack.c.b16 %v4239, %v4235
      %v4428 = vpack.c.b16 %v4240, %v4236
      %v4429 = vpack.c.b16 %v4245, %v4241
      %v4430 = vpack.c.b16 %v4246, %v4242
      %v4431 = vpack.c.b16 %v4247, %v4243
      %v4432 = vpack.c.b16 %v4248, %v4244
      %v4433 = vpack.c.b16 %v4253, %v4249
      %v4434 = vpack.c.b16 %v4254, %v4250
      %v4435 = vpack.c.b16 %v4255, %v4251
      %v4436 = vpack.c.b16 %v4256, %v4252
      %v4437 = vpack.c.b16 %v4261, %v4257
      %v4438 = vpack.c.b16 %v4262, %v4258
      %v4439 = vpack.c.b16 %v4263, %v4259
      %v4440 = vpack.c.b16 %v4264, %v4260
      %v4441 = vpack.c.b16 %v4269, %v4265
      %v4442 = vpack.c.b16 %v4270, %v4266
      %v4443 = vpack.c.b16 %v4271, %v4267
      %v4444 = vpack.c.b16 %v4272, %v4268
      %v4445 = vpack.c.b16 %v4277, %v4273
      %v4446 = vpack.c.b16 %v4278, %v4274
      %v4447 = vpack.c.b16 %v4279, %v4275
      %v4448 = vpack.c.b16 %v4280, %v4276
      %v4449 = vpack.c.b16 %v4285, %v4281
      %v4450 = vpack.c.b16 %v4286, %v4282
      %v4451 = vpack.c.b16 %v4287, %v4283
      %v4452 = vpack.c.b16 %v4288, %v4284
      %v4453 = vpack.c.b16 %v4293, %v4289
      %v4454 = vpack.c.b16 %v4294, %v4290
      %v4455 = vpack.c.b16 %v4295, %v4291
      %v4456 = vpack.c.b16 %v4296, %v4292
      %v4457 = vpack.c.b16 %v4301, %v4297
      %v4458 = vpack.c.b16 %v4302, %v4298
      %v4459 = vpack.c.b16 %v4303, %v4299
      %v4460 = vpack.c.b16 %v4304, %v4300
      %v4461 = vpack.c.b16 %v4309, %v4305
      %v4462 = vpack.c.b16 %v4310, %v4306
      %v4463 = vpack.c.b16 %v4311, %v4307
      %v4464 = vpack.c.b16 %v4312, %v4308
      %v4465 = vpack.c.b16 %v4317, %v4313
      %v4466 = vpack.c.b16 %v4318, %v4314
      %v4467 = vpack.c.b16 %v4319, %v4315
      %v4468 = vpack.c.b16 %v4320, %v4316
      %v4469 = vpack.c.b16 %v4325, %v4321
      %v4470 = vpack.c.b16 %v4326, %v4322
      %v4471 = vpack.c.b16 %v4327, %v4323
      %v4472 = vpack.c.b16 %v4328, %v4324
      %v4473 = vpack.c.b16 %v4333, %v4329
      %v4474 = vpack.c.b16 %v4334, %v4330
      %v4475 = vpack.c.b16 %v4335, %v4331
      %v4476 = vpack.c.b16 %v4336, %v4332
      %v4477 = vpack.c.b16 %v4341, %v4337
      %v4478 = vpack.c.b16 %v4342, %v4338
      %v4479 = vpack.c.b16 %v4343, %v4339
      %v4480 = vpack.c.b16 %v4344, %v4340
      %v4481 = vpack.c.b16 %v4349, %v4345
      %v4482 = vpack.c.b16 %v4350, %v4346
      %v4483 = vpack.c.b16 %v4351, %v4347
      %v4484 = vpack.c.b16 %v4352, %v4348
      %v4485 = vpack.c.b16 %v4357, %v4353
      %v4486 = vpack.c.b16 %v4358, %v4354
      %v4487 = vpack.c.b16 %v4359, %v4355
      %v4488 = vpack.c.b16 %v4360, %v4356
      %4617 = vmatpush.bf16.msra.mxu0 %v4389
      %4618 = vmatpush.bf16.msra.mxu0 %v4385
      %4619 = vmatpush.bf16.msra.mxu0 %v4381
      %4620 = vmatpush.bf16.msra.mxu0 %v4377
      %4621 = vmatpush.bf16.msra.mxu0 %v4373
      %4622 = vmatpush.bf16.msra.mxu0 %v4369
      %4623 = vmatpush.bf16.msra.mxu0 %v4365
      %4624 = vmatpush.bf16.msra.mxu0 %v4361
      %4625 = vmatmul.bf16.gmra.mxu0 %v3835
      %v4626 = vpop.f32.mrf.mxu0
      %v4627 = vadd.f32 %v3969, %v4626
      %v4628 = vpop.f32.mrf.mxu0
      %v4629 = vadd.f32 %v3969, %v4628
      %4630 = vdwg.mxu0
      %4631 = vmatpush.bf16.msra.mxu0 %v4421
      %4632 = vmatpush.bf16.msra.mxu0 %v4417
      %4633 = vmatpush.bf16.msra.mxu0 %v4413
      %4634 = vmatpush.bf16.msra.mxu0 %v4409
      %4635 = vmatpush.bf16.msra.mxu0 %v4405
      %4636 = vmatpush.bf16.msra.mxu0 %v4401
      %4637 = vmatpush.bf16.msra.mxu0 %v4397
      %4638 = vmatpush.bf16.msra.mxu0 %v4393
      %4639 = vmatmul.bf16.gmra.mxu0 %v3836
      %v4640 = vpop.f32.mrf.mxu0
      %v4641 = vadd.f32 %v4627, %v4640
      %v4642 = vpop.f32.mrf.mxu0
      %v4643 = vadd.f32 %v4629, %v4642
      %4644 = vdwg.mxu0
      %4645 = vmatpush.bf16.msra.mxu0 %v4453
      %4646 = vmatpush.bf16.msra.mxu0 %v4449
      %4647 = vmatpush.bf16.msra.mxu0 %v4445
      %4648 = vmatpush.bf16.msra.mxu0 %v4441
      %4649 = vmatpush.bf16.msra.mxu0 %v4437
      %4650 = vmatpush.bf16.msra.mxu0 %v4433
      %4651 = vmatpush.bf16.msra.mxu0 %v4429
      %4652 = vmatpush.bf16.msra.mxu0 %v4425
      %4653 = vmatmul.bf16.gmra.mxu0 %v3837
      %v4654 = vpop.f32.mrf.mxu0
      %v4655 = vadd.f32 %v4641, %v4654
      %v4656 = vpop.f32.mrf.mxu0
      %v4657 = vadd.f32 %v4643, %v4656
      %4658 = vdwg.mxu0
      %4659 = vmatpush.bf16.msra.mxu0 %v4485
      %4660 = vmatpush.bf16.msra.mxu0 %v4481
      %4661 = vmatpush.bf16.msra.mxu0 %v4477
      %4662 = vmatpush.bf16.msra.mxu0 %v4473
      %4663 = vmatpush.bf16.msra.mxu0 %v4469
      %4664 = vmatpush.bf16.msra.mxu0 %v4465
      %4665 = vmatpush.bf16.msra.mxu0 %v4461
      %4666 = vmatpush.bf16.msra.mxu0 %v4457
      %4667 = vmatmul.bf16.gmra.mxu0 %v3838
      %v4668 = vpop.f32.mrf.mxu0
      %v4669 = vadd.f32 %v4655, %v4668
      %v4670 = vpop.f32.mrf.mxu0
      %v4671 = vadd.f32 %v4657, %v4670
      %4672 = vdwg.mxu0
      %4673 = vmatpush.bf16.msra.mxu0 %v4390
      %4674 = vmatpush.bf16.msra.mxu0 %v4386
      %4675 = vmatpush.bf16.msra.mxu0 %v4382
      %4676 = vmatpush.bf16.msra.mxu0 %v4378
      %4677 = vmatpush.bf16.msra.mxu0 %v4374
      %4678 = vmatpush.bf16.msra.mxu0 %v4370
      %4679 = vmatpush.bf16.msra.mxu0 %v4366
      %4680 = vmatpush.bf16.msra.mxu0 %v4362
      %4681 = vmatmul.bf16.gmra.mxu0 %v3835
      %v4682 = vpop.f32.mrf.mxu0
      %v4683 = vadd.f32 %v3970, %v4682
      %v4684 = vpop.f32.mrf.mxu0
      %v4685 = vadd.f32 %v3970, %v4684
      %4686 = vdwg.mxu0
      %4687 = vmatpush.bf16.msra.mxu0 %v4422
      %4688 = vmatpush.bf16.msra.mxu0 %v4418
      %4689 = vmatpush.bf16.msra.mxu0 %v4414
      %4690 = vmatpush.bf16.msra.mxu0 %v4410
      %4691 = vmatpush.bf16.msra.mxu0 %v4406
      %4692 = vmatpush.bf16.msra.mxu0 %v4402
      %4693 = vmatpush.bf16.msra.mxu0 %v4398
      %4694 = vmatpush.bf16.msra.mxu0 %v4394
      %4695 = vmatmul.bf16.gmra.mxu0 %v3836
      %v4696 = vpop.f32.mrf.mxu0
      %v4697 = vadd.f32 %v4683, %v4696
      %v4698 = vpop.f32.mrf.mxu0
      %v4699 = vadd.f32 %v4685, %v4698
      %4700 = vdwg.mxu0
      %4701 = vmatpush.bf16.msra.mxu0 %v4454
      %4702 = vmatpush.bf16.msra.mxu0 %v4450
      %4703 = vmatpush.bf16.msra.mxu0 %v4446
      %4704 = vmatpush.bf16.msra.mxu0 %v4442
      %4705 = vmatpush.bf16.msra.mxu0 %v4438
      %4706 = vmatpush.bf16.msra.mxu0 %v4434
      %4707 = vmatpush.bf16.msra.mxu0 %v4430
      %4708 = vmatpush.bf16.msra.mxu0 %v4426
      %4709 = vmatmul.bf16.gmra.mxu0 %v3837
      %v4710 = vpop.f32.mrf.mxu0
      %v4711 = vadd.f32 %v4697, %v4710
      %v4712 = vpop.f32.mrf.mxu0
      %v4713 = vadd.f32 %v4699, %v4712
      %4714 = vdwg.mxu0
      %4715 = vmatpush.bf16.msra.mxu0 %v4486
      %4716 = vmatpush.bf16.msra.mxu0 %v4482
      %4717 = vmatpush.bf16.msra.mxu0 %v4478
      %4718 = vmatpush.bf16.msra.mxu0 %v4474
      %4719 = vmatpush.bf16.msra.mxu0 %v4470
      %4720 = vmatpush.bf16.msra.mxu0 %v4466
      %4721 = vmatpush.bf16.msra.mxu0 %v4462
      %4722 = vmatpush.bf16.msra.mxu0 %v4458
      %4723 = vmatmul.bf16.gmra.mxu0 %v3838
      %v4724 = vpop.f32.mrf.mxu0
      %v4725 = vadd.f32 %v4711, %v4724
      %v4726 = vpop.f32.mrf.mxu0
      %v4727 = vadd.f32 %v4713, %v4726
      %4728 = vdwg.mxu0
      %4729 = vmatpush.bf16.msra.mxu0 %v4391
      %4730 = vmatpush.bf16.msra.mxu0 %v4387
      %4731 = vmatpush.bf16.msra.mxu0 %v4383
      %4732 = vmatpush.bf16.msra.mxu0 %v4379
      %4733 = vmatpush.bf16.msra.mxu0 %v4375
      %4734 = vmatpush.bf16.msra.mxu0 %v4371
      %4735 = vmatpush.bf16.msra.mxu0 %v4367
      %4736 = vmatpush.bf16.msra.mxu0 %v4363
      %4737 = vmatmul.bf16.gmra.mxu0 %v3835
      %v4738 = vpop.f32.mrf.mxu0
      %v4739 = vadd.f32 %v3971, %v4738
      %v4740 = vpop.f32.mrf.mxu0
      %v4741 = vadd.f32 %v3971, %v4740
      %4742 = vdwg.mxu0
      %4743 = vmatpush.bf16.msra.mxu0 %v4423
      %4744 = vmatpush.bf16.msra.mxu0 %v4419
      %4745 = vmatpush.bf16.msra.mxu0 %v4415
      %4746 = vmatpush.bf16.msra.mxu0 %v4411
      %4747 = vmatpush.bf16.msra.mxu0 %v4407
      %4748 = vmatpush.bf16.msra.mxu0 %v4403
      %4749 = vmatpush.bf16.msra.mxu0 %v4399
      %4750 = vmatpush.bf16.msra.mxu0 %v4395
      %4751 = vmatmul.bf16.gmra.mxu0 %v3836
      %v4752 = vpop.f32.mrf.mxu0
      %v4753 = vadd.f32 %v4739, %v4752
      %v4754 = vpop.f32.mrf.mxu0
      %v4755 = vadd.f32 %v4741, %v4754
      %4756 = vdwg.mxu0
      %4757 = vmatpush.bf16.msra.mxu0 %v4455
      %4758 = vmatpush.bf16.msra.mxu0 %v4451
      %4759 = vmatpush.bf16.msra.mxu0 %v4447
      %4760 = vmatpush.bf16.msra.mxu0 %v4443
      %4761 = vmatpush.bf16.msra.mxu0 %v4439
      %4762 = vmatpush.bf16.msra.mxu0 %v4435
      %4763 = vmatpush.bf16.msra.mxu0 %v4431
      %4764 = vmatpush.bf16.msra.mxu0 %v4427
      %4765 = vmatmul.bf16.gmra.mxu0 %v3837
      %v4766 = vpop.f32.mrf.mxu0
      %v4767 = vadd.f32 %v4753, %v4766
      %v4768 = vpop.f32.mrf.mxu0
      %v4769 = vadd.f32 %v4755, %v4768
      %4770 = vdwg.mxu0
      %4771 = vmatpush.bf16.msra.mxu0 %v4487
      %4772 = vmatpush.bf16.msra.mxu0 %v4483
      %4773 = vmatpush.bf16.msra.mxu0 %v4479
      %4774 = vmatpush.bf16.msra.mxu0 %v4475
      %4775 = vmatpush.bf16.msra.mxu0 %v4471
      %4776 = vmatpush.bf16.msra.mxu0 %v4467
      %4777 = vmatpush.bf16.msra.mxu0 %v4463
      %4778 = vmatpush.bf16.msra.mxu0 %v4459
      %4779 = vmatmul.bf16.gmra.mxu0 %v3838
      %v4780 = vpop.f32.mrf.mxu0
      %v4781 = vadd.f32 %v4767, %v4780
      %v4782 = vpop.f32.mrf.mxu0
      %v4783 = vadd.f32 %v4769, %v4782
      %4784 = vdwg.mxu0
      %4785 = vmatpush.bf16.msra.mxu0 %v4392
      %4786 = vmatpush.bf16.msra.mxu0 %v4388
      %4787 = vmatpush.bf16.msra.mxu0 %v4384
      %4788 = vmatpush.bf16.msra.mxu0 %v4380
      %4789 = vmatpush.bf16.msra.mxu0 %v4376
      %4790 = vmatpush.bf16.msra.mxu0 %v4372
      %4791 = vmatpush.bf16.msra.mxu0 %v4368
      %4792 = vmatpush.bf16.msra.mxu0 %v4364
      %4793 = vmatmul.bf16.gmra.mxu0 %v3835
      %v4794 = vpop.f32.mrf.mxu0
      %v4795 = vadd.f32 %v3972, %v4794
      %v4796 = vpop.f32.mrf.mxu0
      %v4797 = vadd.f32 %v3972, %v4796
      %4798 = vdwg.mxu0
      %4799 = vmatpush.bf16.msra.mxu0 %v4424
      %4800 = vmatpush.bf16.msra.mxu0 %v4420
      %4801 = vmatpush.bf16.msra.mxu0 %v4416
      %4802 = vmatpush.bf16.msra.mxu0 %v4412
      %4803 = vmatpush.bf16.msra.mxu0 %v4408
      %4804 = vmatpush.bf16.msra.mxu0 %v4404
      %4805 = vmatpush.bf16.msra.mxu0 %v4400
      %4806 = vmatpush.bf16.msra.mxu0 %v4396
      %4807 = vmatmul.bf16.gmra.mxu0 %v3836
      %v4808 = vpop.f32.mrf.mxu0
      %v4809 = vadd.f32 %v4795, %v4808
      %v4810 = vpop.f32.mrf.mxu0
      %v4811 = vadd.f32 %v4797, %v4810
      %4812 = vdwg.mxu0
      %4813 = vmatpush.bf16.msra.mxu0 %v4456
      %4814 = vmatpush.bf16.msra.mxu0 %v4452
      %4815 = vmatpush.bf16.msra.mxu0 %v4448
      %4816 = vmatpush.bf16.msra.mxu0 %v4444
      %4817 = vmatpush.bf16.msra.mxu0 %v4440
      %4818 = vmatpush.bf16.msra.mxu0 %v4436
      %4819 = vmatpush.bf16.msra.mxu0 %v4432
      %4820 = vmatpush.bf16.msra.mxu0 %v4428
      %4821 = vmatmul.bf16.gmra.mxu0 %v3837
      %v4822 = vpop.f32.mrf.mxu0
      %v4823 = vadd.f32 %v4809, %v4822
      %v4824 = vpop.f32.mrf.mxu0
      %v4825 = vadd.f32 %v4811, %v4824
      %4826 = vdwg.mxu0
      %4827 = vmatpush.bf16.msra.mxu0 %v4488
      %4828 = vmatpush.bf16.msra.mxu0 %v4484
      %4829 = vmatpush.bf16.msra.mxu0 %v4480
      %4830 = vmatpush.bf16.msra.mxu0 %v4476
      %4831 = vmatpush.bf16.msra.mxu0 %v4472
      %4832 = vmatpush.bf16.msra.mxu0 %v4468
      %4833 = vmatpush.bf16.msra.mxu0 %v4464
      %4834 = vmatpush.bf16.msra.mxu0 %v4460
      %4835 = vmatmul.bf16.gmra.mxu0 %v3838
      %v4836 = vpop.f32.mrf.mxu0
      %v4837 = vadd.f32 %v4823, %v4836
      %v4838 = vpop.f32.mrf.mxu0
      %v4839 = vadd.f32 %v4825, %v4838
      %4840 = vdwg.mxu0
      %4841 = vst [vmem:[%s224] sm:$0xff] %v4669
      %4842 = vst [vmem:[%s224 + $0x8] sm:$0xff] %v4725
      %4843 = vst [vmem:[%s224 + $0x10] sm:$0xff] %v4781
      %4844 = vst [vmem:[%s224 + $0x18] sm:$0xff] %v4837
      %4845 = vst [vmem:[%s224 + $0x20] sm:$0xff] %v4671
      %4846 = vst [vmem:[%s224 + $0x28] sm:$0xff] %v4727
      %4847 = vst [vmem:[%s224 + $0x30] sm:$0xff] %v4783
      %4848 = vst [vmem:[%s224 + $0x38] sm:$0xff] %v4839
      %p4849 = scmp.lt.s32.totalorder %s16, 1
      %s4850 = scalar_select %p4849, %s16, 1
      %s4851 = smul.addr %s4850, 8
      %s4852 = smul.addr %s4851, 8
      %s4853 = scalar_lea.vmem %s5, %s4852
      // Predicated region
      $region41: #{building_block.1} parent=39 // pred_check
        %p4854 = pneg %p144
      $region42: #{building_block.1} parent=39 // pred_check_branch
        %4856 = sbr.rel (%p4854) target = $region44
      $region43: #{building_block.1} parent=39 // pred_region
        _
      $region44: #{building_block.1} parent=39 // pred_fallthru
        _
    $region40: #{building_block.1} parent=5 // pred_fallthru
      _
    %p4857 = scmp.le.s32.totalorder 2, %s11
    // Predicated region
    $region45: #{building_block.1} parent=5 // pred_check
      %p4858 = pneg %p4857
    $region46: #{building_block.1} parent=5 // pred_check_branch
      %4860 = sbr.rel (%p4858) target = $region48
    $region47: #{building_block.1} parent=5 // pred_region
      %s4861 = ssub.s32 %s11, 2
      // Predicated region
      $region49: #{building_block.1} parent=47 // pred_check
        %p4862 = pneg %p150
      $region50: #{building_block.1} parent=47 // pred_check_branch
        %4864 = sbr.rel (%p4862) target = $region52
      $region51: #{building_block.1} parent=47 // pred_region
        %p4865 = scmp.lt.s32.totalorder %s17, 1
        %s4866 = scalar_select %p4865, %s17, 1
        %s4867 = smul.addr %s4866, 8
        %s4868 = smul.addr %s4867, 8
        %s4869 = scalar_lea.vmem %s5, %s4868
      $region52: #{building_block.1} parent=47 // pred_fallthru
        _
    $region48: #{building_block.1} parent=5 // pred_fallthru
      _
  $region6: #{building_block.1} parent=0 // loop_footer
    %s15 = sadd.s32 1, %s11
  $region7: #{building_block.1} parent=0 // loop_footer_branch
    %10 = sbr.rel target = $region3
  $region8: #{building_block.1} parent=0 // loop_exit
    _

</llo_original>
